<compile_context>
chip_gen: v5e
topology: v5e:2x2
jax: 0.10.0
libtpu: 0.0.40
codegen_flags: <defaults>
</compile_context>

<pallas_src>
import jax
import jax.numpy as jnp
from jax import lax
from jax.experimental import pallas as pl
from jax.experimental.pallas import tpu as pltpu

M_COUNT = 20          # metabolites (m_count)
REACTIONS_COUNT = 50  # reactions_count
STEP = 0.5            # global `step` used in MultiReaction_new.forward
SCOUNT = 2            # substrates per reaction
PCOUNT = 2            # products per reaction
LANE = 128


def multireaction_kernel(sub_idx_ref, delta_ref, x_ref, o_ref):
    """Sequentially apply all reactions to one (M, TILE_B) concentration tile.

    sub_idx_ref : (R*SCOUNT,) int32 in SMEM -- substrate indices per reaction.
    delta_ref   : (M, R) f32 in VMEM       -- pre-scaled STEP*(prod-sub) columns.
    x_ref/o_ref : (M, TILE_B) f32          -- metabolites on sublanes, batch on lanes.
    """
    n_reactions = delta_ref.shape[1]
    o_ref[...] = x_ref[...]
    # Static unroll over the R reactions (compile-time constant). delta slices
    # are static; only the substrate row reads are dynamic (SMEM scalar index
    # -> cheap dynamic-sublane VMEM load).
    for r in range(n_reactions):
        i0 = sub_idx_ref[SCOUNT * r]
        i1 = sub_idx_ref[SCOUNT * r + 1]
        # mass-action rate = product of the two substrate concentration rows
        rate = o_ref[pl.ds(i0, 1), :] * o_ref[pl.ds(i1, 1), :]      # (1, TILE_B)
        o_ref[...] = o_ref[...] + delta_ref[:, r:r + 1] * rate      # (M, TILE_B)


@jax.jit
def multireaction_forward(x, sub, prod):
    """Pallas wrapper. x: (B, M); sub/prod: (R, M) binary stoichiometry."""
    B, M = x.shape
    R = sub.shape[0]

    # Hoisted per-reaction preprocessing (outside the serial in-kernel chain).
    sub_idx = lax.top_k(sub, SCOUNT)[1].astype(jnp.int32).reshape(-1)   # (R*SCOUNT,)
    delta_t = (STEP * (prod - sub)).astype(x.dtype).T                   # (M, R)

    # Lane-dense layout: batch on lanes, padded to a multiple of 128. Padded
    # columns are zero -> rate = 0 -> they stay zero; sliced off on the way out.
    B_pad = pl.cdiv(B, LANE) * LANE
    tile_b = LANE
    for cand in (2048, 1024, 512, 256, 128):
        if B_pad % cand == 0:
            tile_b = cand
            break
    x_t = jnp.pad(x.T, ((0, 0), (0, B_pad - B)))                        # (M, B_pad)

    out_t = pl.pallas_call(
        multireaction_kernel,
        out_shape=jax.ShapeDtypeStruct((M, B_pad), x.dtype),
        grid=(B_pad // tile_b,),
        in_specs=[
            pl.BlockSpec(memory_space=pltpu.MemorySpace.SMEM),      # substrate indices
            pl.BlockSpec((M, R), lambda i: (0, 0)),                 # delta, resident in VMEM
            pl.BlockSpec((M, tile_b), lambda i: (0, i)),            # x batch tile
        ],
        out_specs=pl.BlockSpec((M, tile_b), lambda i: (0, i)),
        input_output_aliases={2: 0},                                # x tile fully overwritten
        compiler_params=pltpu.CompilerParams(
            dimension_semantics=("parallel",)),                     # batch tiles -> both TCs on v7x
    )(sub_idx, delta_t, x_t)

    return out_t[:, :B].T


def multireaction_reference(x, sub, prod):
    """Pure-JAX reference for the same sequential reaction chain (dense form)."""
    def step_fn(x, sp):
        s, p = sp
        rate = jnp.prod(jnp.where(s > 0, x, 1.0), axis=-1, keepdims=True)
        return x + STEP * rate * (p - s), None
    x, _ = lax.scan(step_fn, x, (sub[:, None, :], prod[:, None, :]))
    return x


def build_reaction_tensors(key, rcount, m, scount, pcount):
    """Deterministic stand-in for Generator.get_reactions_tensor(i)."""
    subs, prods = [], []
    for _ in range(rcount):
        key, k = jax.random.split(key)
        perm = jax.random.permutation(k, m)
        s = jnp.zeros((m,), jnp.float32).at[perm[:scount]].set(1.0)
        p = jnp.zeros((m,), jnp.float32).at[perm[scount:scount + pcount]].set(1.0)
        subs.append(s)
        prods.append(p)
    return jnp.stack(subs), jnp.stack(prods)


if __name__ == "__main__":
    key = jax.random.PRNGKey(0)
    k_rxn, k_x = jax.random.split(key)

    # Reaction definitions (deterministic, in place of the GAN generator).
    sub, prod = build_reaction_tensors(k_rxn, REACTIONS_COUNT, M_COUNT, SCOUNT, PCOUNT)

    # Input concentrations, uniform in [low=0.0, high=1.0).
    B = 4
    x = jax.random.uniform(k_x, (B, M_COUNT), dtype=jnp.float32)

    out = jax.block_until_ready(multireaction_forward(x, sub, prod))

    ref = multireaction_reference(x, sub, prod)
    assert out.shape == x.shape and out.dtype == x.dtype
    assert jnp.allclose(out, ref, atol=1e-5, rtol=1e-5)

    print("KERNEL_OK")
</pallas_src>

<mosaic_0001>
module attributes {stable_mosaic.version = 11 : i64} {
  func.func @multireaction_kernel(%arg0: i32, %arg1: memref<100xi32, #tpu.memory_space<smem>>, %arg2: memref<20x50xf32, #tpu.memory_space<vmem>>, %arg3: memref<20x128xf32, #tpu.memory_space<vmem>>, %arg4: memref<20x128xf32, #tpu.memory_space<vmem>>) attributes {dimension_semantics = [#tpu.dimension_semantics<parallel>], iteration_bounds = array<i64: 1>, scalar_prefetch = 0 : i64, scratch_operands = 0 : i64, tpu.core_type = #tpu.core_type<tc>, window_params = [{transform_indices = @transform_0, window_bounds = array<i64: 100>}, {pipeline_mode = #tpu.pipeline_mode<synchronous>, transform_indices = @transform_1, window_bounds = array<i64: 20, 50>}, {transform_indices = @transform_2, window_bounds = array<i64: 20, 128>}, {transform_indices = @transform_3, window_bounds = array<i64: 20, 128>}]} {
    %c0 = arith.constant 0 : index
    %c0_0 = arith.constant 0 : index
    %0 = vector.load %arg3[%c0, %c0_0] : memref<20x128xf32, #tpu.memory_space<vmem>>, vector<20x128xf32>
    %c0_1 = arith.constant 0 : index
    %c0_2 = arith.constant 0 : index
    %1 = vector.load %arg4[%c0_1, %c0_2] : memref<20x128xf32, #tpu.memory_space<vmem>>, vector<20x128xf32>
    tpu.vector_store %arg4[%c0_1, %c0_2], %0 {strides = array<i32>} : memref<20x128xf32, #tpu.memory_space<vmem>>, vector<20x128xf32>,
    %c0_3 = arith.constant 0 : index
    %2 = memref.load %arg1[%c0_3] : memref<100xi32, #tpu.memory_space<smem>>
    %c1 = arith.constant 1 : index
    %3 = memref.load %arg1[%c1] : memref<100xi32, #tpu.memory_space<smem>>
    %4 = arith.index_cast %2 : i32 to index
    %c0_4 = arith.constant 0 : index
    %5 = vector.load %arg4[%4, %c0_4] : memref<20x128xf32, #tpu.memory_space<vmem>>, vector<1x128xf32>
    %6 = arith.index_cast %3 : i32 to index
    %c0_5 = arith.constant 0 : index
    %7 = vector.load %arg4[%6, %c0_5] : memref<20x128xf32, #tpu.memory_space<vmem>>, vector<1x128xf32>
    %8 = arith.mulf %5, %7 : vector<1x128xf32>
    %c0_6 = arith.constant 0 : index
    %c0_7 = arith.constant 0 : index
    %9 = vector.load %arg4[%c0_6, %c0_7] : memref<20x128xf32, #tpu.memory_space<vmem>>, vector<20x128xf32>
    %c0_8 = arith.constant 0 : index
    %c0_9 = arith.constant 0 : index
    %10 = vector.load %arg2[%c0_8, %c0_9] : memref<20x50xf32, #tpu.memory_space<vmem>>, vector<20x1xf32>
    %11 = vector.broadcast %10 : vector<20x1xf32> to vector<20x128xf32>
    %12 = vector.broadcast %8 : vector<1x128xf32> to vector<20x128xf32>
    %13 = arith.mulf %11, %12 : vector<20x128xf32>
    %14 = arith.addf %9, %13 : vector<20x128xf32>
    %c0_10 = arith.constant 0 : index
    %c0_11 = arith.constant 0 : index
    %15 = vector.load %arg4[%c0_10, %c0_11] : memref<20x128xf32, #tpu.memory_space<vmem>>, vector<20x128xf32>
    tpu.vector_store %arg4[%c0_10, %c0_11], %14 {strides = array<i32>} : memref<20x128xf32, #tpu.memory_space<vmem>>, vector<20x128xf32>,
    %c2 = arith.constant 2 : index
    %16 = memref.load %arg1[%c2] : memref<100xi32, #tpu.memory_space<smem>>
    %c3 = arith.constant 3 : index
    %17 = memref.load %arg1[%c3] : memref<100xi32, #tpu.memory_space<smem>>
    %18 = arith.index_cast %16 : i32 to index
    %c0_12 = arith.constant 0 : index
    %19 = vector.load %arg4[%18, %c0_12] : memref<20x128xf32, #tpu.memory_space<vmem>>, vector<1x128xf32>
    %20 = arith.index_cast %17 : i32 to index
    %c0_13 = arith.constant 0 : index
    %21 = vector.load %arg4[%20, %c0_13] : memref<20x128xf32, #tpu.memory_space<vmem>>, vector<1x128xf32>
    %22 = arith.mulf %19, %21 : vector<1x128xf32>
    %c0_14 = arith.constant 0 : index
    %c0_15 = arith.constant 0 : index
    %23 = vector.load %arg4[%c0_14, %c0_15] : memref<20x128xf32, #tpu.memory_space<vmem>>, vector<20x128xf32>
    %c0_16 = arith.constant 0 : index
    %c1_17 = arith.constant 1 : index
    %24 = vector.load %arg2[%c0_16, %c1_17] : memref<20x50xf32, #tpu.memory_space<vmem>>, vector<20x1xf32>
    %25 = vector.broadcast %24 : vector<20x1xf32> to vector<20x128xf32>
    %26 = vector.broadcast %22 : vector<1x128xf32> to vector<20x128xf32>
    %27 = arith.mulf %25, %26 : vector<20x128xf32>
    %28 = arith.addf %23, %27 : vector<20x128xf32>
    %c0_18 = arith.constant 0 : index
    %c0_19 = arith.constant 0 : index
    %29 = vector.load %arg4[%c0_18, %c0_19] : memref<20x128xf32, #tpu.memory_space<vmem>>, vector<20x128xf32>
    tpu.vector_store %arg4[%c0_18, %c0_19], %28 {strides = array<i32>} : memref<20x128xf32, #tpu.memory_space<vmem>>, vector<20x128xf32>,
    %c4 = arith.constant 4 : index
    %30 = memref.load %arg1[%c4] : memref<100xi32, #tpu.memory_space<smem>>
    %c5 = arith.constant 5 : index
    %31 = memref.load %arg1[%c5] : memref<100xi32, #tpu.memory_space<smem>>
    %32 = arith.index_cast %30 : i32 to index
    %c0_20 = arith.constant 0 : index
    %33 = vector.load %arg4[%32, %c0_20] : memref<20x128xf32, #tpu.memory_space<vmem>>, vector<1x128xf32>
    %34 = arith.index_cast %31 : i32 to index
    %c0_21 = arith.constant 0 : index
    %35 = vector.load %arg4[%34, %c0_21] : memref<20x128xf32, #tpu.memory_space<vmem>>, vector<1x128xf32>
    %36 = arith.mulf %33, %35 : vector<1x128xf32>
    %c0_22 = arith.constant 0 : index
    %c0_23 = arith.constant 0 : index
    %37 = vector.load %arg4[%c0_22, %c0_23] : memref<20x128xf32, #tpu.memory_space<vmem>>, vector<20x128xf32>
    %c0_24 = arith.constant 0 : index
    %c2_25 = arith.constant 2 : index
    %38 = vector.load %arg2[%c0_24, %c2_25] : memref<20x50xf32, #tpu.memory_space<vmem>>, vector<20x1xf32>
    %39 = vector.broadcast %38 : vector<20x1xf32> to vector<20x128xf32>
    %40 = vector.broadcast %36 : vector<1x128xf32> to vector<20x128xf32>
    %41 = arith.mulf %39, %40 : vector<20x128xf32>
    %42 = arith.addf %37, %41 : vector<20x128xf32>
    %c0_26 = arith.constant 0 : index
    %c0_27 = arith.constant 0 : index
    %43 = vector.load %arg4[%c0_26, %c0_27] : memref<20x128xf32, #tpu.memory_space<vmem>>, vector<20x128xf32>
    tpu.vector_store %arg4[%c0_26, %c0_27], %42 {strides = array<i32>} : memref<20x128xf32, #tpu.memory_space<vmem>>, vector<20x128xf32>,
    %c6 = arith.constant 6 : index
    %44 = memref.load %arg1[%c6] : memref<100xi32, #tpu.memory_space<smem>>
    %c7 = arith.constant 7 : index
    %45 = memref.load %arg1[%c7] : memref<100xi32, #tpu.memory_space<smem>>
    %46 = arith.index_cast %44 : i32 to index
    %c0_28 = arith.constant 0 : index
    %47 = vector.load %arg4[%46, %c0_28] : memref<20x128xf32, #tpu.memory_space<vmem>>, vector<1x128xf32>
    %48 = arith.index_cast %45 : i32 to index
    %c0_29 = arith.constant 0 : index
    %49 = vector.load %arg4[%48, %c0_29] : memref<20x128xf32, #tpu.memory_space<vmem>>, vector<1x128xf32>
    %50 = arith.mulf %47, %49 : vector<1x128xf32>
    %c0_30 = arith.constant 0 : index
    %c0_31 = arith.constant 0 : index
    %51 = vector.load %arg4[%c0_30, %c0_31] : memref<20x128xf32, #tpu.memory_space<vmem>>, vector<20x128xf32>
    %c0_32 = arith.constant 0 : index
    %c3_33 = arith.constant 3 : index
    %52 = vector.load %arg2[%c0_32, %c3_33] : memref<20x50xf32, #tpu.memory_space<vmem>>, vector<20x1xf32>
    %53 = vector.broadcast %52 : vector<20x1xf32> to vector<20x128xf32>
    %54 = vector.broadcast %50 : vector<1x128xf32> to vector<20x128xf32>
    %55 = arith.mulf %53, %54 : vector<20x128xf32>
    %56 = arith.addf %51, %55 : vector<20x128xf32>
    %c0_34 = arith.constant 0 : index
    %c0_35 = arith.constant 0 : index
    %57 = vector.load %arg4[%c0_34, %c0_35] : memref<20x128xf32, #tpu.memory_space<vmem>>, vector<20x128xf32>
    tpu.vector_store %arg4[%c0_34, %c0_35], %56 {strides = array<i32>} : memref<20x128xf32, #tpu.memory_space<vmem>>, vector<20x128xf32>,
    %c8 = arith.constant 8 : index
    %58 = memref.load %arg1[%c8] : memref<100xi32, #tpu.memory_space<smem>>
    %c9 = arith.constant 9 : index
    %59 = memref.load %arg1[%c9] : memref<100xi32, #tpu.memory_space<smem>>
    %60 = arith.index_cast %58 : i32 to index
    %c0_36 = arith.constant 0 : index
    %61 = vector.load %arg4[%60, %c0_36] : memref<20x128xf32, #tpu.memory_space<vmem>>, vector<1x128xf32>
    %62 = arith.index_cast %59 : i32 to index
    %c0_37 = arith.constant 0 : index
    %63 = vector.load %arg4[%62, %c0_37] : memref<20x128xf32, #tpu.memory_space<vmem>>, vector<1x128xf32>
    %64 = arith.mulf %61, %63 : vector<1x128xf32>
    %c0_38 = arith.constant 0 : index
    %c0_39 = arith.constant 0 : index
    %65 = vector.load %arg4[%c0_38, %c0_39] : memref<20x128xf32, #tpu.memory_space<vmem>>, vector<20x128xf32>
    %c0_40 = arith.constant 0 : index
    %c4_41 = arith.constant 4 : index
    %66 = vector.load %arg2[%c0_40, %c4_41] : memref<20x50xf32, #tpu.memory_space<vmem>>, vector<20x1xf32>
    %67 = vector.broadcast %66 : vector<20x1xf32> to vector<20x128xf32>
    %68 = vector.broadcast %64 : vector<1x128xf32> to vector<20x128xf32>
    %69 = arith.mulf %67, %68 : vector<20x128xf32>
    %70 = arith.addf %65, %69 : vector<20x128xf32>
    %c0_42 = arith.constant 0 : index
    %c0_43 = arith.constant 0 : index
    %71 = vector.load %arg4[%c0_42, %c0_43] : memref<20x128xf32, #tpu.memory_space<vmem>>, vector<20x128xf32>
    tpu.vector_store %arg4[%c0_42, %c0_43], %70 {strides = array<i32>} : memref<20x128xf32, #tpu.memory_space<vmem>>, vector<20x128xf32>,
    %c10 = arith.constant 10 : index
    %72 = memref.load %arg1[%c10] : memref<100xi32, #tpu.memory_space<smem>>
    %c11 = arith.constant 11 : index
    %73 = memref.load %arg1[%c11] : memref<100xi32, #tpu.memory_space<smem>>
    %74 = arith.index_cast %72 : i32 to index
    %c0_44 = arith.constant 0 : index
    %75 = vector.load %arg4[%74, %c0_44] : memref<20x128xf32, #tpu.memory_space<vmem>>, vector<1x128xf32>
    %76 = arith.index_cast %73 : i32 to index
    %c0_45 = arith.constant 0 : index
    %77 = vector.load %arg4[%76, %c0_45] : memref<20x128xf32, #tpu.memory_space<vmem>>, vector<1x128xf32>
    %78 = arith.mulf %75, %77 : vector<1x128xf32>
    %c0_46 = arith.constant 0 : index
    %c0_47 = arith.constant 0 : index
    %79 = vector.load %arg4[%c0_46, %c0_47] : memref<20x128xf32, #tpu.memory_space<vmem>>, vector<20x128xf32>
    %c0_48 = arith.constant 0 : index
    %c5_49 = arith.constant 5 : index
    %80 = vector.load %arg2[%c0_48, %c5_49] : memref<20x50xf32, #tpu.memory_space<vmem>>, vector<20x1xf32>
    %81 = vector.broadcast %80 : vector<20x1xf32> to vector<20x128xf32>
    %82 = vector.broadcast %78 : vector<1x128xf32> to vector<20x128xf32>
    %83 = arith.mulf %81, %82 : vector<20x128xf32>
    %84 = arith.addf %79, %83 : vector<20x128xf32>
    %c0_50 = arith.constant 0 : index
    %c0_51 = arith.constant 0 : index
    %85 = vector.load %arg4[%c0_50, %c0_51] : memref<20x128xf32, #tpu.memory_space<vmem>>, vector<20x128xf32>
    tpu.vector_store %arg4[%c0_50, %c0_51], %84 {strides = array<i32>} : memref<20x128xf32, #tpu.memory_space<vmem>>, vector<20x128xf32>,
    %c12 = arith.constant 12 : index
    %86 = memref.load %arg1[%c12] : memref<100xi32, #tpu.memory_space<smem>>
    %c13 = arith.constant 13 : index
    %87 = memref.load %arg1[%c13] : memref<100xi32, #tpu.memory_space<smem>>
    %88 = arith.index_cast %86 : i32 to index
    %c0_52 = arith.constant 0 : index
    %89 = vector.load %arg4[%88, %c0_52] : memref<20x128xf32, #tpu.memory_space<vmem>>, vector<1x128xf32>
    %90 = arith.index_cast %87 : i32 to index
    %c0_53 = arith.constant 0 : index
    %91 = vector.load %arg4[%90, %c0_53] : memref<20x128xf32, #tpu.memory_space<vmem>>, vector<1x128xf32>
    %92 = arith.mulf %89, %91 : vector<1x128xf32>
    %c0_54 = arith.constant 0 : index
    %c0_55 = arith.constant 0 : index
    %93 = vector.load %arg4[%c0_54, %c0_55] : memref<20x128xf32, #tpu.memory_space<vmem>>, vector<20x128xf32>
    %c0_56 = arith.constant 0 : index
    %c6_57 = arith.constant 6 : index
    %94 = vector.load %arg2[%c0_56, %c6_57] : memref<20x50xf32, #tpu.memory_space<vmem>>, vector<20x1xf32>
    %95 = vector.broadcast %94 : vector<20x1xf32> to vector<20x128xf32>
    %96 = vector.broadcast %92 : vector<1x128xf32> to vector<20x128xf32>
    %97 = arith.mulf %95, %96 : vector<20x128xf32>
    %98 = arith.addf %93, %97 : vector<20x128xf32>
    %c0_58 = arith.constant 0 : index
    %c0_59 = arith.constant 0 : index
    %99 = vector.load %arg4[%c0_58, %c0_59] : memref<20x128xf32, #tpu.memory_space<vmem>>, vector<20x128xf32>
    tpu.vector_store %arg4[%c0_58, %c0_59], %98 {strides = array<i32>} : memref<20x128xf32, #tpu.memory_space<vmem>>, vector<20x128xf32>,
    %c14 = arith.constant 14 : index
    %100 = memref.load %arg1[%c14] : memref<100xi32, #tpu.memory_space<smem>>
    %c15 = arith.constant 15 : index
    %101 = memref.load %arg1[%c15] : memref<100xi32, #tpu.memory_space<smem>>
    %102 = arith.index_cast %100 : i32 to index
    %c0_60 = arith.constant 0 : index
    %103 = vector.load %arg4[%102, %c0_60] : memref<20x128xf32, #tpu.memory_space<vmem>>, vector<1x128xf32>
    %104 = arith.index_cast %101 : i32 to index
    %c0_61 = arith.constant 0 : index
    %105 = vector.load %arg4[%104, %c0_61] : memref<20x128xf32, #tpu.memory_space<vmem>>, vector<1x128xf32>
    %106 = arith.mulf %103, %105 : vector<1x128xf32>
    %c0_62 = arith.constant 0 : index
    %c0_63 = arith.constant 0 : index
    %107 = vector.load %arg4[%c0_62, %c0_63] : memref<20x128xf32, #tpu.memory_space<vmem>>, vector<20x128xf32>
    %c0_64 = arith.constant 0 : index
    %c7_65 = arith.constant 7 : index
    %108 = vector.load %arg2[%c0_64, %c7_65] : memref<20x50xf32, #tpu.memory_space<vmem>>, vector<20x1xf32>
    %109 = vector.broadcast %108 : vector<20x1xf32> to vector<20x128xf32>
    %110 = vector.broadcast %106 : vector<1x128xf32> to vector<20x128xf32>
    %111 = arith.mulf %109, %110 : vector<20x128xf32>
    %112 = arith.addf %107, %111 : vector<20x128xf32>
    %c0_66 = arith.constant 0 : index
    %c0_67 = arith.constant 0 : index
    %113 = vector.load %arg4[%c0_66, %c0_67] : memref<20x128xf32, #tpu.memory_space<vmem>>, vector<20x128xf32>
    tpu.vector_store %arg4[%c0_66, %c0_67], %112 {strides = array<i32>} : memref<20x128xf32, #tpu.memory_space<vmem>>, vector<20x128xf32>,
    %c16 = arith.constant 16 : index
    %114 = memref.load %arg1[%c16] : memref<100xi32, #tpu.memory_space<smem>>
    %c17 = arith.constant 17 : index
    %115 = memref.load %arg1[%c17] : memref<100xi32, #tpu.memory_space<smem>>
    %116 = arith.index_cast %114 : i32 to index
    %c0_68 = arith.constant 0 : index
    %117 = vector.load %arg4[%116, %c0_68] : memref<20x128xf32, #tpu.memory_space<vmem>>, vector<1x128xf32>
    %118 = arith.index_cast %115 : i32 to index
    %c0_69 = arith.constant 0 : index
    %119 = vector.load %arg4[%118, %c0_69] : memref<20x128xf32, #tpu.memory_space<vmem>>, vector<1x128xf32>
    %120 = arith.mulf %117, %119 : vector<1x128xf32>
    %c0_70 = arith.constant 0 : index
    %c0_71 = arith.constant 0 : index
    %121 = vector.load %arg4[%c0_70, %c0_71] : memref<20x128xf32, #tpu.memory_space<vmem>>, vector<20x128xf32>
    %c0_72 = arith.constant 0 : index
    %c8_73 = arith.constant 8 : index
    %122 = vector.load %arg2[%c0_72, %c8_73] : memref<20x50xf32, #tpu.memory_space<vmem>>, vector<20x1xf32>
    %123 = vector.broadcast %122 : vector<20x1xf32> to vector<20x128xf32>
    %124 = vector.broadcast %120 : vector<1x128xf32> to vector<20x128xf32>
    %125 = arith.mulf %123, %124 : vector<20x128xf32>
    %126 = arith.addf %121, %125 : vector<20x128xf32>
    %c0_74 = arith.constant 0 : index
    %c0_75 = arith.constant 0 : index
    %127 = vector.load %arg4[%c0_74, %c0_75] : memref<20x128xf32, #tpu.memory_space<vmem>>, vector<20x128xf32>
    tpu.vector_store %arg4[%c0_74, %c0_75], %126 {strides = array<i32>} : memref<20x128xf32, #tpu.memory_space<vmem>>, vector<20x128xf32>,
    %c18 = arith.constant 18 : index
    %128 = memref.load %arg1[%c18] : memref<100xi32, #tpu.memory_space<smem>>
    %c19 = arith.constant 19 : index
    %129 = memref.load %arg1[%c19] : memref<100xi32, #tpu.memory_space<smem>>
    %130 = arith.index_cast %128 : i32 to index
    %c0_76 = arith.constant 0 : index
    %131 = vector.load %arg4[%130, %c0_76] : memref<20x128xf32, #tpu.memory_space<vmem>>, vector<1x128xf32>
    %132 = arith.index_cast %129 : i32 to index
    %c0_77 = arith.constant 0 : index
    %133 = vector.load %arg4[%132, %c0_77] : memref<20x128xf32, #tpu.memory_space<vmem>>, vector<1x128xf32>
    %134 = arith.mulf %131, %133 : vector<1x128xf32>
    %c0_78 = arith.constant 0 : index
    %c0_79 = arith.constant 0 : index
    %135 = vector.load %arg4[%c0_78, %c0_79] : memref<20x128xf32, #tpu.memory_space<vmem>>, vector<20x128xf32>
    %c0_80 = arith.constant 0 : index
    %c9_81 = arith.constant 9 : index
    %136 = vector.load %arg2[%c0_80, %c9_81] : memref<20x50xf32, #tpu.memory_space<vmem>>, vector<20x1xf32>
    %137 = vector.broadcast %136 : vector<20x1xf32> to vector<20x128xf32>
    %138 = vector.broadcast %134 : vector<1x128xf32> to vector<20x128xf32>
    %139 = arith.mulf %137, %138 : vector<20x128xf32>
    %140 = arith.addf %135, %139 : vector<20x128xf32>
    %c0_82 = arith.constant 0 : index
    %c0_83 = arith.constant 0 : index
    %141 = vector.load %arg4[%c0_82, %c0_83] : memref<20x128xf32, #tpu.memory_space<vmem>>, vector<20x128xf32>
    tpu.vector_store %arg4[%c0_82, %c0_83], %140 {strides = array<i32>} : memref<20x128xf32, #tpu.memory_space<vmem>>, vector<20x128xf32>,
    %c20 = arith.constant 20 : index
    %142 = memref.load %arg1[%c20] : memref<100xi32, #tpu.memory_space<smem>>
    %c21 = arith.constant 21 : index
    %143 = memref.load %arg1[%c21] : memref<100xi32, #tpu.memory_space<smem>>
    %144 = arith.index_cast %142 : i32 to index
    %c0_84 = arith.constant 0 : index
    %145 = vector.load %arg4[%144, %c0_84] : memref<20x128xf32, #tpu.memory_space<vmem>>, vector<1x128xf32>
    %146 = arith.index_cast %143 : i32 to index
    %c0_85 = arith.constant 0 : index
    %147 = vector.load %arg4[%146, %c0_85] : memref<20x128xf32, #tpu.memory_space<vmem>>, vector<1x128xf32>
    %148 = arith.mulf %145, %147 : vector<1x128xf32>
    %c0_86 = arith.constant 0 : index
    %c0_87 = arith.constant 0 : index
    %149 = vector.load %arg4[%c0_86, %c0_87] : memref<20x128xf32, #tpu.memory_space<vmem>>, vector<20x128xf32>
    %c0_88 = arith.constant 0 : index
    %c10_89 = arith.constant 10 : index
    %150 = vector.load %arg2[%c0_88, %c10_89] : memref<20x50xf32, #tpu.memory_space<vmem>>, vector<20x1xf32>
    %151 = vector.broadcast %150 : vector<20x1xf32> to vector<20x128xf32>
    %152 = vector.broadcast %148 : vector<1x128xf32> to vector<20x128xf32>
    %153 = arith.mulf %151, %152 : vector<20x128xf32>
    %154 = arith.addf %149, %153 : vector<20x128xf32>
    %c0_90 = arith.constant 0 : index
    %c0_91 = arith.constant 0 : index
    %155 = vector.load %arg4[%c0_90, %c0_91] : memref<20x128xf32, #tpu.memory_space<vmem>>, vector<20x128xf32>
    tpu.vector_store %arg4[%c0_90, %c0_91], %154 {strides = array<i32>} : memref<20x128xf32, #tpu.memory_space<vmem>>, vector<20x128xf32>,
    %c22 = arith.constant 22 : index
    %156 = memref.load %arg1[%c22] : memref<100xi32, #tpu.memory_space<smem>>
    %c23 = arith.constant 23 : index
    %157 = memref.load %arg1[%c23] : memref<100xi32, #tpu.memory_space<smem>>
    %158 = arith.index_cast %156 : i32 to index
    %c0_92 = arith.constant 0 : index
    %159 = vector.load %arg4[%158, %c0_92] : memref<20x128xf32, #tpu.memory_space<vmem>>, vector<1x128xf32>
    %160 = arith.index_cast %157 : i32 to index
    %c0_93 = arith.constant 0 : index
    %161 = vector.load %arg4[%160, %c0_93] : memref<20x128xf32, #tpu.memory_space<vmem>>, vector<1x128xf32>
    %162 = arith.mulf %159, %161 : vector<1x128xf32>
    %c0_94 = arith.constant 0 : index
    %c0_95 = arith.constant 0 : index
    %163 = vector.load %arg4[%c0_94, %c0_95] : memref<20x128xf32, #tpu.memory_space<vmem>>, vector<20x128xf32>
    %c0_96 = arith.constant 0 : index
    %c11_97 = arith.constant 11 : index
    %164 = vector.load %arg2[%c0_96, %c11_97] : memref<20x50xf32, #tpu.memory_space<vmem>>, vector<20x1xf32>
    %165 = vector.broadcast %164 : vector<20x1xf32> to vector<20x128xf32>
    %166 = vector.broadcast %162 : vector<1x128xf32> to vector<20x128xf32>
    %167 = arith.mulf %165, %166 : vector<20x128xf32>
    %168 = arith.addf %163, %167 : vector<20x128xf32>
    %c0_98 = arith.constant 0 : index
    %c0_99 = arith.constant 0 : index
    %169 = vector.load %arg4[%c0_98, %c0_99] : memref<20x128xf32, #tpu.memory_space<vmem>>, vector<20x128xf32>
    tpu.vector_store %arg4[%c0_98, %c0_99], %168 {strides = array<i32>} : memref<20x128xf32, #tpu.memory_space<vmem>>, vector<20x128xf32>,
    %c24 = arith.constant 24 : index
    %170 = memref.load %arg1[%c24] : memref<100xi32, #tpu.memory_space<smem>>
    %c25 = arith.constant 25 : index
    %171 = memref.load %arg1[%c25] : memref<100xi32, #tpu.memory_space<smem>>
    %172 = arith.index_cast %170 : i32 to index
    %c0_100 = arith.constant 0 : index
    %173 = vector.load %arg4[%172, %c0_100] : memref<20x128xf32, #tpu.memory_space<vmem>>, vector<1x128xf32>
    %174 = arith.index_cast %171 : i32 to index
    %c0_101 = arith.constant 0 : index
    %175 = vector.load %arg4[%174, %c0_101] : memref<20x128xf32, #tpu.memory_space<vmem>>, vector<1x128xf32>
    %176 = arith.mulf %173, %175 : vector<1x128xf32>
    %c0_102 = arith.constant 0 : index
    %c0_103 = arith.constant 0 : index
    %177 = vector.load %arg4[%c0_102, %c0_103] : memref<20x128xf32, #tpu.memory_space<vmem>>, vector<20x128xf32>
    %c0_104 = arith.constant 0 : index
    %c12_105 = arith.constant 12 : index
    %178 = vector.load %arg2[%c0_104, %c12_105] : memref<20x50xf32, #tpu.memory_space<vmem>>, vector<20x1xf32>
    %179 = vector.broadcast %178 : vector<20x1xf32> to vector<20x128xf32>
    %180 = vector.broadcast %176 : vector<1x128xf32> to vector<20x128xf32>
    %181 = arith.mulf %179, %180 : vector<20x128xf32>
    %182 = arith.addf %177, %181 : vector<20x128xf32>
    %c0_106 = arith.constant 0 : index
    %c0_107 = arith.constant 0 : index
    %183 = vector.load %arg4[%c0_106, %c0_107] : memref<20x128xf32, #tpu.memory_space<vmem>>, vector<20x128xf32>
    tpu.vector_store %arg4[%c0_106, %c0_107], %182 {strides = array<i32>} : memref<20x128xf32, #tpu.memory_space<vmem>>, vector<20x128xf32>,
    %c26 = arith.constant 26 : index
    %184 = memref.load %arg1[%c26] : memref<100xi32, #tpu.memory_space<smem>>
    %c27 = arith.constant 27 : index
    %185 = memref.load %arg1[%c27] : memref<100xi32, #tpu.memory_space<smem>>
    %186 = arith.index_cast %184 : i32 to index
    %c0_108 = arith.constant 0 : index
    %187 = vector.load %arg4[%186, %c0_108] : memref<20x128xf32, #tpu.memory_space<vmem>>, vector<1x128xf32>
    %188 = arith.index_cast %185 : i32 to index
    %c0_109 = arith.constant 0 : index
    %189 = vector.load %arg4[%188, %c0_109] : memref<20x128xf32, #tpu.memory_space<vmem>>, vector<1x128xf32>
    %190 = arith.mulf %187, %189 : vector<1x128xf32>
    %c0_110 = arith.constant 0 : index
    %c0_111 = arith.constant 0 : index
    %191 = vector.load %arg4[%c0_110, %c0_111] : memref<20x128xf32, #tpu.memory_space<vmem>>, vector<20x128xf32>
    %c0_112 = arith.constant 0 : index
    %c13_113 = arith.constant 13 : index
    %192 = vector.load %arg2[%c0_112, %c13_113] : memref<20x50xf32, #tpu.memory_space<vmem>>, vector<20x1xf32>
    %193 = vector.broadcast %192 : vector<20x1xf32> to vector<20x128xf32>
    %194 = vector.broadcast %190 : vector<1x128xf32> to vector<20x128xf32>
    %195 = arith.mulf %193, %194 : vector<20x128xf32>
    %196 = arith.addf %191, %195 : vector<20x128xf32>
    %c0_114 = arith.constant 0 : index
    %c0_115 = arith.constant 0 : index
    %197 = vector.load %arg4[%c0_114, %c0_115] : memref<20x128xf32, #tpu.memory_space<vmem>>, vector<20x128xf32>
    tpu.vector_store %arg4[%c0_114, %c0_115], %196 {strides = array<i32>} : memref<20x128xf32, #tpu.memory_space<vmem>>, vector<20x128xf32>,
    %c28 = arith.constant 28 : index
    %198 = memref.load %arg1[%c28] : memref<100xi32, #tpu.memory_space<smem>>
    %c29 = arith.constant 29 : index
    %199 = memref.load %arg1[%c29] : memref<100xi32, #tpu.memory_space<smem>>
    %200 = arith.index_cast %198 : i32 to index
    %c0_116 = arith.constant 0 : index
    %201 = vector.load %arg4[%200, %c0_116] : memref<20x128xf32, #tpu.memory_space<vmem>>, vector<1x128xf32>
    %202 = arith.index_cast %199 : i32 to index
    %c0_117 = arith.constant 0 : index
    %203 = vector.load %arg4[%202, %c0_117] : memref<20x128xf32, #tpu.memory_space<vmem>>, vector<1x128xf32>
    %204 = arith.mulf %201, %203 : vector<1x128xf32>
    %c0_118 = arith.constant 0 : index
    %c0_119 = arith.constant 0 : index
    %205 = vector.load %arg4[%c0_118, %c0_119] : memref<20x128xf32, #tpu.memory_space<vmem>>, vector<20x128xf32>
    %c0_120 = arith.constant 0 : index
    %c14_121 = arith.constant 14 : index
    %206 = vector.load %arg2[%c0_120, %c14_121] : memref<20x50xf32, #tpu.memory_space<vmem>>, vector<20x1xf32>
    %207 = vector.broadcast %206 : vector<20x1xf32> to vector<20x128xf32>
    %208 = vector.broadcast %204 : vector<1x128xf32> to vector<20x128xf32>
    %209 = arith.mulf %207, %208 : vector<20x128xf32>
    %210 = arith.addf %205, %209 : vector<20x128xf32>
    %c0_122 = arith.constant 0 : index
    %c0_123 = arith.constant 0 : index
    %211 = vector.load %arg4[%c0_122, %c0_123] : memref<20x128xf32, #tpu.memory_space<vmem>>, vector<20x128xf32>
    tpu.vector_store %arg4[%c0_122, %c0_123], %210 {strides = array<i32>} : memref<20x128xf32, #tpu.memory_space<vmem>>, vector<20x128xf32>,
    %c30 = arith.constant 30 : index
    %212 = memref.load %arg1[%c30] : memref<100xi32, #tpu.memory_space<smem>>
    %c31 = arith.constant 31 : index
    %213 = memref.load %arg1[%c31] : memref<100xi32, #tpu.memory_space<smem>>
    %214 = arith.index_cast %212 : i32 to index
    %c0_124 = arith.constant 0 : index
    %215 = vector.load %arg4[%214, %c0_124] : memref<20x128xf32, #tpu.memory_space<vmem>>, vector<1x128xf32>
    %216 = arith.index_cast %213 : i32 to index
    %c0_125 = arith.constant 0 : index
    %217 = vector.load %arg4[%216, %c0_125] : memref<20x128xf32, #tpu.memory_space<vmem>>, vector<1x128xf32>
    %218 = arith.mulf %215, %217 : vector<1x128xf32>
    %c0_126 = arith.constant 0 : index
    %c0_127 = arith.constant 0 : index
    %219 = vector.load %arg4[%c0_126, %c0_127] : memref<20x128xf32, #tpu.memory_space<vmem>>, vector<20x128xf32>
    %c0_128 = arith.constant 0 : index
    %c15_129 = arith.constant 15 : index
    %220 = vector.load %arg2[%c0_128, %c15_129] : memref<20x50xf32, #tpu.memory_space<vmem>>, vector<20x1xf32>
    %221 = vector.broadcast %220 : vector<20x1xf32> to vector<20x128xf32>
    %222 = vector.broadcast %218 : vector<1x128xf32> to vector<20x128xf32>
    %223 = arith.mulf %221, %222 : vector<20x128xf32>
    %224 = arith.addf %219, %223 : vector<20x128xf32>
    %c0_130 = arith.constant 0 : index
    %c0_131 = arith.constant 0 : index
    %225 = vector.load %arg4[%c0_130, %c0_131] : memref<20x128xf32, #tpu.memory_space<vmem>>, vector<20x128xf32>
    tpu.vector_store %arg4[%c0_130, %c0_131], %224 {strides = array<i32>} : memref<20x128xf32, #tpu.memory_space<vmem>>, vector<20x128xf32>,
    %c32 = arith.constant 32 : index
    %226 = memref.load %arg1[%c32] : memref<100xi32, #tpu.memory_space<smem>>
    %c33 = arith.constant 33 : index
    %227 = memref.load %arg1[%c33] : memref<100xi32, #tpu.memory_space<smem>>
    %228 = arith.index_cast %226 : i32 to index
    %c0_132 = arith.constant 0 : index
    %229 = vector.load %arg4[%228, %c0_132] : memref<20x128xf32, #tpu.memory_space<vmem>>, vector<1x128xf32>
    %230 = arith.index_cast %227 : i32 to index
    %c0_133 = arith.constant 0 : index
    %231 = vector.load %arg4[%230, %c0_133] : memref<20x128xf32, #tpu.memory_space<vmem>>, vector<1x128xf32>
    %232 = arith.mulf %229, %231 : vector<1x128xf32>
    %c0_134 = arith.constant 0 : index
    %c0_135 = arith.constant 0 : index
    %233 = vector.load %arg4[%c0_134, %c0_135] : memref<20x128xf32, #tpu.memory_space<vmem>>, vector<20x128xf32>
    %c0_136 = arith.constant 0 : index
    %c16_137 = arith.constant 16 : index
    %234 = vector.load %arg2[%c0_136, %c16_137] : memref<20x50xf32, #tpu.memory_space<vmem>>, vector<20x1xf32>
    %235 = vector.broadcast %234 : vector<20x1xf32> to vector<20x128xf32>
    %236 = vector.broadcast %232 : vector<1x128xf32> to vector<20x128xf32>
    %237 = arith.mulf %235, %236 : vector<20x128xf32>
    %238 = arith.addf %233, %237 : vector<20x128xf32>
    %c0_138 = arith.constant 0 : index
    %c0_139 = arith.constant 0 : index
    %239 = vector.load %arg4[%c0_138, %c0_139] : memref<20x128xf32, #tpu.memory_space<vmem>>, vector<20x128xf32>
    tpu.vector_store %arg4[%c0_138, %c0_139], %238 {strides = array<i32>} : memref<20x128xf32, #tpu.memory_space<vmem>>, vector<20x128xf32>,
    %c34 = arith.constant 34 : index
    %240 = memref.load %arg1[%c34] : memref<100xi32, #tpu.memory_space<smem>>
    %c35 = arith.constant 35 : index
    %241 = memref.load %arg1[%c35] : memref<100xi32, #tpu.memory_space<smem>>
    %242 = arith.index_cast %240 : i32 to index
    %c0_140 = arith.constant 0 : index
    %243 = vector.load %arg4[%242, %c0_140] : memref<20x128xf32, #tpu.memory_space<vmem>>, vector<1x128xf32>
    %244 = arith.index_cast %241 : i32 to index
    %c0_141 = arith.constant 0 : index
    %245 = vector.load %arg4[%244, %c0_141] : memref<20x128xf32, #tpu.memory_space<vmem>>, vector<1x128xf32>
    %246 = arith.mulf %243, %245 : vector<1x128xf32>
    %c0_142 = arith.constant 0 : index
    %c0_143 = arith.constant 0 : index
    %247 = vector.load %arg4[%c0_142, %c0_143] : memref<20x128xf32, #tpu.memory_space<vmem>>, vector<20x128xf32>
    %c0_144 = arith.constant 0 : index
    %c17_145 = arith.constant 17 : index
    %248 = vector.load %arg2[%c0_144, %c17_145] : memref<20x50xf32, #tpu.memory_space<vmem>>, vector<20x1xf32>
    %249 = vector.broadcast %248 : vector<20x1xf32> to vector<20x128xf32>
    %250 = vector.broadcast %246 : vector<1x128xf32> to vector<20x128xf32>
    %251 = arith.mulf %249, %250 : vector<20x128xf32>
    %252 = arith.addf %247, %251 : vector<20x128xf32>
    %c0_146 = arith.constant 0 : index
    %c0_147 = arith.constant 0 : index
    %253 = vector.load %arg4[%c0_146, %c0_147] : memref<20x128xf32, #tpu.memory_space<vmem>>, vector<20x128xf32>
    tpu.vector_store %arg4[%c0_146, %c0_147], %252 {strides = array<i32>} : memref<20x128xf32, #tpu.memory_space<vmem>>, vector<20x128xf32>,
    %c36 = arith.constant 36 : index
    %254 = memref.load %arg1[%c36] : memref<100xi32, #tpu.memory_space<smem>>
    %c37 = arith.constant 37 : index
    %255 = memref.load %arg1[%c37] : memref<100xi32, #tpu.memory_space<smem>>
    %256 = arith.index_cast %254 : i32 to index
    %c0_148 = arith.constant 0 : index
    %257 = vector.load %arg4[%256, %c0_148] : memref<20x128xf32, #tpu.memory_space<vmem>>, vector<1x128xf32>
    %258 = arith.index_cast %255 : i32 to index
    %c0_149 = arith.constant 0 : index
    %259 = vector.load %arg4[%258, %c0_149] : memref<20x128xf32, #tpu.memory_space<vmem>>, vector<1x128xf32>
    %260 = arith.mulf %257, %259 : vector<1x128xf32>
    %c0_150 = arith.constant 0 : index
    %c0_151 = arith.constant 0 : index
    %261 = vector.load %arg4[%c0_150, %c0_151] : memref<20x128xf32, #tpu.memory_space<vmem>>, vector<20x128xf32>
    %c0_152 = arith.constant 0 : index
    %c18_153 = arith.constant 18 : index
    %262 = vector.load %arg2[%c0_152, %c18_153] : memref<20x50xf32, #tpu.memory_space<vmem>>, vector<20x1xf32>
    %263 = vector.broadcast %262 : vector<20x1xf32> to vector<20x128xf32>
    %264 = vector.broadcast %260 : vector<1x128xf32> to vector<20x128xf32>
    %265 = arith.mulf %263, %264 : vector<20x128xf32>
    %266 = arith.addf %261, %265 : vector<20x128xf32>
    %c0_154 = arith.constant 0 : index
    %c0_155 = arith.constant 0 : index
    %267 = vector.load %arg4[%c0_154, %c0_155] : memref<20x128xf32, #tpu.memory_space<vmem>>, vector<20x128xf32>
    tpu.vector_store %arg4[%c0_154, %c0_155], %266 {strides = array<i32>} : memref<20x128xf32, #tpu.memory_space<vmem>>, vector<20x128xf32>,
    %c38 = arith.constant 38 : index
    %268 = memref.load %arg1[%c38] : memref<100xi32, #tpu.memory_space<smem>>
    %c39 = arith.constant 39 : index
    %269 = memref.load %arg1[%c39] : memref<100xi32, #tpu.memory_space<smem>>
    %270 = arith.index_cast %268 : i32 to index
    %c0_156 = arith.constant 0 : index
    %271 = vector.load %arg4[%270, %c0_156] : memref<20x128xf32, #tpu.memory_space<vmem>>, vector<1x128xf32>
    %272 = arith.index_cast %269 : i32 to index
    %c0_157 = arith.constant 0 : index
    %273 = vector.load %arg4[%272, %c0_157] : memref<20x128xf32, #tpu.memory_space<vmem>>, vector<1x128xf32>
    %274 = arith.mulf %271, %273 : vector<1x128xf32>
    %c0_158 = arith.constant 0 : index
    %c0_159 = arith.constant 0 : index
    %275 = vector.load %arg4[%c0_158, %c0_159] : memref<20x128xf32, #tpu.memory_space<vmem>>, vector<20x128xf32>
    %c0_160 = arith.constant 0 : index
    %c19_161 = arith.constant 19 : index
    %276 = vector.load %arg2[%c0_160, %c19_161] : memref<20x50xf32, #tpu.memory_space<vmem>>, vector<20x1xf32>
    %277 = vector.broadcast %276 : vector<20x1xf32> to vector<20x128xf32>
    %278 = vector.broadcast %274 : vector<1x128xf32> to vector<20x128xf32>
    %279 = arith.mulf %277, %278 : vector<20x128xf32>
    %280 = arith.addf %275, %279 : vector<20x128xf32>
    %c0_162 = arith.constant 0 : index
    %c0_163 = arith.constant 0 : index
    %281 = vector.load %arg4[%c0_162, %c0_163] : memref<20x128xf32, #tpu.memory_space<vmem>>, vector<20x128xf32>
    tpu.vector_store %arg4[%c0_162, %c0_163], %280 {strides = array<i32>} : memref<20x128xf32, #tpu.memory_space<vmem>>, vector<20x128xf32>,
    %c40 = arith.constant 40 : index
    %282 = memref.load %arg1[%c40] : memref<100xi32, #tpu.memory_space<smem>>
    %c41 = arith.constant 41 : index
    %283 = memref.load %arg1[%c41] : memref<100xi32, #tpu.memory_space<smem>>
    %284 = arith.index_cast %282 : i32 to index
    %c0_164 = arith.constant 0 : index
    %285 = vector.load %arg4[%284, %c0_164] : memref<20x128xf32, #tpu.memory_space<vmem>>, vector<1x128xf32>
    %286 = arith.index_cast %283 : i32 to index
    %c0_165 = arith.constant 0 : index
    %287 = vector.load %arg4[%286, %c0_165] : memref<20x128xf32, #tpu.memory_space<vmem>>, vector<1x128xf32>
    %288 = arith.mulf %285, %287 : vector<1x128xf32>
    %c0_166 = arith.constant 0 : index
    %c0_167 = arith.constant 0 : index
    %289 = vector.load %arg4[%c0_166, %c0_167] : memref<20x128xf32, #tpu.memory_space<vmem>>, vector<20x128xf32>
    %c0_168 = arith.constant 0 : index
    %c20_169 = arith.constant 20 : index
    %290 = vector.load %arg2[%c0_168, %c20_169] : memref<20x50xf32, #tpu.memory_space<vmem>>, vector<20x1xf32>
    %291 = vector.broadcast %290 : vector<20x1xf32> to vector<20x128xf32>
    %292 = vector.broadcast %288 : vector<1x128xf32> to vector<20x128xf32>
    %293 = arith.mulf %291, %292 : vector<20x128xf32>
    %294 = arith.addf %289, %293 : vector<20x128xf32>
    %c0_170 = arith.constant 0 : index
    %c0_171 = arith.constant 0 : index
    %295 = vector.load %arg4[%c0_170, %c0_171] : memref<20x128xf32, #tpu.memory_space<vmem>>, vector<20x128xf32>
    tpu.vector_store %arg4[%c0_170, %c0_171], %294 {strides = array<i32>} : memref<20x128xf32, #tpu.memory_space<vmem>>, vector<20x128xf32>,
    %c42 = arith.constant 42 : index
    %296 = memref.load %arg1[%c42] : memref<100xi32, #tpu.memory_space<smem>>
    %c43 = arith.constant 43 : index
    %297 = memref.load %arg1[%c43] : memref<100xi32, #tpu.memory_space<smem>>
    %298 = arith.index_cast %296 : i32 to index
    %c0_172 = arith.constant 0 : index
    %299 = vector.load %arg4[%298, %c0_172] : memref<20x128xf32, #tpu.memory_space<vmem>>, vector<1x128xf32>
    %300 = arith.index_cast %297 : i32 to index
    %c0_173 = arith.constant 0 : index
    %301 = vector.load %arg4[%300, %c0_173] : memref<20x128xf32, #tpu.memory_space<vmem>>, vector<1x128xf32>
    %302 = arith.mulf %299, %301 : vector<1x128xf32>
    %c0_174 = arith.constant 0 : index
    %c0_175 = arith.constant 0 : index
    %303 = vector.load %arg4[%c0_174, %c0_175] : memref<20x128xf32, #tpu.memory_space<vmem>>, vector<20x128xf32>
    %c0_176 = arith.constant 0 : index
    %c21_177 = arith.constant 21 : index
    %304 = vector.load %arg2[%c0_176, %c21_177] : memref<20x50xf32, #tpu.memory_space<vmem>>, vector<20x1xf32>
    %305 = vector.broadcast %304 : vector<20x1xf32> to vector<20x128xf32>
    %306 = vector.broadcast %302 : vector<1x128xf32> to vector<20x128xf32>
    %307 = arith.mulf %305, %306 : vector<20x128xf32>
    %308 = arith.addf %303, %307 : vector<20x128xf32>
    %c0_178 = arith.constant 0 : index
    %c0_179 = arith.constant 0 : index
    %309 = vector.load %arg4[%c0_178, %c0_179] : memref<20x128xf32, #tpu.memory_space<vmem>>, vector<20x128xf32>
    tpu.vector_store %arg4[%c0_178, %c0_179], %308 {strides = array<i32>} : memref<20x128xf32, #tpu.memory_space<vmem>>, vector<20x128xf32>,
    %c44 = arith.constant 44 : index
    %310 = memref.load %arg1[%c44] : memref<100xi32, #tpu.memory_space<smem>>
    %c45 = arith.constant 45 : index
    %311 = memref.load %arg1[%c45] : memref<100xi32, #tpu.memory_space<smem>>
    %312 = arith.index_cast %310 : i32 to index
    %c0_180 = arith.constant 0 : index
    %313 = vector.load %arg4[%312, %c0_180] : memref<20x128xf32, #tpu.memory_space<vmem>>, vector<1x128xf32>
    %314 = arith.index_cast %311 : i32 to index
    %c0_181 = arith.constant 0 : index
    %315 = vector.load %arg4[%314, %c0_181] : memref<20x128xf32, #tpu.memory_space<vmem>>, vector<1x128xf32>
    %316 = arith.mulf %313, %315 : vector<1x128xf32>
    %c0_182 = arith.constant 0 : index
    %c0_183 = arith.constant 0 : index
    %317 = vector.load %arg4[%c0_182, %c0_183] : memref<20x128xf32, #tpu.memory_space<vmem>>, vector<20x128xf32>
    %c0_184 = arith.constant 0 : index
    %c22_185 = arith.constant 22 : index
    %318 = vector.load %arg2[%c0_184, %c22_185] : memref<20x50xf32, #tpu.memory_space<vmem>>, vector<20x1xf32>
    %319 = vector.broadcast %318 : vector<20x1xf32> to vector<20x128xf32>
    %320 = vector.broadcast %316 : vector<1x128xf32> to vector<20x128xf32>
    %321 = arith.mulf %319, %320 : vector<20x128xf32>
    %322 = arith.addf %317, %321 : vector<20x128xf32>
    %c0_186 = arith.constant 0 : index
    %c0_187 = arith.constant 0 : index
    %323 = vector.load %arg4[%c0_186, %c0_187] : memref<20x128xf32, #tpu.memory_space<vmem>>, vector<20x128xf32>
    tpu.vector_store %arg4[%c0_186, %c0_187], %322 {strides = array<i32>} : memref<20x128xf32, #tpu.memory_space<vmem>>, vector<20x128xf32>,
    %c46 = arith.constant 46 : index
    %324 = memref.load %arg1[%c46] : memref<100xi32, #tpu.memory_space<smem>>
    %c47 = arith.constant 47 : index
    %325 = memref.load %arg1[%c47] : memref<100xi32, #tpu.memory_space<smem>>
    %326 = arith.index_cast %324 : i32 to index
    %c0_188 = arith.constant 0 : index
    %327 = vector.load %arg4[%326, %c0_188] : memref<20x128xf32, #tpu.memory_space<vmem>>, vector<1x128xf32>
    %328 = arith.index_cast %325 : i32 to index
    %c0_189 = arith.constant 0 : index
    %329 = vector.load %arg4[%328, %c0_189] : memref<20x128xf32, #tpu.memory_space<vmem>>, vector<1x128xf32>
    %330 = arith.mulf %327, %329 : vector<1x128xf32>
    %c0_190 = arith.constant 0 : index
    %c0_191 = arith.constant 0 : index
    %331 = vector.load %arg4[%c0_190, %c0_191] : memref<20x128xf32, #tpu.memory_space<vmem>>, vector<20x128xf32>
    %c0_192 = arith.constant 0 : index
    %c23_193 = arith.constant 23 : index
    %332 = vector.load %arg2[%c0_192, %c23_193] : memref<20x50xf32, #tpu.memory_space<vmem>>, vector<20x1xf32>
    %333 = vector.broadcast %332 : vector<20x1xf32> to vector<20x128xf32>
    %334 = vector.broadcast %330 : vector<1x128xf32> to vector<20x128xf32>
    %335 = arith.mulf %333, %334 : vector<20x128xf32>
    %336 = arith.addf %331, %335 : vector<20x128xf32>
    %c0_194 = arith.constant 0 : index
    %c0_195 = arith.constant 0 : index
    %337 = vector.load %arg4[%c0_194, %c0_195] : memref<20x128xf32, #tpu.memory_space<vmem>>, vector<20x128xf32>
    tpu.vector_store %arg4[%c0_194, %c0_195], %336 {strides = array<i32>} : memref<20x128xf32, #tpu.memory_space<vmem>>, vector<20x128xf32>,
    %c48 = arith.constant 48 : index
    %338 = memref.load %arg1[%c48] : memref<100xi32, #tpu.memory_space<smem>>
    %c49 = arith.constant 49 : index
    %339 = memref.load %arg1[%c49] : memref<100xi32, #tpu.memory_space<smem>>
    %340 = arith.index_cast %338 : i32 to index
    %c0_196 = arith.constant 0 : index
    %341 = vector.load %arg4[%340, %c0_196] : memref<20x128xf32, #tpu.memory_space<vmem>>, vector<1x128xf32>
    %342 = arith.index_cast %339 : i32 to index
    %c0_197 = arith.constant 0 : index
    %343 = vector.load %arg4[%342, %c0_197] : memref<20x128xf32, #tpu.memory_space<vmem>>, vector<1x128xf32>
    %344 = arith.mulf %341, %343 : vector<1x128xf32>
    %c0_198 = arith.constant 0 : index
    %c0_199 = arith.constant 0 : index
    %345 = vector.load %arg4[%c0_198, %c0_199] : memref<20x128xf32, #tpu.memory_space<vmem>>, vector<20x128xf32>
    %c0_200 = arith.constant 0 : index
    %c24_201 = arith.constant 24 : index
    %346 = vector.load %arg2[%c0_200, %c24_201] : memref<20x50xf32, #tpu.memory_space<vmem>>, vector<20x1xf32>
    %347 = vector.broadcast %346 : vector<20x1xf32> to vector<20x128xf32>
    %348 = vector.broadcast %344 : vector<1x128xf32> to vector<20x128xf32>
    %349 = arith.mulf %347, %348 : vector<20x128xf32>
    %350 = arith.addf %345, %349 : vector<20x128xf32>
    %c0_202 = arith.constant 0 : index
    %c0_203 = arith.constant 0 : index
    %351 = vector.load %arg4[%c0_202, %c0_203] : memref<20x128xf32, #tpu.memory_space<vmem>>, vector<20x128xf32>
    tpu.vector_store %arg4[%c0_202, %c0_203], %350 {strides = array<i32>} : memref<20x128xf32, #tpu.memory_space<vmem>>, vector<20x128xf32>,
    %c50 = arith.constant 50 : index
    %352 = memref.load %arg1[%c50] : memref<100xi32, #tpu.memory_space<smem>>
    %c51 = arith.constant 51 : index
    %353 = memref.load %arg1[%c51] : memref<100xi32, #tpu.memory_space<smem>>
    %354 = arith.index_cast %352 : i32 to index
    %c0_204 = arith.constant 0 : index
    %355 = vector.load %arg4[%354, %c0_204] : memref<20x128xf32, #tpu.memory_space<vmem>>, vector<1x128xf32>
    %356 = arith.index_cast %353 : i32 to index
    %c0_205 = arith.constant 0 : index
    %357 = vector.load %arg4[%356, %c0_205] : memref<20x128xf32, #tpu.memory_space<vmem>>, vector<1x128xf32>
    %358 = arith.mulf %355, %357 : vector<1x128xf32>
    %c0_206 = arith.constant 0 : index
    %c0_207 = arith.constant 0 : index
    %359 = vector.load %arg4[%c0_206, %c0_207] : memref<20x128xf32, #tpu.memory_space<vmem>>, vector<20x128xf32>
    %c0_208 = arith.constant 0 : index
    %c25_209 = arith.constant 25 : index
    %360 = vector.load %arg2[%c0_208, %c25_209] : memref<20x50xf32, #tpu.memory_space<vmem>>, vector<20x1xf32>
    %361 = vector.broadcast %360 : vector<20x1xf32> to vector<20x128xf32>
    %362 = vector.broadcast %358 : vector<1x128xf32> to vector<20x128xf32>
    %363 = arith.mulf %361, %362 : vector<20x128xf32>
    %364 = arith.addf %359, %363 : vector<20x128xf32>
    %c0_210 = arith.constant 0 : index
    %c0_211 = arith.constant 0 : index
    %365 = vector.load %arg4[%c0_210, %c0_211] : memref<20x128xf32, #tpu.memory_space<vmem>>, vector<20x128xf32>
    tpu.vector_store %arg4[%c0_210, %c0_211], %364 {strides = array<i32>} : memref<20x128xf32, #tpu.memory_space<vmem>>, vector<20x128xf32>,
    %c52 = arith.constant 52 : index
    %366 = memref.load %arg1[%c52] : memref<100xi32, #tpu.memory_space<smem>>
    %c53 = arith.constant 53 : index
    %367 = memref.load %arg1[%c53] : memref<100xi32, #tpu.memory_space<smem>>
    %368 = arith.index_cast %366 : i32 to index
    %c0_212 = arith.constant 0 : index
    %369 = vector.load %arg4[%368, %c0_212] : memref<20x128xf32, #tpu.memory_space<vmem>>, vector<1x128xf32>
    %370 = arith.index_cast %367 : i32 to index
    %c0_213 = arith.constant 0 : index
    %371 = vector.load %arg4[%370, %c0_213] : memref<20x128xf32, #tpu.memory_space<vmem>>, vector<1x128xf32>
    %372 = arith.mulf %369, %371 : vector<1x128xf32>
    %c0_214 = arith.constant 0 : index
    %c0_215 = arith.constant 0 : index
    %373 = vector.load %arg4[%c0_214, %c0_215] : memref<20x128xf32, #tpu.memory_space<vmem>>, vector<20x128xf32>
    %c0_216 = arith.constant 0 : index
    %c26_217 = arith.constant 26 : index
    %374 = vector.load %arg2[%c0_216, %c26_217] : memref<20x50xf32, #tpu.memory_space<vmem>>, vector<20x1xf32>
    %375 = vector.broadcast %374 : vector<20x1xf32> to vector<20x128xf32>
    %376 = vector.broadcast %372 : vector<1x128xf32> to vector<20x128xf32>
    %377 = arith.mulf %375, %376 : vector<20x128xf32>
    %378 = arith.addf %373, %377 : vector<20x128xf32>
    %c0_218 = arith.constant 0 : index
    %c0_219 = arith.constant 0 : index
    %379 = vector.load %arg4[%c0_218, %c0_219] : memref<20x128xf32, #tpu.memory_space<vmem>>, vector<20x128xf32>
    tpu.vector_store %arg4[%c0_218, %c0_219], %378 {strides = array<i32>} : memref<20x128xf32, #tpu.memory_space<vmem>>, vector<20x128xf32>,
    %c54 = arith.constant 54 : index
    %380 = memref.load %arg1[%c54] : memref<100xi32, #tpu.memory_space<smem>>
    %c55 = arith.constant 55 : index
    %381 = memref.load %arg1[%c55] : memref<100xi32, #tpu.memory_space<smem>>
    %382 = arith.index_cast %380 : i32 to index
    %c0_220 = arith.constant 0 : index
    %383 = vector.load %arg4[%382, %c0_220] : memref<20x128xf32, #tpu.memory_space<vmem>>, vector<1x128xf32>
    %384 = arith.index_cast %381 : i32 to index
    %c0_221 = arith.constant 0 : index
    %385 = vector.load %arg4[%384, %c0_221] : memref<20x128xf32, #tpu.memory_space<vmem>>, vector<1x128xf32>
    %386 = arith.mulf %383, %385 : vector<1x128xf32>
    %c0_222 = arith.constant 0 : index
    %c0_223 = arith.constant 0 : index
    %387 = vector.load %arg4[%c0_222, %c0_223] : memref<20x128xf32, #tpu.memory_space<vmem>>, vector<20x128xf32>
    %c0_224 = arith.constant 0 : index
    %c27_225 = arith.constant 27 : index
    %388 = vector.load %arg2[%c0_224, %c27_225] : memref<20x50xf32, #tpu.memory_space<vmem>>, vector<20x1xf32>
    %389 = vector.broadcast %388 : vector<20x1xf32> to vector<20x128xf32>
    %390 = vector.broadcast %386 : vector<1x128xf32> to vector<20x128xf32>
    %391 = arith.mulf %389, %390 : vector<20x128xf32>
    %392 = arith.addf %387, %391 : vector<20x128xf32>
    %c0_226 = arith.constant 0 : index
    %c0_227 = arith.constant 0 : index
    %393 = vector.load %arg4[%c0_226, %c0_227] : memref<20x128xf32, #tpu.memory_space<vmem>>, vector<20x128xf32>
    tpu.vector_store %arg4[%c0_226, %c0_227], %392 {strides = array<i32>} : memref<20x128xf32, #tpu.memory_space<vmem>>, vector<20x128xf32>,
    %c56 = arith.constant 56 : index
    %394 = memref.load %arg1[%c56] : memref<100xi32, #tpu.memory_space<smem>>
    %c57 = arith.constant 57 : index
    %395 = memref.load %arg1[%c57] : memref<100xi32, #tpu.memory_space<smem>>
    %396 = arith.index_cast %394 : i32 to index
    %c0_228 = arith.constant 0 : index
    %397 = vector.load %arg4[%396, %c0_228] : memref<20x128xf32, #tpu.memory_space<vmem>>, vector<1x128xf32>
    %398 = arith.index_cast %395 : i32 to index
    %c0_229 = arith.constant 0 : index
    %399 = vector.load %arg4[%398, %c0_229] : memref<20x128xf32, #tpu.memory_space<vmem>>, vector<1x128xf32>
    %400 = arith.mulf %397, %399 : vector<1x128xf32>
    %c0_230 = arith.constant 0 : index
    %c0_231 = arith.constant 0 : index
    %401 = vector.load %arg4[%c0_230, %c0_231] : memref<20x128xf32, #tpu.memory_space<vmem>>, vector<20x128xf32>
    %c0_232 = arith.constant 0 : index
    %c28_233 = arith.constant 28 : index
    %402 = vector.load %arg2[%c0_232, %c28_233] : memref<20x50xf32, #tpu.memory_space<vmem>>, vector<20x1xf32>
    %403 = vector.broadcast %402 : vector<20x1xf32> to vector<20x128xf32>
    %404 = vector.broadcast %400 : vector<1x128xf32> to vector<20x128xf32>
    %405 = arith.mulf %403, %404 : vector<20x128xf32>
    %406 = arith.addf %401, %405 : vector<20x128xf32>
    %c0_234 = arith.constant 0 : index
    %c0_235 = arith.constant 0 : index
    %407 = vector.load %arg4[%c0_234, %c0_235] : memref<20x128xf32, #tpu.memory_space<vmem>>, vector<20x128xf32>
    tpu.vector_store %arg4[%c0_234, %c0_235], %406 {strides = array<i32>} : memref<20x128xf32, #tpu.memory_space<vmem>>, vector<20x128xf32>,
    %c58 = arith.constant 58 : index
    %408 = memref.load %arg1[%c58] : memref<100xi32, #tpu.memory_space<smem>>
    %c59 = arith.constant 59 : index
    %409 = memref.load %arg1[%c59] : memref<100xi32, #tpu.memory_space<smem>>
    %410 = arith.index_cast %408 : i32 to index
    %c0_236 = arith.constant 0 : index
    %411 = vector.load %arg4[%410, %c0_236] : memref<20x128xf32, #tpu.memory_space<vmem>>, vector<1x128xf32>
    %412 = arith.index_cast %409 : i32 to index
    %c0_237 = arith.constant 0 : index
    %413 = vector.load %arg4[%412, %c0_237] : memref<20x128xf32, #tpu.memory_space<vmem>>, vector<1x128xf32>
    %414 = arith.mulf %411, %413 : vector<1x128xf32>
    %c0_238 = arith.constant 0 : index
    %c0_239 = arith.constant 0 : index
    %415 = vector.load %arg4[%c0_238, %c0_239] : memref<20x128xf32, #tpu.memory_space<vmem>>, vector<20x128xf32>
    %c0_240 = arith.constant 0 : index
    %c29_241 = arith.constant 29 : index
    %416 = vector.load %arg2[%c0_240, %c29_241] : memref<20x50xf32, #tpu.memory_space<vmem>>, vector<20x1xf32>
    %417 = vector.broadcast %416 : vector<20x1xf32> to vector<20x128xf32>
    %418 = vector.broadcast %414 : vector<1x128xf32> to vector<20x128xf32>
    %419 = arith.mulf %417, %418 : vector<20x128xf32>
    %420 = arith.addf %415, %419 : vector<20x128xf32>
    %c0_242 = arith.constant 0 : index
    %c0_243 = arith.constant 0 : index
    %421 = vector.load %arg4[%c0_242, %c0_243] : memref<20x128xf32, #tpu.memory_space<vmem>>, vector<20x128xf32>
    tpu.vector_store %arg4[%c0_242, %c0_243], %420 {strides = array<i32>} : memref<20x128xf32, #tpu.memory_space<vmem>>, vector<20x128xf32>,
    %c60 = arith.constant 60 : index
    %422 = memref.load %arg1[%c60] : memref<100xi32, #tpu.memory_space<smem>>
    %c61 = arith.constant 61 : index
    %423 = memref.load %arg1[%c61] : memref<100xi32, #tpu.memory_space<smem>>
    %424 = arith.index_cast %422 : i32 to index
    %c0_244 = arith.constant 0 : index
    %425 = vector.load %arg4[%424, %c0_244] : memref<20x128xf32, #tpu.memory_space<vmem>>, vector<1x128xf32>
    %426 = arith.index_cast %423 : i32 to index
    %c0_245 = arith.constant 0 : index
    %427 = vector.load %arg4[%426, %c0_245] : memref<20x128xf32, #tpu.memory_space<vmem>>, vector<1x128xf32>
    %428 = arith.mulf %425, %427 : vector<1x128xf32>
    %c0_246 = arith.constant 0 : index
    %c0_247 = arith.constant 0 : index
    %429 = vector.load %arg4[%c0_246, %c0_247] : memref<20x128xf32, #tpu.memory_space<vmem>>, vector<20x128xf32>
    %c0_248 = arith.constant 0 : index
    %c30_249 = arith.constant 30 : index
    %430 = vector.load %arg2[%c0_248, %c30_249] : memref<20x50xf32, #tpu.memory_space<vmem>>, vector<20x1xf32>
    %431 = vector.broadcast %430 : vector<20x1xf32> to vector<20x128xf32>
    %432 = vector.broadcast %428 : vector<1x128xf32> to vector<20x128xf32>
    %433 = arith.mulf %431, %432 : vector<20x128xf32>
    %434 = arith.addf %429, %433 : vector<20x128xf32>
    %c0_250 = arith.constant 0 : index
    %c0_251 = arith.constant 0 : index
    %435 = vector.load %arg4[%c0_250, %c0_251] : memref<20x128xf32, #tpu.memory_space<vmem>>, vector<20x128xf32>
    tpu.vector_store %arg4[%c0_250, %c0_251], %434 {strides = array<i32>} : memref<20x128xf32, #tpu.memory_space<vmem>>, vector<20x128xf32>,
    %c62 = arith.constant 62 : index
    %436 = memref.load %arg1[%c62] : memref<100xi32, #tpu.memory_space<smem>>
    %c63 = arith.constant 63 : index
    %437 = memref.load %arg1[%c63] : memref<100xi32, #tpu.memory_space<smem>>
    %438 = arith.index_cast %436 : i32 to index
    %c0_252 = arith.constant 0 : index
    %439 = vector.load %arg4[%438, %c0_252] : memref<20x128xf32, #tpu.memory_space<vmem>>, vector<1x128xf32>
    %440 = arith.index_cast %437 : i32 to index
    %c0_253 = arith.constant 0 : index
    %441 = vector.load %arg4[%440, %c0_253] : memref<20x128xf32, #tpu.memory_space<vmem>>, vector<1x128xf32>
    %442 = arith.mulf %439, %441 : vector<1x128xf32>
    %c0_254 = arith.constant 0 : index
    %c0_255 = arith.constant 0 : index
    %443 = vector.load %arg4[%c0_254, %c0_255] : memref<20x128xf32, #tpu.memory_space<vmem>>, vector<20x128xf32>
    %c0_256 = arith.constant 0 : index
    %c31_257 = arith.constant 31 : index
    %444 = vector.load %arg2[%c0_256, %c31_257] : memref<20x50xf32, #tpu.memory_space<vmem>>, vector<20x1xf32>
    %445 = vector.broadcast %444 : vector<20x1xf32> to vector<20x128xf32>
    %446 = vector.broadcast %442 : vector<1x128xf32> to vector<20x128xf32>
    %447 = arith.mulf %445, %446 : vector<20x128xf32>
    %448 = arith.addf %443, %447 : vector<20x128xf32>
    %c0_258 = arith.constant 0 : index
    %c0_259 = arith.constant 0 : index
    %449 = vector.load %arg4[%c0_258, %c0_259] : memref<20x128xf32, #tpu.memory_space<vmem>>, vector<20x128xf32>
    tpu.vector_store %arg4[%c0_258, %c0_259], %448 {strides = array<i32>} : memref<20x128xf32, #tpu.memory_space<vmem>>, vector<20x128xf32>,
    %c64 = arith.constant 64 : index
    %450 = memref.load %arg1[%c64] : memref<100xi32, #tpu.memory_space<smem>>
    %c65 = arith.constant 65 : index
    %451 = memref.load %arg1[%c65] : memref<100xi32, #tpu.memory_space<smem>>
    %452 = arith.index_cast %450 : i32 to index
    %c0_260 = arith.constant 0 : index
    %453 = vector.load %arg4[%452, %c0_260] : memref<20x128xf32, #tpu.memory_space<vmem>>, vector<1x128xf32>
    %454 = arith.index_cast %451 : i32 to index
    %c0_261 = arith.constant 0 : index
    %455 = vector.load %arg4[%454, %c0_261] : memref<20x128xf32, #tpu.memory_space<vmem>>, vector<1x128xf32>
    %456 = arith.mulf %453, %455 : vector<1x128xf32>
    %c0_262 = arith.constant 0 : index
    %c0_263 = arith.constant 0 : index
    %457 = vector.load %arg4[%c0_262, %c0_263] : memref<20x128xf32, #tpu.memory_space<vmem>>, vector<20x128xf32>
    %c0_264 = arith.constant 0 : index
    %c32_265 = arith.constant 32 : index
    %458 = vector.load %arg2[%c0_264, %c32_265] : memref<20x50xf32, #tpu.memory_space<vmem>>, vector<20x1xf32>
    %459 = vector.broadcast %458 : vector<20x1xf32> to vector<20x128xf32>
    %460 = vector.broadcast %456 : vector<1x128xf32> to vector<20x128xf32>
    %461 = arith.mulf %459, %460 : vector<20x128xf32>
    %462 = arith.addf %457, %461 : vector<20x128xf32>
    %c0_266 = arith.constant 0 : index
    %c0_267 = arith.constant 0 : index
    %463 = vector.load %arg4[%c0_266, %c0_267] : memref<20x128xf32, #tpu.memory_space<vmem>>, vector<20x128xf32>
    tpu.vector_store %arg4[%c0_266, %c0_267], %462 {strides = array<i32>} : memref<20x128xf32, #tpu.memory_space<vmem>>, vector<20x128xf32>,
    %c66 = arith.constant 66 : index
    %464 = memref.load %arg1[%c66] : memref<100xi32, #tpu.memory_space<smem>>
    %c67 = arith.constant 67 : index
    %465 = memref.load %arg1[%c67] : memref<100xi32, #tpu.memory_space<smem>>
    %466 = arith.index_cast %464 : i32 to index
    %c0_268 = arith.constant 0 : index
    %467 = vector.load %arg4[%466, %c0_268] : memref<20x128xf32, #tpu.memory_space<vmem>>, vector<1x128xf32>
    %468 = arith.index_cast %465 : i32 to index
    %c0_269 = arith.constant 0 : index
    %469 = vector.load %arg4[%468, %c0_269] : memref<20x128xf32, #tpu.memory_space<vmem>>, vector<1x128xf32>
    %470 = arith.mulf %467, %469 : vector<1x128xf32>
    %c0_270 = arith.constant 0 : index
    %c0_271 = arith.constant 0 : index
    %471 = vector.load %arg4[%c0_270, %c0_271] : memref<20x128xf32, #tpu.memory_space<vmem>>, vector<20x128xf32>
    %c0_272 = arith.constant 0 : index
    %c33_273 = arith.constant 33 : index
    %472 = vector.load %arg2[%c0_272, %c33_273] : memref<20x50xf32, #tpu.memory_space<vmem>>, vector<20x1xf32>
    %473 = vector.broadcast %472 : vector<20x1xf32> to vector<20x128xf32>
    %474 = vector.broadcast %470 : vector<1x128xf32> to vector<20x128xf32>
    %475 = arith.mulf %473, %474 : vector<20x128xf32>
    %476 = arith.addf %471, %475 : vector<20x128xf32>
    %c0_274 = arith.constant 0 : index
    %c0_275 = arith.constant 0 : index
    %477 = vector.load %arg4[%c0_274, %c0_275] : memref<20x128xf32, #tpu.memory_space<vmem>>, vector<20x128xf32>
    tpu.vector_store %arg4[%c0_274, %c0_275], %476 {strides = array<i32>} : memref<20x128xf32, #tpu.memory_space<vmem>>, vector<20x128xf32>,
    %c68 = arith.constant 68 : index
    %478 = memref.load %arg1[%c68] : memref<100xi32, #tpu.memory_space<smem>>
    %c69 = arith.constant 69 : index
    %479 = memref.load %arg1[%c69] : memref<100xi32, #tpu.memory_space<smem>>
    %480 = arith.index_cast %478 : i32 to index
    %c0_276 = arith.constant 0 : index
    %481 = vector.load %arg4[%480, %c0_276] : memref<20x128xf32, #tpu.memory_space<vmem>>, vector<1x128xf32>
    %482 = arith.index_cast %479 : i32 to index
    %c0_277 = arith.constant 0 : index
    %483 = vector.load %arg4[%482, %c0_277] : memref<20x128xf32, #tpu.memory_space<vmem>>, vector<1x128xf32>
    %484 = arith.mulf %481, %483 : vector<1x128xf32>
    %c0_278 = arith.constant 0 : index
    %c0_279 = arith.constant 0 : index
    %485 = vector.load %arg4[%c0_278, %c0_279] : memref<20x128xf32, #tpu.memory_space<vmem>>, vector<20x128xf32>
    %c0_280 = arith.constant 0 : index
    %c34_281 = arith.constant 34 : index
    %486 = vector.load %arg2[%c0_280, %c34_281] : memref<20x50xf32, #tpu.memory_space<vmem>>, vector<20x1xf32>
    %487 = vector.broadcast %486 : vector<20x1xf32> to vector<20x128xf32>
    %488 = vector.broadcast %484 : vector<1x128xf32> to vector<20x128xf32>
    %489 = arith.mulf %487, %488 : vector<20x128xf32>
    %490 = arith.addf %485, %489 : vector<20x128xf32>
    %c0_282 = arith.constant 0 : index
    %c0_283 = arith.constant 0 : index
    %491 = vector.load %arg4[%c0_282, %c0_283] : memref<20x128xf32, #tpu.memory_space<vmem>>, vector<20x128xf32>
    tpu.vector_store %arg4[%c0_282, %c0_283], %490 {strides = array<i32>} : memref<20x128xf32, #tpu.memory_space<vmem>>, vector<20x128xf32>,
    %c70 = arith.constant 70 : index
    %492 = memref.load %arg1[%c70] : memref<100xi32, #tpu.memory_space<smem>>
    %c71 = arith.constant 71 : index
    %493 = memref.load %arg1[%c71] : memref<100xi32, #tpu.memory_space<smem>>
    %494 = arith.index_cast %492 : i32 to index
    %c0_284 = arith.constant 0 : index
    %495 = vector.load %arg4[%494, %c0_284] : memref<20x128xf32, #tpu.memory_space<vmem>>, vector<1x128xf32>
    %496 = arith.index_cast %493 : i32 to index
    %c0_285 = arith.constant 0 : index
    %497 = vector.load %arg4[%496, %c0_285] : memref<20x128xf32, #tpu.memory_space<vmem>>, vector<1x128xf32>
    %498 = arith.mulf %495, %497 : vector<1x128xf32>
    %c0_286 = arith.constant 0 : index
    %c0_287 = arith.constant 0 : index
    %499 = vector.load %arg4[%c0_286, %c0_287] : memref<20x128xf32, #tpu.memory_space<vmem>>, vector<20x128xf32>
    %c0_288 = arith.constant 0 : index
    %c35_289 = arith.constant 35 : index
    %500 = vector.load %arg2[%c0_288, %c35_289] : memref<20x50xf32, #tpu.memory_space<vmem>>, vector<20x1xf32>
    %501 = vector.broadcast %500 : vector<20x1xf32> to vector<20x128xf32>
    %502 = vector.broadcast %498 : vector<1x128xf32> to vector<20x128xf32>
    %503 = arith.mulf %501, %502 : vector<20x128xf32>
    %504 = arith.addf %499, %503 : vector<20x128xf32>
    %c0_290 = arith.constant 0 : index
    %c0_291 = arith.constant 0 : index
    %505 = vector.load %arg4[%c0_290, %c0_291] : memref<20x128xf32, #tpu.memory_space<vmem>>, vector<20x128xf32>
    tpu.vector_store %arg4[%c0_290, %c0_291], %504 {strides = array<i32>} : memref<20x128xf32, #tpu.memory_space<vmem>>, vector<20x128xf32>,
    %c72 = arith.constant 72 : index
    %506 = memref.load %arg1[%c72] : memref<100xi32, #tpu.memory_space<smem>>
    %c73 = arith.constant 73 : index
    %507 = memref.load %arg1[%c73] : memref<100xi32, #tpu.memory_space<smem>>
    %508 = arith.index_cast %506 : i32 to index
    %c0_292 = arith.constant 0 : index
    %509 = vector.load %arg4[%508, %c0_292] : memref<20x128xf32, #tpu.memory_space<vmem>>, vector<1x128xf32>
    %510 = arith.index_cast %507 : i32 to index
    %c0_293 = arith.constant 0 : index
    %511 = vector.load %arg4[%510, %c0_293] : memref<20x128xf32, #tpu.memory_space<vmem>>, vector<1x128xf32>
    %512 = arith.mulf %509, %511 : vector<1x128xf32>
    %c0_294 = arith.constant 0 : index
    %c0_295 = arith.constant 0 : index
    %513 = vector.load %arg4[%c0_294, %c0_295] : memref<20x128xf32, #tpu.memory_space<vmem>>, vector<20x128xf32>
    %c0_296 = arith.constant 0 : index
    %c36_297 = arith.constant 36 : index
    %514 = vector.load %arg2[%c0_296, %c36_297] : memref<20x50xf32, #tpu.memory_space<vmem>>, vector<20x1xf32>
    %515 = vector.broadcast %514 : vector<20x1xf32> to vector<20x128xf32>
    %516 = vector.broadcast %512 : vector<1x128xf32> to vector<20x128xf32>
    %517 = arith.mulf %515, %516 : vector<20x128xf32>
    %518 = arith.addf %513, %517 : vector<20x128xf32>
    %c0_298 = arith.constant 0 : index
    %c0_299 = arith.constant 0 : index
    %519 = vector.load %arg4[%c0_298, %c0_299] : memref<20x128xf32, #tpu.memory_space<vmem>>, vector<20x128xf32>
    tpu.vector_store %arg4[%c0_298, %c0_299], %518 {strides = array<i32>} : memref<20x128xf32, #tpu.memory_space<vmem>>, vector<20x128xf32>,
    %c74 = arith.constant 74 : index
    %520 = memref.load %arg1[%c74] : memref<100xi32, #tpu.memory_space<smem>>
    %c75 = arith.constant 75 : index
    %521 = memref.load %arg1[%c75] : memref<100xi32, #tpu.memory_space<smem>>
    %522 = arith.index_cast %520 : i32 to index
    %c0_300 = arith.constant 0 : index
    %523 = vector.load %arg4[%522, %c0_300] : memref<20x128xf32, #tpu.memory_space<vmem>>, vector<1x128xf32>
    %524 = arith.index_cast %521 : i32 to index
    %c0_301 = arith.constant 0 : index
    %525 = vector.load %arg4[%524, %c0_301] : memref<20x128xf32, #tpu.memory_space<vmem>>, vector<1x128xf32>
    %526 = arith.mulf %523, %525 : vector<1x128xf32>
    %c0_302 = arith.constant 0 : index
    %c0_303 = arith.constant 0 : index
    %527 = vector.load %arg4[%c0_302, %c0_303] : memref<20x128xf32, #tpu.memory_space<vmem>>, vector<20x128xf32>
    %c0_304 = arith.constant 0 : index
    %c37_305 = arith.constant 37 : index
    %528 = vector.load %arg2[%c0_304, %c37_305] : memref<20x50xf32, #tpu.memory_space<vmem>>, vector<20x1xf32>
    %529 = vector.broadcast %528 : vector<20x1xf32> to vector<20x128xf32>
    %530 = vector.broadcast %526 : vector<1x128xf32> to vector<20x128xf32>
    %531 = arith.mulf %529, %530 : vector<20x128xf32>
    %532 = arith.addf %527, %531 : vector<20x128xf32>
    %c0_306 = arith.constant 0 : index
    %c0_307 = arith.constant 0 : index
    %533 = vector.load %arg4[%c0_306, %c0_307] : memref<20x128xf32, #tpu.memory_space<vmem>>, vector<20x128xf32>
    tpu.vector_store %arg4[%c0_306, %c0_307], %532 {strides = array<i32>} : memref<20x128xf32, #tpu.memory_space<vmem>>, vector<20x128xf32>,
    %c76 = arith.constant 76 : index
    %534 = memref.load %arg1[%c76] : memref<100xi32, #tpu.memory_space<smem>>
    %c77 = arith.constant 77 : index
    %535 = memref.load %arg1[%c77] : memref<100xi32, #tpu.memory_space<smem>>
    %536 = arith.index_cast %534 : i32 to index
    %c0_308 = arith.constant 0 : index
    %537 = vector.load %arg4[%536, %c0_308] : memref<20x128xf32, #tpu.memory_space<vmem>>, vector<1x128xf32>
    %538 = arith.index_cast %535 : i32 to index
    %c0_309 = arith.constant 0 : index
    %539 = vector.load %arg4[%538, %c0_309] : memref<20x128xf32, #tpu.memory_space<vmem>>, vector<1x128xf32>
    %540 = arith.mulf %537, %539 : vector<1x128xf32>
    %c0_310 = arith.constant 0 : index
    %c0_311 = arith.constant 0 : index
    %541 = vector.load %arg4[%c0_310, %c0_311] : memref<20x128xf32, #tpu.memory_space<vmem>>, vector<20x128xf32>
    %c0_312 = arith.constant 0 : index
    %c38_313 = arith.constant 38 : index
    %542 = vector.load %arg2[%c0_312, %c38_313] : memref<20x50xf32, #tpu.memory_space<vmem>>, vector<20x1xf32>
    %543 = vector.broadcast %542 : vector<20x1xf32> to vector<20x128xf32>
    %544 = vector.broadcast %540 : vector<1x128xf32> to vector<20x128xf32>
    %545 = arith.mulf %543, %544 : vector<20x128xf32>
    %546 = arith.addf %541, %545 : vector<20x128xf32>
    %c0_314 = arith.constant 0 : index
    %c0_315 = arith.constant 0 : index
    %547 = vector.load %arg4[%c0_314, %c0_315] : memref<20x128xf32, #tpu.memory_space<vmem>>, vector<20x128xf32>
    tpu.vector_store %arg4[%c0_314, %c0_315], %546 {strides = array<i32>} : memref<20x128xf32, #tpu.memory_space<vmem>>, vector<20x128xf32>,
    %c78 = arith.constant 78 : index
    %548 = memref.load %arg1[%c78] : memref<100xi32, #tpu.memory_space<smem>>
    %c79 = arith.constant 79 : index
    %549 = memref.load %arg1[%c79] : memref<100xi32, #tpu.memory_space<smem>>
    %550 = arith.index_cast %548 : i32 to index
    %c0_316 = arith.constant 0 : index
    %551 = vector.load %arg4[%550, %c0_316] : memref<20x128xf32, #tpu.memory_space<vmem>>, vector<1x128xf32>
    %552 = arith.index_cast %549 : i32 to index
    %c0_317 = arith.constant 0 : index
    %553 = vector.load %arg4[%552, %c0_317] : memref<20x128xf32, #tpu.memory_space<vmem>>, vector<1x128xf32>
    %554 = arith.mulf %551, %553 : vector<1x128xf32>
    %c0_318 = arith.constant 0 : index
    %c0_319 = arith.constant 0 : index
    %555 = vector.load %arg4[%c0_318, %c0_319] : memref<20x128xf32, #tpu.memory_space<vmem>>, vector<20x128xf32>
    %c0_320 = arith.constant 0 : index
    %c39_321 = arith.constant 39 : index
    %556 = vector.load %arg2[%c0_320, %c39_321] : memref<20x50xf32, #tpu.memory_space<vmem>>, vector<20x1xf32>
    %557 = vector.broadcast %556 : vector<20x1xf32> to vector<20x128xf32>
    %558 = vector.broadcast %554 : vector<1x128xf32> to vector<20x128xf32>
    %559 = arith.mulf %557, %558 : vector<20x128xf32>
    %560 = arith.addf %555, %559 : vector<20x128xf32>
    %c0_322 = arith.constant 0 : index
    %c0_323 = arith.constant 0 : index
    %561 = vector.load %arg4[%c0_322, %c0_323] : memref<20x128xf32, #tpu.memory_space<vmem>>, vector<20x128xf32>
    tpu.vector_store %arg4[%c0_322, %c0_323], %560 {strides = array<i32>} : memref<20x128xf32, #tpu.memory_space<vmem>>, vector<20x128xf32>,
    %c80 = arith.constant 80 : index
    %562 = memref.load %arg1[%c80] : memref<100xi32, #tpu.memory_space<smem>>
    %c81 = arith.constant 81 : index
    %563 = memref.load %arg1[%c81] : memref<100xi32, #tpu.memory_space<smem>>
    %564 = arith.index_cast %562 : i32 to index
    %c0_324 = arith.constant 0 : index
    %565 = vector.load %arg4[%564, %c0_324] : memref<20x128xf32, #tpu.memory_space<vmem>>, vector<1x128xf32>
    %566 = arith.index_cast %563 : i32 to index
    %c0_325 = arith.constant 0 : index
    %567 = vector.load %arg4[%566, %c0_325] : memref<20x128xf32, #tpu.memory_space<vmem>>, vector<1x128xf32>
    %568 = arith.mulf %565, %567 : vector<1x128xf32>
    %c0_326 = arith.constant 0 : index
    %c0_327 = arith.constant 0 : index
    %569 = vector.load %arg4[%c0_326, %c0_327] : memref<20x128xf32, #tpu.memory_space<vmem>>, vector<20x128xf32>
    %c0_328 = arith.constant 0 : index
    %c40_329 = arith.constant 40 : index
    %570 = vector.load %arg2[%c0_328, %c40_329] : memref<20x50xf32, #tpu.memory_space<vmem>>, vector<20x1xf32>
    %571 = vector.broadcast %570 : vector<20x1xf32> to vector<20x128xf32>
    %572 = vector.broadcast %568 : vector<1x128xf32> to vector<20x128xf32>
    %573 = arith.mulf %571, %572 : vector<20x128xf32>
    %574 = arith.addf %569, %573 : vector<20x128xf32>
    %c0_330 = arith.constant 0 : index
    %c0_331 = arith.constant 0 : index
    %575 = vector.load %arg4[%c0_330, %c0_331] : memref<20x128xf32, #tpu.memory_space<vmem>>, vector<20x128xf32>
    tpu.vector_store %arg4[%c0_330, %c0_331], %574 {strides = array<i32>} : memref<20x128xf32, #tpu.memory_space<vmem>>, vector<20x128xf32>,
    %c82 = arith.constant 82 : index
    %576 = memref.load %arg1[%c82] : memref<100xi32, #tpu.memory_space<smem>>
    %c83 = arith.constant 83 : index
    %577 = memref.load %arg1[%c83] : memref<100xi32, #tpu.memory_space<smem>>
    %578 = arith.index_cast %576 : i32 to index
    %c0_332 = arith.constant 0 : index
    %579 = vector.load %arg4[%578, %c0_332] : memref<20x128xf32, #tpu.memory_space<vmem>>, vector<1x128xf32>
    %580 = arith.index_cast %577 : i32 to index
    %c0_333 = arith.constant 0 : index
    %581 = vector.load %arg4[%580, %c0_333] : memref<20x128xf32, #tpu.memory_space<vmem>>, vector<1x128xf32>
    %582 = arith.mulf %579, %581 : vector<1x128xf32>
    %c0_334 = arith.constant 0 : index
    %c0_335 = arith.constant 0 : index
    %583 = vector.load %arg4[%c0_334, %c0_335] : memref<20x128xf32, #tpu.memory_space<vmem>>, vector<20x128xf32>
    %c0_336 = arith.constant 0 : index
    %c41_337 = arith.constant 41 : index
    %584 = vector.load %arg2[%c0_336, %c41_337] : memref<20x50xf32, #tpu.memory_space<vmem>>, vector<20x1xf32>
    %585 = vector.broadcast %584 : vector<20x1xf32> to vector<20x128xf32>
    %586 = vector.broadcast %582 : vector<1x128xf32> to vector<20x128xf32>
    %587 = arith.mulf %585, %586 : vector<20x128xf32>
    %588 = arith.addf %583, %587 : vector<20x128xf32>
    %c0_338 = arith.constant 0 : index
    %c0_339 = arith.constant 0 : index
    %589 = vector.load %arg4[%c0_338, %c0_339] : memref<20x128xf32, #tpu.memory_space<vmem>>, vector<20x128xf32>
    tpu.vector_store %arg4[%c0_338, %c0_339], %588 {strides = array<i32>} : memref<20x128xf32, #tpu.memory_space<vmem>>, vector<20x128xf32>,
    %c84 = arith.constant 84 : index
    %590 = memref.load %arg1[%c84] : memref<100xi32, #tpu.memory_space<smem>>
    %c85 = arith.constant 85 : index
    %591 = memref.load %arg1[%c85] : memref<100xi32, #tpu.memory_space<smem>>
    %592 = arith.index_cast %590 : i32 to index
    %c0_340 = arith.constant 0 : index
    %593 = vector.load %arg4[%592, %c0_340] : memref<20x128xf32, #tpu.memory_space<vmem>>, vector<1x128xf32>
    %594 = arith.index_cast %591 : i32 to index
    %c0_341 = arith.constant 0 : index
    %595 = vector.load %arg4[%594, %c0_341] : memref<20x128xf32, #tpu.memory_space<vmem>>, vector<1x128xf32>
    %596 = arith.mulf %593, %595 : vector<1x128xf32>
    %c0_342 = arith.constant 0 : index
    %c0_343 = arith.constant 0 : index
    %597 = vector.load %arg4[%c0_342, %c0_343] : memref<20x128xf32, #tpu.memory_space<vmem>>, vector<20x128xf32>
    %c0_344 = arith.constant 0 : index
    %c42_345 = arith.constant 42 : index
    %598 = vector.load %arg2[%c0_344, %c42_345] : memref<20x50xf32, #tpu.memory_space<vmem>>, vector<20x1xf32>
    %599 = vector.broadcast %598 : vector<20x1xf32> to vector<20x128xf32>
    %600 = vector.broadcast %596 : vector<1x128xf32> to vector<20x128xf32>
    %601 = arith.mulf %599, %600 : vector<20x128xf32>
    %602 = arith.addf %597, %601 : vector<20x128xf32>
    %c0_346 = arith.constant 0 : index
    %c0_347 = arith.constant 0 : index
    %603 = vector.load %arg4[%c0_346, %c0_347] : memref<20x128xf32, #tpu.memory_space<vmem>>, vector<20x128xf32>
    tpu.vector_store %arg4[%c0_346, %c0_347], %602 {strides = array<i32>} : memref<20x128xf32, #tpu.memory_space<vmem>>, vector<20x128xf32>,
    %c86 = arith.constant 86 : index
    %604 = memref.load %arg1[%c86] : memref<100xi32, #tpu.memory_space<smem>>
    %c87 = arith.constant 87 : index
    %605 = memref.load %arg1[%c87] : memref<100xi32, #tpu.memory_space<smem>>
    %606 = arith.index_cast %604 : i32 to index
    %c0_348 = arith.constant 0 : index
    %607 = vector.load %arg4[%606, %c0_348] : memref<20x128xf32, #tpu.memory_space<vmem>>, vector<1x128xf32>
    %608 = arith.index_cast %605 : i32 to index
    %c0_349 = arith.constant 0 : index
    %609 = vector.load %arg4[%608, %c0_349] : memref<20x128xf32, #tpu.memory_space<vmem>>, vector<1x128xf32>
    %610 = arith.mulf %607, %609 : vector<1x128xf32>
    %c0_350 = arith.constant 0 : index
    %c0_351 = arith.constant 0 : index
    %611 = vector.load %arg4[%c0_350, %c0_351] : memref<20x128xf32, #tpu.memory_space<vmem>>, vector<20x128xf32>
    %c0_352 = arith.constant 0 : index
    %c43_353 = arith.constant 43 : index
    %612 = vector.load %arg2[%c0_352, %c43_353] : memref<20x50xf32, #tpu.memory_space<vmem>>, vector<20x1xf32>
    %613 = vector.broadcast %612 : vector<20x1xf32> to vector<20x128xf32>
    %614 = vector.broadcast %610 : vector<1x128xf32> to vector<20x128xf32>
    %615 = arith.mulf %613, %614 : vector<20x128xf32>
    %616 = arith.addf %611, %615 : vector<20x128xf32>
    %c0_354 = arith.constant 0 : index
    %c0_355 = arith.constant 0 : index
    %617 = vector.load %arg4[%c0_354, %c0_355] : memref<20x128xf32, #tpu.memory_space<vmem>>, vector<20x128xf32>
    tpu.vector_store %arg4[%c0_354, %c0_355], %616 {strides = array<i32>} : memref<20x128xf32, #tpu.memory_space<vmem>>, vector<20x128xf32>,
    %c88 = arith.constant 88 : index
    %618 = memref.load %arg1[%c88] : memref<100xi32, #tpu.memory_space<smem>>
    %c89 = arith.constant 89 : index
    %619 = memref.load %arg1[%c89] : memref<100xi32, #tpu.memory_space<smem>>
    %620 = arith.index_cast %618 : i32 to index
    %c0_356 = arith.constant 0 : index
    %621 = vector.load %arg4[%620, %c0_356] : memref<20x128xf32, #tpu.memory_space<vmem>>, vector<1x128xf32>
    %622 = arith.index_cast %619 : i32 to index
    %c0_357 = arith.constant 0 : index
    %623 = vector.load %arg4[%622, %c0_357] : memref<20x128xf32, #tpu.memory_space<vmem>>, vector<1x128xf32>
    %624 = arith.mulf %621, %623 : vector<1x128xf32>
    %c0_358 = arith.constant 0 : index
    %c0_359 = arith.constant 0 : index
    %625 = vector.load %arg4[%c0_358, %c0_359] : memref<20x128xf32, #tpu.memory_space<vmem>>, vector<20x128xf32>
    %c0_360 = arith.constant 0 : index
    %c44_361 = arith.constant 44 : index
    %626 = vector.load %arg2[%c0_360, %c44_361] : memref<20x50xf32, #tpu.memory_space<vmem>>, vector<20x1xf32>
    %627 = vector.broadcast %626 : vector<20x1xf32> to vector<20x128xf32>
    %628 = vector.broadcast %624 : vector<1x128xf32> to vector<20x128xf32>
    %629 = arith.mulf %627, %628 : vector<20x128xf32>
    %630 = arith.addf %625, %629 : vector<20x128xf32>
    %c0_362 = arith.constant 0 : index
    %c0_363 = arith.constant 0 : index
    %631 = vector.load %arg4[%c0_362, %c0_363] : memref<20x128xf32, #tpu.memory_space<vmem>>, vector<20x128xf32>
    tpu.vector_store %arg4[%c0_362, %c0_363], %630 {strides = array<i32>} : memref<20x128xf32, #tpu.memory_space<vmem>>, vector<20x128xf32>,
    %c90 = arith.constant 90 : index
    %632 = memref.load %arg1[%c90] : memref<100xi32, #tpu.memory_space<smem>>
    %c91 = arith.constant 91 : index
    %633 = memref.load %arg1[%c91] : memref<100xi32, #tpu.memory_space<smem>>
    %634 = arith.index_cast %632 : i32 to index
    %c0_364 = arith.constant 0 : index
    %635 = vector.load %arg4[%634, %c0_364] : memref<20x128xf32, #tpu.memory_space<vmem>>, vector<1x128xf32>
    %636 = arith.index_cast %633 : i32 to index
    %c0_365 = arith.constant 0 : index
    %637 = vector.load %arg4[%636, %c0_365] : memref<20x128xf32, #tpu.memory_space<vmem>>, vector<1x128xf32>
    %638 = arith.mulf %635, %637 : vector<1x128xf32>
    %c0_366 = arith.constant 0 : index
    %c0_367 = arith.constant 0 : index
    %639 = vector.load %arg4[%c0_366, %c0_367] : memref<20x128xf32, #tpu.memory_space<vmem>>, vector<20x128xf32>
    %c0_368 = arith.constant 0 : index
    %c45_369 = arith.constant 45 : index
    %640 = vector.load %arg2[%c0_368, %c45_369] : memref<20x50xf32, #tpu.memory_space<vmem>>, vector<20x1xf32>
    %641 = vector.broadcast %640 : vector<20x1xf32> to vector<20x128xf32>
    %642 = vector.broadcast %638 : vector<1x128xf32> to vector<20x128xf32>
    %643 = arith.mulf %641, %642 : vector<20x128xf32>
    %644 = arith.addf %639, %643 : vector<20x128xf32>
    %c0_370 = arith.constant 0 : index
    %c0_371 = arith.constant 0 : index
    %645 = vector.load %arg4[%c0_370, %c0_371] : memref<20x128xf32, #tpu.memory_space<vmem>>, vector<20x128xf32>
    tpu.vector_store %arg4[%c0_370, %c0_371], %644 {strides = array<i32>} : memref<20x128xf32, #tpu.memory_space<vmem>>, vector<20x128xf32>,
    %c92 = arith.constant 92 : index
    %646 = memref.load %arg1[%c92] : memref<100xi32, #tpu.memory_space<smem>>
    %c93 = arith.constant 93 : index
    %647 = memref.load %arg1[%c93] : memref<100xi32, #tpu.memory_space<smem>>
    %648 = arith.index_cast %646 : i32 to index
    %c0_372 = arith.constant 0 : index
    %649 = vector.load %arg4[%648, %c0_372] : memref<20x128xf32, #tpu.memory_space<vmem>>, vector<1x128xf32>
    %650 = arith.index_cast %647 : i32 to index
    %c0_373 = arith.constant 0 : index
    %651 = vector.load %arg4[%650, %c0_373] : memref<20x128xf32, #tpu.memory_space<vmem>>, vector<1x128xf32>
    %652 = arith.mulf %649, %651 : vector<1x128xf32>
    %c0_374 = arith.constant 0 : index
    %c0_375 = arith.constant 0 : index
    %653 = vector.load %arg4[%c0_374, %c0_375] : memref<20x128xf32, #tpu.memory_space<vmem>>, vector<20x128xf32>
    %c0_376 = arith.constant 0 : index
    %c46_377 = arith.constant 46 : index
    %654 = vector.load %arg2[%c0_376, %c46_377] : memref<20x50xf32, #tpu.memory_space<vmem>>, vector<20x1xf32>
    %655 = vector.broadcast %654 : vector<20x1xf32> to vector<20x128xf32>
    %656 = vector.broadcast %652 : vector<1x128xf32> to vector<20x128xf32>
    %657 = arith.mulf %655, %656 : vector<20x128xf32>
    %658 = arith.addf %653, %657 : vector<20x128xf32>
    %c0_378 = arith.constant 0 : index
    %c0_379 = arith.constant 0 : index
    %659 = vector.load %arg4[%c0_378, %c0_379] : memref<20x128xf32, #tpu.memory_space<vmem>>, vector<20x128xf32>
    tpu.vector_store %arg4[%c0_378, %c0_379], %658 {strides = array<i32>} : memref<20x128xf32, #tpu.memory_space<vmem>>, vector<20x128xf32>,
    %c94 = arith.constant 94 : index
    %660 = memref.load %arg1[%c94] : memref<100xi32, #tpu.memory_space<smem>>
    %c95 = arith.constant 95 : index
    %661 = memref.load %arg1[%c95] : memref<100xi32, #tpu.memory_space<smem>>
    %662 = arith.index_cast %660 : i32 to index
    %c0_380 = arith.constant 0 : index
    %663 = vector.load %arg4[%662, %c0_380] : memref<20x128xf32, #tpu.memory_space<vmem>>, vector<1x128xf32>
    %664 = arith.index_cast %661 : i32 to index
    %c0_381 = arith.constant 0 : index
    %665 = vector.load %arg4[%664, %c0_381] : memref<20x128xf32, #tpu.memory_space<vmem>>, vector<1x128xf32>
    %666 = arith.mulf %663, %665 : vector<1x128xf32>
    %c0_382 = arith.constant 0 : index
    %c0_383 = arith.constant 0 : index
    %667 = vector.load %arg4[%c0_382, %c0_383] : memref<20x128xf32, #tpu.memory_space<vmem>>, vector<20x128xf32>
    %c0_384 = arith.constant 0 : index
    %c47_385 = arith.constant 47 : index
    %668 = vector.load %arg2[%c0_384, %c47_385] : memref<20x50xf32, #tpu.memory_space<vmem>>, vector<20x1xf32>
    %669 = vector.broadcast %668 : vector<20x1xf32> to vector<20x128xf32>
    %670 = vector.broadcast %666 : vector<1x128xf32> to vector<20x128xf32>
    %671 = arith.mulf %669, %670 : vector<20x128xf32>
    %672 = arith.addf %667, %671 : vector<20x128xf32>
    %c0_386 = arith.constant 0 : index
    %c0_387 = arith.constant 0 : index
    %673 = vector.load %arg4[%c0_386, %c0_387] : memref<20x128xf32, #tpu.memory_space<vmem>>, vector<20x128xf32>
    tpu.vector_store %arg4[%c0_386, %c0_387], %672 {strides = array<i32>} : memref<20x128xf32, #tpu.memory_space<vmem>>, vector<20x128xf32>,
    %c96 = arith.constant 96 : index
    %674 = memref.load %arg1[%c96] : memref<100xi32, #tpu.memory_space<smem>>
    %c97 = arith.constant 97 : index
    %675 = memref.load %arg1[%c97] : memref<100xi32, #tpu.memory_space<smem>>
    %676 = arith.index_cast %674 : i32 to index
    %c0_388 = arith.constant 0 : index
    %677 = vector.load %arg4[%676, %c0_388] : memref<20x128xf32, #tpu.memory_space<vmem>>, vector<1x128xf32>
    %678 = arith.index_cast %675 : i32 to index
    %c0_389 = arith.constant 0 : index
    %679 = vector.load %arg4[%678, %c0_389] : memref<20x128xf32, #tpu.memory_space<vmem>>, vector<1x128xf32>
    %680 = arith.mulf %677, %679 : vector<1x128xf32>
    %c0_390 = arith.constant 0 : index
    %c0_391 = arith.constant 0 : index
    %681 = vector.load %arg4[%c0_390, %c0_391] : memref<20x128xf32, #tpu.memory_space<vmem>>, vector<20x128xf32>
    %c0_392 = arith.constant 0 : index
    %c48_393 = arith.constant 48 : index
    %682 = vector.load %arg2[%c0_392, %c48_393] : memref<20x50xf32, #tpu.memory_space<vmem>>, vector<20x1xf32>
    %683 = vector.broadcast %682 : vector<20x1xf32> to vector<20x128xf32>
    %684 = vector.broadcast %680 : vector<1x128xf32> to vector<20x128xf32>
    %685 = arith.mulf %683, %684 : vector<20x128xf32>
    %686 = arith.addf %681, %685 : vector<20x128xf32>
    %c0_394 = arith.constant 0 : index
    %c0_395 = arith.constant 0 : index
    %687 = vector.load %arg4[%c0_394, %c0_395] : memref<20x128xf32, #tpu.memory_space<vmem>>, vector<20x128xf32>
    tpu.vector_store %arg4[%c0_394, %c0_395], %686 {strides = array<i32>} : memref<20x128xf32, #tpu.memory_space<vmem>>, vector<20x128xf32>,
    %c98 = arith.constant 98 : index
    %688 = memref.load %arg1[%c98] : memref<100xi32, #tpu.memory_space<smem>>
    %c99 = arith.constant 99 : index
    %689 = memref.load %arg1[%c99] : memref<100xi32, #tpu.memory_space<smem>>
    %690 = arith.index_cast %688 : i32 to index
    %c0_396 = arith.constant 0 : index
    %691 = vector.load %arg4[%690, %c0_396] : memref<20x128xf32, #tpu.memory_space<vmem>>, vector<1x128xf32>
    %692 = arith.index_cast %689 : i32 to index
    %c0_397 = arith.constant 0 : index
    %693 = vector.load %arg4[%692, %c0_397] : memref<20x128xf32, #tpu.memory_space<vmem>>, vector<1x128xf32>
    %694 = arith.mulf %691, %693 : vector<1x128xf32>
    %c0_398 = arith.constant 0 : index
    %c0_399 = arith.constant 0 : index
    %695 = vector.load %arg4[%c0_398, %c0_399] : memref<20x128xf32, #tpu.memory_space<vmem>>, vector<20x128xf32>
    %c0_400 = arith.constant 0 : index
    %c49_401 = arith.constant 49 : index
    %696 = vector.load %arg2[%c0_400, %c49_401] : memref<20x50xf32, #tpu.memory_space<vmem>>, vector<20x1xf32>
    %697 = vector.broadcast %696 : vector<20x1xf32> to vector<20x128xf32>
    %698 = vector.broadcast %694 : vector<1x128xf32> to vector<20x128xf32>
    %699 = arith.mulf %697, %698 : vector<20x128xf32>
    %700 = arith.addf %695, %699 : vector<20x128xf32>
    %c0_402 = arith.constant 0 : index
    %c0_403 = arith.constant 0 : index
    %701 = vector.load %arg4[%c0_402, %c0_403] : memref<20x128xf32, #tpu.memory_space<vmem>>, vector<20x128xf32>
    tpu.vector_store %arg4[%c0_402, %c0_403], %700 {strides = array<i32>} : memref<20x128xf32, #tpu.memory_space<vmem>>, vector<20x128xf32>,
    return
  }
  func.func @transform_0(%arg0: i32) -> i32 {
    %c0_i32 = arith.constant 0 : i32
    %c0_i32_0 = arith.constant 0 : i32
    return %c0_i32 : i32
  }
  func.func @transform_1(%arg0: i32) -> (i32, i32) {
    %c0_i32 = arith.constant 0 : i32
    %c0_i32_0 = arith.constant 0 : i32
    %c0_i32_1 = arith.constant 0 : i32
    return %c0_i32, %c0_i32_0 : i32, i32
  }
  func.func @transform_2(%arg0: i32) -> (i32, i32) {
    %c0_i32 = arith.constant 0 : i32
    %c0_i32_0 = arith.constant 0 : i32
    return %c0_i32, %arg0 : i32, i32
  }
  func.func @transform_3(%arg0: i32) -> (i32, i32) {
    %c0_i32 = arith.constant 0 : i32
    %c0_i32_0 = arith.constant 0 : i32
    return %c0_i32, %arg0 : i32, i32
  }
}

</mosaic_0001>

<llo_original>
// kernel: multireaction_forward.1
$region0: #{multireaction_forward.1}
  #allocation0 [shape = 'u32[]', space=smem, size = 0x4, offset = 0x4, fixed_abs, tag = 'smem constant byte address 0x4 - core index']
  #allocation1 [shape = 'u32[72,128]{1,0:T(1,128)}', space=vmem, size = 0x9000, scoped, tag = 'internal scratch']
  %s0 = inlined_call_operand.vmem [shape: s32[100], index: 0, kind: input, shape index: {}]
  %s1 = inlined_call_operand.vmem [shape: f32[20,50], index: 1, kind: input, shape index: {}]
  %s2 = inlined_call_operand.vmem [shape: f32[20,128], index: 2, kind: input, shape index: {}, may-alias: {2,3}]
  %s3 = inlined_call_operand.vmem [shape: f32[20,128], index: 3, kind: output, shape index: {}, may-alias: {2,3}]
  %s4 = sld [smem:[#allocation0]]
  $region26: #{multireaction_forward.1} parent=0
    _
  %s6 = ssub.s32 1, %s4
  %s7 = scalar_select 0, %s6, %s4
  $region1: #{multireaction_forward.1} parent=0
    #allocation2 [shape = 'u8[512]{0}', space=smem, size = 0x200, scoped, tag = 'input window, operand 0, single buffered']
    #allocation3 [shape = 's32[1]{0}', space=sflag, size = 0x4, scoped, tag = 'scoped memory for multireaction_forward.1']
    %8 = vsyncpa [#allocation3], 0
    // Predicated region
    $region2: #{multireaction_forward.1} parent=1 // pred_check
      _
    $region3: #{multireaction_forward.1} parent=1 // pred_check_branch
      %10 = sbr.rel (0) target = $region5
    $region4: #{multireaction_forward.1} parent=1 // pred_region
      %12 = vsyncadd [#allocation3], 0
      %s14 = sshll.u32 %s0, 4
      %s15 = int_to_ptr.vmem [resolvable:$true] %s14
      %17 = dma.vmem_to_smem %s15, 16, [#allocation2], [#allocation3]
    $region5: #{multireaction_forward.1} parent=1 // pred_fallthru
      _
    // Predicated region
    $region6: #{multireaction_forward.1} parent=1 // pred_check
      _
    $region7: #{multireaction_forward.1} parent=1 // pred_check_branch
      %19 = sbr.rel (0) target = $region9
    $region8: #{multireaction_forward.1} parent=1 // pred_region
      _
    $region9: #{multireaction_forward.1} parent=1 // pred_fallthru
      _
    // Predicated region
    $region10: #{multireaction_forward.1} parent=1 // pred_check
      _
    $region11: #{multireaction_forward.1} parent=1 // pred_check_branch
      %21 = sbr.rel (0) target = $region13
    $region12: #{multireaction_forward.1} parent=1 // pred_region
      _
    $region13: #{multireaction_forward.1} parent=1 // pred_fallthru
      _
    // Predicated region
    $region14: #{multireaction_forward.1} parent=1 // pred_check
      _
    $region15: #{multireaction_forward.1} parent=1 // pred_check_branch
      %23 = sbr.rel (0) target = $region17
    $region16: #{multireaction_forward.1} parent=1 // pred_region
      %25 = dma.done [#allocation3], 16
    $region17: #{multireaction_forward.1} parent=1 // pred_fallthru
      _
    %26 = sfence
    %v27 = vld [vmem:[%s2] sm:$0xff]
    %v28 = vld [vmem:[%s2 + $0x8] sm:$0xff]
    %v29 = vld [vmem:[%s2 + $0x10] sm:$0xf]
    %30 = vst [vmem:[%s3] sm:$0xff] %v27
    %31 = vst [vmem:[%s3 + $0x8] sm:$0xff] %v28
    %32 = vst [vmem:[%s3 + $0x10] sm:$0xf] %v29
    %s33 = sld [smem:[#allocation2]]
    %s34 = sld [smem:[#allocation2 + $0x1]]
    %s35 = scalar_lea.vmem %s3, %s33
    %v36 = vld [vmem:[%s35] sm:$0x1]
    %s37 = scalar_lea.vmem %s3, %s34
    %v38 = vld [vmem:[%s37] sm:$0x1]
    %v39 = vmul.f32 %v36, %v38
    %v40 = vld [vmem:[%s3] sm:$0xff]
    %v41 = vld [vmem:[%s3 + $0x8] sm:$0xff]
    %v42 = vld [vmem:[%s3 + $0x10] sm:$0xf]
    %v43 = vld [vmem:[%s1] sm:$0xff]
    %v44 = vld [vmem:[%s1 + $0x8] sm:$0xff]
    %v45 = vld [vmem:[%s1 + $0x10] sm:$0xf]
    %47 = vset.pattern.permute.xlu0 0
    %48 = vperm.xlu0 %47, %v43
    %v49 = vpop.permute.xlu0 %48
    %52 = vset.pattern.permute.xlu0 0
    %53 = vperm.xlu0 %52, %v44
    %v54 = vpop.permute.xlu0 %53
    %57 = vset.pattern.permute.xlu0 0
    %58 = vperm.xlu0 %57, %v45
    %v59 = vpop.permute.xlu0 %58
    %v61 = vperm.slane %v39, 0
    %v62 = vmul.f32 %v49, %v61
    %v63 = vmul.f32 %v54, %v61
    %v64 = vmul.f32 %v59, %v61
    %v65 = vadd.f32 %v40, %v62
    %v66 = vadd.f32 %v41, %v63
    %v67 = vadd.f32 %v42, %v64
    %68 = vst [vmem:[%s3] sm:$0xff] %v65
    %69 = vst [vmem:[%s3 + $0x8] sm:$0xff] %v66
    %70 = vst [vmem:[%s3 + $0x10] sm:$0xf] %v67
    %s71 = sld [smem:[#allocation2 + $0x2]]
    %s72 = sld [smem:[#allocation2 + $0x3]]
    %s73 = scalar_lea.vmem %s3, %s71
    %v74 = vld [vmem:[%s73] sm:$0x1]
    %s75 = scalar_lea.vmem %s3, %s72
    %v76 = vld [vmem:[%s75] sm:$0x1]
    %v77 = vmul.f32 %v74, %v76
    %v78 = vld [vmem:[%s3] sm:$0xff]
    %v79 = vld [vmem:[%s3 + $0x8] sm:$0xff]
    %v80 = vld [vmem:[%s3 + $0x10] sm:$0xf]
    %v81 = vld [vmem:[%s1] sm:$0xff]
    %v82 = vld [vmem:[%s1 + $0x8] sm:$0xff]
    %v83 = vld [vmem:[%s1 + $0x10] sm:$0xf]
    %85 = vset.pattern.permute.xlu0 1
    %86 = vperm.xlu0 %85, %v81
    %v87 = vpop.permute.xlu0 %86
    %90 = vset.pattern.permute.xlu0 1
    %91 = vperm.xlu0 %90, %v82
    %v92 = vpop.permute.xlu0 %91
    %95 = vset.pattern.permute.xlu0 1
    %96 = vperm.xlu0 %95, %v83
    %v97 = vpop.permute.xlu0 %96
    %v99 = vperm.slane %v77, 0
    %v100 = vmul.f32 %v87, %v99
    %v101 = vmul.f32 %v92, %v99
    %v102 = vmul.f32 %v97, %v99
    %v103 = vadd.f32 %v78, %v100
    %v104 = vadd.f32 %v79, %v101
    %v105 = vadd.f32 %v80, %v102
    %106 = vst [vmem:[%s3] sm:$0xff] %v103
    %107 = vst [vmem:[%s3 + $0x8] sm:$0xff] %v104
    %108 = vst [vmem:[%s3 + $0x10] sm:$0xf] %v105
    %s109 = sld [smem:[#allocation2 + $0x4]]
    %s110 = sld [smem:[#allocation2 + $0x5]]
    %s111 = scalar_lea.vmem %s3, %s109
    %v112 = vld [vmem:[%s111] sm:$0x1]
    %s113 = scalar_lea.vmem %s3, %s110
    %v114 = vld [vmem:[%s113] sm:$0x1]
    %v115 = vmul.f32 %v112, %v114
    %v116 = vld [vmem:[%s3] sm:$0xff]
    %v117 = vld [vmem:[%s3 + $0x8] sm:$0xff]
    %v118 = vld [vmem:[%s3 + $0x10] sm:$0xf]
    %v119 = vld [vmem:[%s1] sm:$0xff]
    %v120 = vld [vmem:[%s1 + $0x8] sm:$0xff]
    %v121 = vld [vmem:[%s1 + $0x10] sm:$0xf]
    %123 = vset.pattern.permute.xlu0 2
    %124 = vperm.xlu0 %123, %v119
    %v125 = vpop.permute.xlu0 %124
    %128 = vset.pattern.permute.xlu0 2
    %129 = vperm.xlu0 %128, %v120
    %v130 = vpop.permute.xlu0 %129
    %133 = vset.pattern.permute.xlu0 2
    %134 = vperm.xlu0 %133, %v121
    %v135 = vpop.permute.xlu0 %134
    %v137 = vperm.slane %v115, 0
    %v138 = vmul.f32 %v125, %v137
    %v139 = vmul.f32 %v130, %v137
    %v140 = vmul.f32 %v135, %v137
    %v141 = vadd.f32 %v116, %v138
    %v142 = vadd.f32 %v117, %v139
    %v143 = vadd.f32 %v118, %v140
    %144 = vst [vmem:[%s3] sm:$0xff] %v141
    %145 = vst [vmem:[%s3 + $0x8] sm:$0xff] %v142
    %146 = vst [vmem:[%s3 + $0x10] sm:$0xf] %v143
    %s147 = sld [smem:[#allocation2 + $0x6]]
    %s148 = sld [smem:[#allocation2 + $0x7]]
    %s149 = scalar_lea.vmem %s3, %s147
    %v150 = vld [vmem:[%s149] sm:$0x1]
    %s151 = scalar_lea.vmem %s3, %s148
    %v152 = vld [vmem:[%s151] sm:$0x1]
    %v153 = vmul.f32 %v150, %v152
    %v154 = vld [vmem:[%s3] sm:$0xff]
    %v155 = vld [vmem:[%s3 + $0x8] sm:$0xff]
    %v156 = vld [vmem:[%s3 + $0x10] sm:$0xf]
    %v157 = vld [vmem:[%s1] sm:$0xff]
    %v158 = vld [vmem:[%s1 + $0x8] sm:$0xff]
    %v159 = vld [vmem:[%s1 + $0x10] sm:$0xf]
    %161 = vset.pattern.permute.xlu0 3
    %162 = vperm.xlu0 %161, %v157
    %v163 = vpop.permute.xlu0 %162
    %166 = vset.pattern.permute.xlu0 3
    %167 = vperm.xlu0 %166, %v158
    %v168 = vpop.permute.xlu0 %167
    %171 = vset.pattern.permute.xlu0 3
    %172 = vperm.xlu0 %171, %v159
    %v173 = vpop.permute.xlu0 %172
    %v175 = vperm.slane %v153, 0
    %v176 = vmul.f32 %v163, %v175
    %v177 = vmul.f32 %v168, %v175
    %v178 = vmul.f32 %v173, %v175
    %v179 = vadd.f32 %v154, %v176
    %v180 = vadd.f32 %v155, %v177
    %v181 = vadd.f32 %v156, %v178
    %182 = vst [vmem:[%s3] sm:$0xff] %v179
    %183 = vst [vmem:[%s3 + $0x8] sm:$0xff] %v180
    %184 = vst [vmem:[%s3 + $0x10] sm:$0xf] %v181
    %s185 = sld [smem:[#allocation2 + $0x8]]
    %s186 = sld [smem:[#allocation2 + $0x9]]
    %s187 = scalar_lea.vmem %s3, %s185
    %v188 = vld [vmem:[%s187] sm:$0x1]
    %s189 = scalar_lea.vmem %s3, %s186
    %v190 = vld [vmem:[%s189] sm:$0x1]
    %v191 = vmul.f32 %v188, %v190
    %v192 = vld [vmem:[%s3] sm:$0xff]
    %v193 = vld [vmem:[%s3 + $0x8] sm:$0xff]
    %v194 = vld [vmem:[%s3 + $0x10] sm:$0xf]
    %v195 = vld [vmem:[%s1] sm:$0xff]
    %v196 = vld [vmem:[%s1 + $0x8] sm:$0xff]
    %v197 = vld [vmem:[%s1 + $0x10] sm:$0xf]
    %199 = vset.pattern.permute.xlu0 4
    %200 = vperm.xlu0 %199, %v195
    %v201 = vpop.permute.xlu0 %200
    %204 = vset.pattern.permute.xlu0 4
    %205 = vperm.xlu0 %204, %v196
    %v206 = vpop.permute.xlu0 %205
    %209 = vset.pattern.permute.xlu0 4
    %210 = vperm.xlu0 %209, %v197
    %v211 = vpop.permute.xlu0 %210
    %v213 = vperm.slane %v191, 0
    %v214 = vmul.f32 %v201, %v213
    %v215 = vmul.f32 %v206, %v213
    %v216 = vmul.f32 %v211, %v213
    %v217 = vadd.f32 %v192, %v214
    %v218 = vadd.f32 %v193, %v215
    %v219 = vadd.f32 %v194, %v216
    %220 = vst [vmem:[%s3] sm:$0xff] %v217
    %221 = vst [vmem:[%s3 + $0x8] sm:$0xff] %v218
    %222 = vst [vmem:[%s3 + $0x10] sm:$0xf] %v219
    %s223 = sld [smem:[#allocation2 + $0xa]]
    %s224 = sld [smem:[#allocation2 + $0xb]]
    %s225 = scalar_lea.vmem %s3, %s223
    %v226 = vld [vmem:[%s225] sm:$0x1]
    %s227 = scalar_lea.vmem %s3, %s224
    %v228 = vld [vmem:[%s227] sm:$0x1]
    %v229 = vmul.f32 %v226, %v228
    %v230 = vld [vmem:[%s3] sm:$0xff]
    %v231 = vld [vmem:[%s3 + $0x8] sm:$0xff]
    %v232 = vld [vmem:[%s3 + $0x10] sm:$0xf]
    %v233 = vld [vmem:[%s1] sm:$0xff]
    %v234 = vld [vmem:[%s1 + $0x8] sm:$0xff]
    %v235 = vld [vmem:[%s1 + $0x10] sm:$0xf]
    %237 = vset.pattern.permute.xlu0 5
    %238 = vperm.xlu0 %237, %v233
    %v239 = vpop.permute.xlu0 %238
    %242 = vset.pattern.permute.xlu0 5
    %243 = vperm.xlu0 %242, %v234
    %v244 = vpop.permute.xlu0 %243
    %247 = vset.pattern.permute.xlu0 5
    %248 = vperm.xlu0 %247, %v235
    %v249 = vpop.permute.xlu0 %248
    %v251 = vperm.slane %v229, 0
    %v252 = vmul.f32 %v239, %v251
    %v253 = vmul.f32 %v244, %v251
    %v254 = vmul.f32 %v249, %v251
    %v255 = vadd.f32 %v230, %v252
    %v256 = vadd.f32 %v231, %v253
    %v257 = vadd.f32 %v232, %v254
    %258 = vst [vmem:[%s3] sm:$0xff] %v255
    %259 = vst [vmem:[%s3 + $0x8] sm:$0xff] %v256
    %260 = vst [vmem:[%s3 + $0x10] sm:$0xf] %v257
    %s261 = sld [smem:[#allocation2 + $0xc]]
    %s262 = sld [smem:[#allocation2 + $0xd]]
    %s263 = scalar_lea.vmem %s3, %s261
    %v264 = vld [vmem:[%s263] sm:$0x1]
    %s265 = scalar_lea.vmem %s3, %s262
    %v266 = vld [vmem:[%s265] sm:$0x1]
    %v267 = vmul.f32 %v264, %v266
    %v268 = vld [vmem:[%s3] sm:$0xff]
    %v269 = vld [vmem:[%s3 + $0x8] sm:$0xff]
    %v270 = vld [vmem:[%s3 + $0x10] sm:$0xf]
    %v271 = vld [vmem:[%s1] sm:$0xff]
    %v272 = vld [vmem:[%s1 + $0x8] sm:$0xff]
    %v273 = vld [vmem:[%s1 + $0x10] sm:$0xf]
    %275 = vset.pattern.permute.xlu0 6
    %276 = vperm.xlu0 %275, %v271
    %v277 = vpop.permute.xlu0 %276
    %280 = vset.pattern.permute.xlu0 6
    %281 = vperm.xlu0 %280, %v272
    %v282 = vpop.permute.xlu0 %281
    %285 = vset.pattern.permute.xlu0 6
    %286 = vperm.xlu0 %285, %v273
    %v287 = vpop.permute.xlu0 %286
    %v289 = vperm.slane %v267, 0
    %v290 = vmul.f32 %v277, %v289
    %v291 = vmul.f32 %v282, %v289
    %v292 = vmul.f32 %v287, %v289
    %v293 = vadd.f32 %v268, %v290
    %v294 = vadd.f32 %v269, %v291
    %v295 = vadd.f32 %v270, %v292
    %296 = vst [vmem:[%s3] sm:$0xff] %v293
    %297 = vst [vmem:[%s3 + $0x8] sm:$0xff] %v294
    %298 = vst [vmem:[%s3 + $0x10] sm:$0xf] %v295
    %s299 = sld [smem:[#allocation2 + $0xe]]
    %s300 = sld [smem:[#allocation2 + $0xf]]
    %s301 = scalar_lea.vmem %s3, %s299
    %v302 = vld [vmem:[%s301] sm:$0x1]
    %s303 = scalar_lea.vmem %s3, %s300
    %v304 = vld [vmem:[%s303] sm:$0x1]
    %v305 = vmul.f32 %v302, %v304
    %v306 = vld [vmem:[%s3] sm:$0xff]
    %v307 = vld [vmem:[%s3 + $0x8] sm:$0xff]
    %v308 = vld [vmem:[%s3 + $0x10] sm:$0xf]
    %v309 = vld [vmem:[%s1] sm:$0xff]
    %v310 = vld [vmem:[%s1 + $0x8] sm:$0xff]
    %v311 = vld [vmem:[%s1 + $0x10] sm:$0xf]
    %313 = vset.pattern.permute.xlu0 7
    %314 = vperm.xlu0 %313, %v309
    %v315 = vpop.permute.xlu0 %314
    %318 = vset.pattern.permute.xlu0 7
    %319 = vperm.xlu0 %318, %v310
    %v320 = vpop.permute.xlu0 %319
    %323 = vset.pattern.permute.xlu0 7
    %324 = vperm.xlu0 %323, %v311
    %v325 = vpop.permute.xlu0 %324
    %v327 = vperm.slane %v305, 0
    %v328 = vmul.f32 %v315, %v327
    %v329 = vmul.f32 %v320, %v327
    %v330 = vmul.f32 %v325, %v327
    %v331 = vadd.f32 %v306, %v328
    %v332 = vadd.f32 %v307, %v329
    %v333 = vadd.f32 %v308, %v330
    %334 = vst [vmem:[%s3] sm:$0xff] %v331
    %335 = vst [vmem:[%s3 + $0x8] sm:$0xff] %v332
    %336 = vst [vmem:[%s3 + $0x10] sm:$0xf] %v333
    %s337 = sld [smem:[#allocation2 + $0x10]]
    %s338 = sld [smem:[#allocation2 + $0x11]]
    %s339 = scalar_lea.vmem %s3, %s337
    %v340 = vld [vmem:[%s339] sm:$0x1]
    %s341 = scalar_lea.vmem %s3, %s338
    %v342 = vld [vmem:[%s341] sm:$0x1]
    %v343 = vmul.f32 %v340, %v342
    %v344 = vld [vmem:[%s3] sm:$0xff]
    %v345 = vld [vmem:[%s3 + $0x8] sm:$0xff]
    %v346 = vld [vmem:[%s3 + $0x10] sm:$0xf]
    %v347 = vld [vmem:[%s1] sm:$0xff]
    %v348 = vld [vmem:[%s1 + $0x8] sm:$0xff]
    %v349 = vld [vmem:[%s1 + $0x10] sm:$0xf]
    %351 = vset.pattern.permute.xlu0 8
    %352 = vperm.xlu0 %351, %v347
    %v353 = vpop.permute.xlu0 %352
    %356 = vset.pattern.permute.xlu0 8
    %357 = vperm.xlu0 %356, %v348
    %v358 = vpop.permute.xlu0 %357
    %361 = vset.pattern.permute.xlu0 8
    %362 = vperm.xlu0 %361, %v349
    %v363 = vpop.permute.xlu0 %362
    %v365 = vperm.slane %v343, 0
    %v366 = vmul.f32 %v353, %v365
    %v367 = vmul.f32 %v358, %v365
    %v368 = vmul.f32 %v363, %v365
    %v369 = vadd.f32 %v344, %v366
    %v370 = vadd.f32 %v345, %v367
    %v371 = vadd.f32 %v346, %v368
    %372 = vst [vmem:[%s3] sm:$0xff] %v369
    %373 = vst [vmem:[%s3 + $0x8] sm:$0xff] %v370
    %374 = vst [vmem:[%s3 + $0x10] sm:$0xf] %v371
    %s375 = sld [smem:[#allocation2 + $0x12]]
    %s376 = sld [smem:[#allocation2 + $0x13]]
    %s377 = scalar_lea.vmem %s3, %s375
    %v378 = vld [vmem:[%s377] sm:$0x1]
    %s379 = scalar_lea.vmem %s3, %s376
    %v380 = vld [vmem:[%s379] sm:$0x1]
    %v381 = vmul.f32 %v378, %v380
    %v382 = vld [vmem:[%s3] sm:$0xff]
    %v383 = vld [vmem:[%s3 + $0x8] sm:$0xff]
    %v384 = vld [vmem:[%s3 + $0x10] sm:$0xf]
    %v385 = vld [vmem:[%s1] sm:$0xff]
    %v386 = vld [vmem:[%s1 + $0x8] sm:$0xff]
    %v387 = vld [vmem:[%s1 + $0x10] sm:$0xf]
    %389 = vset.pattern.permute.xlu0 9
    %390 = vperm.xlu0 %389, %v385
    %v391 = vpop.permute.xlu0 %390
    %394 = vset.pattern.permute.xlu0 9
    %395 = vperm.xlu0 %394, %v386
    %v396 = vpop.permute.xlu0 %395
    %399 = vset.pattern.permute.xlu0 9
    %400 = vperm.xlu0 %399, %v387
    %v401 = vpop.permute.xlu0 %400
    %v403 = vperm.slane %v381, 0
    %v404 = vmul.f32 %v391, %v403
    %v405 = vmul.f32 %v396, %v403
    %v406 = vmul.f32 %v401, %v403
    %v407 = vadd.f32 %v382, %v404
    %v408 = vadd.f32 %v383, %v405
    %v409 = vadd.f32 %v384, %v406
    %410 = vst [vmem:[%s3] sm:$0xff] %v407
    %411 = vst [vmem:[%s3 + $0x8] sm:$0xff] %v408
    %412 = vst [vmem:[%s3 + $0x10] sm:$0xf] %v409
    %s413 = sld [smem:[#allocation2 + $0x14]]
    %s414 = sld [smem:[#allocation2 + $0x15]]
    %s415 = scalar_lea.vmem %s3, %s413
    %v416 = vld [vmem:[%s415] sm:$0x1]
    %s417 = scalar_lea.vmem %s3, %s414
    %v418 = vld [vmem:[%s417] sm:$0x1]
    %v419 = vmul.f32 %v416, %v418
    %v420 = vld [vmem:[%s3] sm:$0xff]
    %v421 = vld [vmem:[%s3 + $0x8] sm:$0xff]
    %v422 = vld [vmem:[%s3 + $0x10] sm:$0xf]
    %v423 = vld [vmem:[%s1] sm:$0xff]
    %v424 = vld [vmem:[%s1 + $0x8] sm:$0xff]
    %v425 = vld [vmem:[%s1 + $0x10] sm:$0xf]
    %427 = vset.pattern.permute.xlu0 10
    %428 = vperm.xlu0 %427, %v423
    %v429 = vpop.permute.xlu0 %428
    %432 = vset.pattern.permute.xlu0 10
    %433 = vperm.xlu0 %432, %v424
    %v434 = vpop.permute.xlu0 %433
    %437 = vset.pattern.permute.xlu0 10
    %438 = vperm.xlu0 %437, %v425
    %v439 = vpop.permute.xlu0 %438
    %v441 = vperm.slane %v419, 0
    %v442 = vmul.f32 %v429, %v441
    %v443 = vmul.f32 %v434, %v441
    %v444 = vmul.f32 %v439, %v441
    %v445 = vadd.f32 %v420, %v442
    %v446 = vadd.f32 %v421, %v443
    %v447 = vadd.f32 %v422, %v444
    %448 = vst [vmem:[%s3] sm:$0xff] %v445
    %449 = vst [vmem:[%s3 + $0x8] sm:$0xff] %v446
    %450 = vst [vmem:[%s3 + $0x10] sm:$0xf] %v447
    %s451 = sld [smem:[#allocation2 + $0x16]]
    %s452 = sld [smem:[#allocation2 + $0x17]]
    %s453 = scalar_lea.vmem %s3, %s451
    %v454 = vld [vmem:[%s453] sm:$0x1]
    %s455 = scalar_lea.vmem %s3, %s452
    %v456 = vld [vmem:[%s455] sm:$0x1]
    %v457 = vmul.f32 %v454, %v456
    %v458 = vld [vmem:[%s3] sm:$0xff]
    %v459 = vld [vmem:[%s3 + $0x8] sm:$0xff]
    %v460 = vld [vmem:[%s3 + $0x10] sm:$0xf]
    %v461 = vld [vmem:[%s1] sm:$0xff]
    %v462 = vld [vmem:[%s1 + $0x8] sm:$0xff]
    %v463 = vld [vmem:[%s1 + $0x10] sm:$0xf]
    %465 = vset.pattern.permute.xlu0 11
    %466 = vperm.xlu0 %465, %v461
    %v467 = vpop.permute.xlu0 %466
    %470 = vset.pattern.permute.xlu0 11
    %471 = vperm.xlu0 %470, %v462
    %v472 = vpop.permute.xlu0 %471
    %475 = vset.pattern.permute.xlu0 11
    %476 = vperm.xlu0 %475, %v463
    %v477 = vpop.permute.xlu0 %476
    %v479 = vperm.slane %v457, 0
    %v480 = vmul.f32 %v467, %v479
    %v481 = vmul.f32 %v472, %v479
    %v482 = vmul.f32 %v477, %v479
    %v483 = vadd.f32 %v458, %v480
    %v484 = vadd.f32 %v459, %v481
    %v485 = vadd.f32 %v460, %v482
    %486 = vst [vmem:[%s3] sm:$0xff] %v483
    %487 = vst [vmem:[%s3 + $0x8] sm:$0xff] %v484
    %488 = vst [vmem:[%s3 + $0x10] sm:$0xf] %v485
    %s489 = sld [smem:[#allocation2 + $0x18]]
    %s490 = sld [smem:[#allocation2 + $0x19]]
    %s491 = scalar_lea.vmem %s3, %s489
    %v492 = vld [vmem:[%s491] sm:$0x1]
    %s493 = scalar_lea.vmem %s3, %s490
    %v494 = vld [vmem:[%s493] sm:$0x1]
    %v495 = vmul.f32 %v492, %v494
    %v496 = vld [vmem:[%s3] sm:$0xff]
    %v497 = vld [vmem:[%s3 + $0x8] sm:$0xff]
    %v498 = vld [vmem:[%s3 + $0x10] sm:$0xf]
    %v499 = vld [vmem:[%s1] sm:$0xff]
    %v500 = vld [vmem:[%s1 + $0x8] sm:$0xff]
    %v501 = vld [vmem:[%s1 + $0x10] sm:$0xf]
    %503 = vset.pattern.permute.xlu0 12
    %504 = vperm.xlu0 %503, %v499
    %v505 = vpop.permute.xlu0 %504
    %508 = vset.pattern.permute.xlu0 12
    %509 = vperm.xlu0 %508, %v500
    %v510 = vpop.permute.xlu0 %509
    %513 = vset.pattern.permute.xlu0 12
    %514 = vperm.xlu0 %513, %v501
    %v515 = vpop.permute.xlu0 %514
    %v517 = vperm.slane %v495, 0
    %v518 = vmul.f32 %v505, %v517
    %v519 = vmul.f32 %v510, %v517
    %v520 = vmul.f32 %v515, %v517
    %v521 = vadd.f32 %v496, %v518
    %v522 = vadd.f32 %v497, %v519
    %v523 = vadd.f32 %v498, %v520
    %524 = vst [vmem:[%s3] sm:$0xff] %v521
    %525 = vst [vmem:[%s3 + $0x8] sm:$0xff] %v522
    %526 = vst [vmem:[%s3 + $0x10] sm:$0xf] %v523
    %s527 = sld [smem:[#allocation2 + $0x1a]]
    %s528 = sld [smem:[#allocation2 + $0x1b]]
    %s529 = scalar_lea.vmem %s3, %s527
    %v530 = vld [vmem:[%s529] sm:$0x1]
    %s531 = scalar_lea.vmem %s3, %s528
    %v532 = vld [vmem:[%s531] sm:$0x1]
    %v533 = vmul.f32 %v530, %v532
    %v534 = vld [vmem:[%s3] sm:$0xff]
    %v535 = vld [vmem:[%s3 + $0x8] sm:$0xff]
    %v536 = vld [vmem:[%s3 + $0x10] sm:$0xf]
    %v537 = vld [vmem:[%s1] sm:$0xff]
    %v538 = vld [vmem:[%s1 + $0x8] sm:$0xff]
    %v539 = vld [vmem:[%s1 + $0x10] sm:$0xf]
    %541 = vset.pattern.permute.xlu0 13
    %542 = vperm.xlu0 %541, %v537
    %v543 = vpop.permute.xlu0 %542
    %546 = vset.pattern.permute.xlu0 13
    %547 = vperm.xlu0 %546, %v538
    %v548 = vpop.permute.xlu0 %547
    %551 = vset.pattern.permute.xlu0 13
    %552 = vperm.xlu0 %551, %v539
    %v553 = vpop.permute.xlu0 %552
    %v555 = vperm.slane %v533, 0
    %v556 = vmul.f32 %v543, %v555
    %v557 = vmul.f32 %v548, %v555
    %v558 = vmul.f32 %v553, %v555
    %v559 = vadd.f32 %v534, %v556
    %v560 = vadd.f32 %v535, %v557
    %v561 = vadd.f32 %v536, %v558
    %562 = vst [vmem:[%s3] sm:$0xff] %v559
    %563 = vst [vmem:[%s3 + $0x8] sm:$0xff] %v560
    %564 = vst [vmem:[%s3 + $0x10] sm:$0xf] %v561
    %s565 = sld [smem:[#allocation2 + $0x1c]]
    %s566 = sld [smem:[#allocation2 + $0x1d]]
    %s567 = scalar_lea.vmem %s3, %s565
    %v568 = vld [vmem:[%s567] sm:$0x1]
    %s569 = scalar_lea.vmem %s3, %s566
    %v570 = vld [vmem:[%s569] sm:$0x1]
    %v571 = vmul.f32 %v568, %v570
    %v572 = vld [vmem:[%s3] sm:$0xff]
    %v573 = vld [vmem:[%s3 + $0x8] sm:$0xff]
    %v574 = vld [vmem:[%s3 + $0x10] sm:$0xf]
    %v575 = vld [vmem:[%s1] sm:$0xff]
    %v576 = vld [vmem:[%s1 + $0x8] sm:$0xff]
    %v577 = vld [vmem:[%s1 + $0x10] sm:$0xf]
    %579 = vset.pattern.permute.xlu0 14
    %580 = vperm.xlu0 %579, %v575
    %v581 = vpop.permute.xlu0 %580
    %584 = vset.pattern.permute.xlu0 14
    %585 = vperm.xlu0 %584, %v576
    %v586 = vpop.permute.xlu0 %585
    %589 = vset.pattern.permute.xlu0 14
    %590 = vperm.xlu0 %589, %v577
    %v591 = vpop.permute.xlu0 %590
    %v593 = vperm.slane %v571, 0
    %v594 = vmul.f32 %v581, %v593
    %v595 = vmul.f32 %v586, %v593
    %v596 = vmul.f32 %v591, %v593
    %v597 = vadd.f32 %v572, %v594
    %v598 = vadd.f32 %v573, %v595
    %v599 = vadd.f32 %v574, %v596
    %600 = vst [vmem:[%s3] sm:$0xff] %v597
    %601 = vst [vmem:[%s3 + $0x8] sm:$0xff] %v598
    %602 = vst [vmem:[%s3 + $0x10] sm:$0xf] %v599
    %s603 = sld [smem:[#allocation2 + $0x1e]]
    %s604 = sld [smem:[#allocation2 + $0x1f]]
    %s605 = scalar_lea.vmem %s3, %s603
    %v606 = vld [vmem:[%s605] sm:$0x1]
    %s607 = scalar_lea.vmem %s3, %s604
    %v608 = vld [vmem:[%s607] sm:$0x1]
    %v609 = vmul.f32 %v606, %v608
    %v610 = vld [vmem:[%s3] sm:$0xff]
    %v611 = vld [vmem:[%s3 + $0x8] sm:$0xff]
    %v612 = vld [vmem:[%s3 + $0x10] sm:$0xf]
    %v613 = vld [vmem:[%s1] sm:$0xff]
    %v614 = vld [vmem:[%s1 + $0x8] sm:$0xff]
    %v615 = vld [vmem:[%s1 + $0x10] sm:$0xf]
    %617 = vset.pattern.permute.xlu0 15
    %618 = vperm.xlu0 %617, %v613
    %v619 = vpop.permute.xlu0 %618
    %622 = vset.pattern.permute.xlu0 15
    %623 = vperm.xlu0 %622, %v614
    %v624 = vpop.permute.xlu0 %623
    %627 = vset.pattern.permute.xlu0 15
    %628 = vperm.xlu0 %627, %v615
    %v629 = vpop.permute.xlu0 %628
    %v631 = vperm.slane %v609, 0
    %v632 = vmul.f32 %v619, %v631
    %v633 = vmul.f32 %v624, %v631
    %v634 = vmul.f32 %v629, %v631
    %v635 = vadd.f32 %v610, %v632
    %v636 = vadd.f32 %v611, %v633
    %v637 = vadd.f32 %v612, %v634
    %638 = vst [vmem:[%s3] sm:$0xff] %v635
    %639 = vst [vmem:[%s3 + $0x8] sm:$0xff] %v636
    %640 = vst [vmem:[%s3 + $0x10] sm:$0xf] %v637
    %s641 = sld [smem:[#allocation2 + $0x20]]
    %s642 = sld [smem:[#allocation2 + $0x21]]
    %s643 = scalar_lea.vmem %s3, %s641
    %v644 = vld [vmem:[%s643] sm:$0x1]
    %s645 = scalar_lea.vmem %s3, %s642
    %v646 = vld [vmem:[%s645] sm:$0x1]
    %v647 = vmul.f32 %v644, %v646
    %v648 = vld [vmem:[%s3] sm:$0xff]
    %v649 = vld [vmem:[%s3 + $0x8] sm:$0xff]
    %v650 = vld [vmem:[%s3 + $0x10] sm:$0xf]
    %v651 = vld [vmem:[%s1] sm:$0xff]
    %v652 = vld [vmem:[%s1 + $0x8] sm:$0xff]
    %v653 = vld [vmem:[%s1 + $0x10] sm:$0xf]
    %655 = vset.pattern.permute.xlu0 16
    %656 = vperm.xlu0 %655, %v651
    %v657 = vpop.permute.xlu0 %656
    %660 = vset.pattern.permute.xlu0 16
    %661 = vperm.xlu0 %660, %v652
    %v662 = vpop.permute.xlu0 %661
    %665 = vset.pattern.permute.xlu0 16
    %666 = vperm.xlu0 %665, %v653
    %v667 = vpop.permute.xlu0 %666
    %v669 = vperm.slane %v647, 0
    %v670 = vmul.f32 %v657, %v669
    %v671 = vmul.f32 %v662, %v669
    %v672 = vmul.f32 %v667, %v669
    %v673 = vadd.f32 %v648, %v670
    %v674 = vadd.f32 %v649, %v671
    %v675 = vadd.f32 %v650, %v672
    %676 = vst [vmem:[%s3] sm:$0xff] %v673
    %677 = vst [vmem:[%s3 + $0x8] sm:$0xff] %v674
    %678 = vst [vmem:[%s3 + $0x10] sm:$0xf] %v675
    %s679 = sld [smem:[#allocation2 + $0x22]]
    %s680 = sld [smem:[#allocation2 + $0x23]]
    %s681 = scalar_lea.vmem %s3, %s679
    %v682 = vld [vmem:[%s681] sm:$0x1]
    %s683 = scalar_lea.vmem %s3, %s680
    %v684 = vld [vmem:[%s683] sm:$0x1]
    %v685 = vmul.f32 %v682, %v684
    %v686 = vld [vmem:[%s3] sm:$0xff]
    %v687 = vld [vmem:[%s3 + $0x8] sm:$0xff]
    %v688 = vld [vmem:[%s3 + $0x10] sm:$0xf]
    %v689 = vld [vmem:[%s1] sm:$0xff]
    %v690 = vld [vmem:[%s1 + $0x8] sm:$0xff]
    %v691 = vld [vmem:[%s1 + $0x10] sm:$0xf]
    %693 = vset.pattern.permute.xlu0 17
    %694 = vperm.xlu0 %693, %v689
    %v695 = vpop.permute.xlu0 %694
    %698 = vset.pattern.permute.xlu0 17
    %699 = vperm.xlu0 %698, %v690
    %v700 = vpop.permute.xlu0 %699
    %703 = vset.pattern.permute.xlu0 17
    %704 = vperm.xlu0 %703, %v691
    %v705 = vpop.permute.xlu0 %704
    %v707 = vperm.slane %v685, 0
    %v708 = vmul.f32 %v695, %v707
    %v709 = vmul.f32 %v700, %v707
    %v710 = vmul.f32 %v705, %v707
    %v711 = vadd.f32 %v686, %v708
    %v712 = vadd.f32 %v687, %v709
    %v713 = vadd.f32 %v688, %v710
    %714 = vst [vmem:[%s3] sm:$0xff] %v711
    %715 = vst [vmem:[%s3 + $0x8] sm:$0xff] %v712
    %716 = vst [vmem:[%s3 + $0x10] sm:$0xf] %v713
    %s717 = sld [smem:[#allocation2 + $0x24]]
    %s718 = sld [smem:[#allocation2 + $0x25]]
    %s719 = scalar_lea.vmem %s3, %s717
    %v720 = vld [vmem:[%s719] sm:$0x1]
    %s721 = scalar_lea.vmem %s3, %s718
    %v722 = vld [vmem:[%s721] sm:$0x1]
    %v723 = vmul.f32 %v720, %v722
    %v724 = vld [vmem:[%s3] sm:$0xff]
    %v725 = vld [vmem:[%s3 + $0x8] sm:$0xff]
    %v726 = vld [vmem:[%s3 + $0x10] sm:$0xf]
    %v727 = vld [vmem:[%s1] sm:$0xff]
    %v728 = vld [vmem:[%s1 + $0x8] sm:$0xff]
    %v729 = vld [vmem:[%s1 + $0x10] sm:$0xf]
    %731 = vset.pattern.permute.xlu0 18
    %732 = vperm.xlu0 %731, %v727
    %v733 = vpop.permute.xlu0 %732
    %736 = vset.pattern.permute.xlu0 18
    %737 = vperm.xlu0 %736, %v728
    %v738 = vpop.permute.xlu0 %737
    %741 = vset.pattern.permute.xlu0 18
    %742 = vperm.xlu0 %741, %v729
    %v743 = vpop.permute.xlu0 %742
    %v745 = vperm.slane %v723, 0
    %v746 = vmul.f32 %v733, %v745
    %v747 = vmul.f32 %v738, %v745
    %v748 = vmul.f32 %v743, %v745
    %v749 = vadd.f32 %v724, %v746
    %v750 = vadd.f32 %v725, %v747
    %v751 = vadd.f32 %v726, %v748
    %752 = vst [vmem:[%s3] sm:$0xff] %v749
    %753 = vst [vmem:[%s3 + $0x8] sm:$0xff] %v750
    %754 = vst [vmem:[%s3 + $0x10] sm:$0xf] %v751
    %s755 = sld [smem:[#allocation2 + $0x26]]
    %s756 = sld [smem:[#allocation2 + $0x27]]
    %s757 = scalar_lea.vmem %s3, %s755
    %v758 = vld [vmem:[%s757] sm:$0x1]
    %s759 = scalar_lea.vmem %s3, %s756
    %v760 = vld [vmem:[%s759] sm:$0x1]
    %v761 = vmul.f32 %v758, %v760
    %v762 = vld [vmem:[%s3] sm:$0xff]
    %v763 = vld [vmem:[%s3 + $0x8] sm:$0xff]
    %v764 = vld [vmem:[%s3 + $0x10] sm:$0xf]
    %v765 = vld [vmem:[%s1] sm:$0xff]
    %v766 = vld [vmem:[%s1 + $0x8] sm:$0xff]
    %v767 = vld [vmem:[%s1 + $0x10] sm:$0xf]
    %769 = vset.pattern.permute.xlu0 19
    %770 = vperm.xlu0 %769, %v765
    %v771 = vpop.permute.xlu0 %770
    %774 = vset.pattern.permute.xlu0 19
    %775 = vperm.xlu0 %774, %v766
    %v776 = vpop.permute.xlu0 %775
    %779 = vset.pattern.permute.xlu0 19
    %780 = vperm.xlu0 %779, %v767
    %v781 = vpop.permute.xlu0 %780
    %v783 = vperm.slane %v761, 0
    %v784 = vmul.f32 %v771, %v783
    %v785 = vmul.f32 %v776, %v783
    %v786 = vmul.f32 %v781, %v783
    %v787 = vadd.f32 %v762, %v784
    %v788 = vadd.f32 %v763, %v785
    %v789 = vadd.f32 %v764, %v786
    %790 = vst [vmem:[%s3] sm:$0xff] %v787
    %791 = vst [vmem:[%s3 + $0x8] sm:$0xff] %v788
    %792 = vst [vmem:[%s3 + $0x10] sm:$0xf] %v789
    %s793 = sld [smem:[#allocation2 + $0x28]]
    %s794 = sld [smem:[#allocation2 + $0x29]]
    %s795 = scalar_lea.vmem %s3, %s793
    %v796 = vld [vmem:[%s795] sm:$0x1]
    %s797 = scalar_lea.vmem %s3, %s794
    %v798 = vld [vmem:[%s797] sm:$0x1]
    %v799 = vmul.f32 %v796, %v798
    %v800 = vld [vmem:[%s3] sm:$0xff]
    %v801 = vld [vmem:[%s3 + $0x8] sm:$0xff]
    %v802 = vld [vmem:[%s3 + $0x10] sm:$0xf]
    %v803 = vld [vmem:[%s1] sm:$0xff]
    %v804 = vld [vmem:[%s1 + $0x8] sm:$0xff]
    %v805 = vld [vmem:[%s1 + $0x10] sm:$0xf]
    %807 = vset.pattern.permute.xlu0 20
    %808 = vperm.xlu0 %807, %v803
    %v809 = vpop.permute.xlu0 %808
    %812 = vset.pattern.permute.xlu0 20
    %813 = vperm.xlu0 %812, %v804
    %v814 = vpop.permute.xlu0 %813
    %817 = vset.pattern.permute.xlu0 20
    %818 = vperm.xlu0 %817, %v805
    %v819 = vpop.permute.xlu0 %818
    %v821 = vperm.slane %v799, 0
    %v822 = vmul.f32 %v809, %v821
    %v823 = vmul.f32 %v814, %v821
    %v824 = vmul.f32 %v819, %v821
    %v825 = vadd.f32 %v800, %v822
    %v826 = vadd.f32 %v801, %v823
    %v827 = vadd.f32 %v802, %v824
    %828 = vst [vmem:[%s3] sm:$0xff] %v825
    %829 = vst [vmem:[%s3 + $0x8] sm:$0xff] %v826
    %830 = vst [vmem:[%s3 + $0x10] sm:$0xf] %v827
    %s831 = sld [smem:[#allocation2 + $0x2a]]
    %s832 = sld [smem:[#allocation2 + $0x2b]]
    %s833 = scalar_lea.vmem %s3, %s831
    %v834 = vld [vmem:[%s833] sm:$0x1]
    %s835 = scalar_lea.vmem %s3, %s832
    %v836 = vld [vmem:[%s835] sm:$0x1]
    %v837 = vmul.f32 %v834, %v836
    %v838 = vld [vmem:[%s3] sm:$0xff]
    %v839 = vld [vmem:[%s3 + $0x8] sm:$0xff]
    %v840 = vld [vmem:[%s3 + $0x10] sm:$0xf]
    %v841 = vld [vmem:[%s1] sm:$0xff]
    %v842 = vld [vmem:[%s1 + $0x8] sm:$0xff]
    %v843 = vld [vmem:[%s1 + $0x10] sm:$0xf]
    %845 = vset.pattern.permute.xlu0 21
    %846 = vperm.xlu0 %845, %v841
    %v847 = vpop.permute.xlu0 %846
    %850 = vset.pattern.permute.xlu0 21
    %851 = vperm.xlu0 %850, %v842
    %v852 = vpop.permute.xlu0 %851
    %855 = vset.pattern.permute.xlu0 21
    %856 = vperm.xlu0 %855, %v843
    %v857 = vpop.permute.xlu0 %856
    %v859 = vperm.slane %v837, 0
    %v860 = vmul.f32 %v847, %v859
    %v861 = vmul.f32 %v852, %v859
    %v862 = vmul.f32 %v857, %v859
    %v863 = vadd.f32 %v838, %v860
    %v864 = vadd.f32 %v839, %v861
    %v865 = vadd.f32 %v840, %v862
    %866 = vst [vmem:[%s3] sm:$0xff] %v863
    %867 = vst [vmem:[%s3 + $0x8] sm:$0xff] %v864
    %868 = vst [vmem:[%s3 + $0x10] sm:$0xf] %v865
    %s869 = sld [smem:[#allocation2 + $0x2c]]
    %s870 = sld [smem:[#allocation2 + $0x2d]]
    %s871 = scalar_lea.vmem %s3, %s869
    %v872 = vld [vmem:[%s871] sm:$0x1]
    %s873 = scalar_lea.vmem %s3, %s870
    %v874 = vld [vmem:[%s873] sm:$0x1]
    %v875 = vmul.f32 %v872, %v874
    %v876 = vld [vmem:[%s3] sm:$0xff]
    %v877 = vld [vmem:[%s3 + $0x8] sm:$0xff]
    %v878 = vld [vmem:[%s3 + $0x10] sm:$0xf]
    %v879 = vld [vmem:[%s1] sm:$0xff]
    %v880 = vld [vmem:[%s1 + $0x8] sm:$0xff]
    %v881 = vld [vmem:[%s1 + $0x10] sm:$0xf]
    %883 = vset.pattern.permute.xlu0 22
    %884 = vperm.xlu0 %883, %v879
    %v885 = vpop.permute.xlu0 %884
    %888 = vset.pattern.permute.xlu0 22
    %889 = vperm.xlu0 %888, %v880
    %v890 = vpop.permute.xlu0 %889
    %893 = vset.pattern.permute.xlu0 22
    %894 = vperm.xlu0 %893, %v881
    %v895 = vpop.permute.xlu0 %894
    %v897 = vperm.slane %v875, 0
    %v898 = vmul.f32 %v885, %v897
    %v899 = vmul.f32 %v890, %v897
    %v900 = vmul.f32 %v895, %v897
    %v901 = vadd.f32 %v876, %v898
    %v902 = vadd.f32 %v877, %v899
    %v903 = vadd.f32 %v878, %v900
    %904 = vst [vmem:[%s3] sm:$0xff] %v901
    %905 = vst [vmem:[%s3 + $0x8] sm:$0xff] %v902
    %906 = vst [vmem:[%s3 + $0x10] sm:$0xf] %v903
    %s907 = sld [smem:[#allocation2 + $0x2e]]
    %s908 = sld [smem:[#allocation2 + $0x2f]]
    %s909 = scalar_lea.vmem %s3, %s907
    %v910 = vld [vmem:[%s909] sm:$0x1]
    %s911 = scalar_lea.vmem %s3, %s908
    %v912 = vld [vmem:[%s911] sm:$0x1]
    %v913 = vmul.f32 %v910, %v912
    %v914 = vld [vmem:[%s3] sm:$0xff]
    %v915 = vld [vmem:[%s3 + $0x8] sm:$0xff]
    %v916 = vld [vmem:[%s3 + $0x10] sm:$0xf]
    %v917 = vld [vmem:[%s1] sm:$0xff]
    %v918 = vld [vmem:[%s1 + $0x8] sm:$0xff]
    %v919 = vld [vmem:[%s1 + $0x10] sm:$0xf]
    %921 = vset.pattern.permute.xlu0 23
    %922 = vperm.xlu0 %921, %v917
    %v923 = vpop.permute.xlu0 %922
    %926 = vset.pattern.permute.xlu0 23
    %927 = vperm.xlu0 %926, %v918
    %v928 = vpop.permute.xlu0 %927
    %931 = vset.pattern.permute.xlu0 23
    %932 = vperm.xlu0 %931, %v919
    %v933 = vpop.permute.xlu0 %932
    %v935 = vperm.slane %v913, 0
    %v936 = vmul.f32 %v923, %v935
    %v937 = vmul.f32 %v928, %v935
    %v938 = vmul.f32 %v933, %v935
    %v939 = vadd.f32 %v914, %v936
    %v940 = vadd.f32 %v915, %v937
    %v941 = vadd.f32 %v916, %v938
    %942 = vst [vmem:[%s3] sm:$0xff] %v939
    %943 = vst [vmem:[%s3 + $0x8] sm:$0xff] %v940
    %944 = vst [vmem:[%s3 + $0x10] sm:$0xf] %v941
    %s945 = sld [smem:[#allocation2 + $0x30]]
    %s946 = sld [smem:[#allocation2 + $0x31]]
    %s947 = scalar_lea.vmem %s3, %s945
    %v948 = vld [vmem:[%s947] sm:$0x1]
    %s949 = scalar_lea.vmem %s3, %s946
    %v950 = vld [vmem:[%s949] sm:$0x1]
    %v951 = vmul.f32 %v948, %v950
    %v952 = vld [vmem:[%s3] sm:$0xff]
    %v953 = vld [vmem:[%s3 + $0x8] sm:$0xff]
    %v954 = vld [vmem:[%s3 + $0x10] sm:$0xf]
    %v955 = vld [vmem:[%s1] sm:$0xff]
    %v956 = vld [vmem:[%s1 + $0x8] sm:$0xff]
    %v957 = vld [vmem:[%s1 + $0x10] sm:$0xf]
    %959 = vset.pattern.permute.xlu0 24
    %960 = vperm.xlu0 %959, %v955
    %v961 = vpop.permute.xlu0 %960
    %964 = vset.pattern.permute.xlu0 24
    %965 = vperm.xlu0 %964, %v956
    %v966 = vpop.permute.xlu0 %965
    %969 = vset.pattern.permute.xlu0 24
    %970 = vperm.xlu0 %969, %v957
    %v971 = vpop.permute.xlu0 %970
    %v973 = vperm.slane %v951, 0
    %v974 = vmul.f32 %v961, %v973
    %v975 = vmul.f32 %v966, %v973
    %v976 = vmul.f32 %v971, %v973
    %v977 = vadd.f32 %v952, %v974
    %v978 = vadd.f32 %v953, %v975
    %v979 = vadd.f32 %v954, %v976
    %980 = vst [vmem:[%s3] sm:$0xff] %v977
    %981 = vst [vmem:[%s3 + $0x8] sm:$0xff] %v978
    %982 = vst [vmem:[%s3 + $0x10] sm:$0xf] %v979
    %s983 = sld [smem:[#allocation2 + $0x32]]
    %s984 = sld [smem:[#allocation2 + $0x33]]
    %s985 = scalar_lea.vmem %s3, %s983
    %v986 = vld [vmem:[%s985] sm:$0x1]
    %s987 = scalar_lea.vmem %s3, %s984
    %v988 = vld [vmem:[%s987] sm:$0x1]
    %v989 = vmul.f32 %v986, %v988
    %v990 = vld [vmem:[%s3] sm:$0xff]
    %v991 = vld [vmem:[%s3 + $0x8] sm:$0xff]
    %v992 = vld [vmem:[%s3 + $0x10] sm:$0xf]
    %v993 = vld [vmem:[%s1] sm:$0xff]
    %v994 = vld [vmem:[%s1 + $0x8] sm:$0xff]
    %v995 = vld [vmem:[%s1 + $0x10] sm:$0xf]
    %997 = vset.pattern.permute.xlu0 25
    %998 = vperm.xlu0 %997, %v993
    %v999 = vpop.permute.xlu0 %998
    %1002 = vset.pattern.permute.xlu0 25
    %1003 = vperm.xlu0 %1002, %v994
    %v1004 = vpop.permute.xlu0 %1003
    %1007 = vset.pattern.permute.xlu0 25
    %1008 = vperm.xlu0 %1007, %v995
    %v1009 = vpop.permute.xlu0 %1008
    %v1011 = vperm.slane %v989, 0
    %v1012 = vmul.f32 %v999, %v1011
    %v1013 = vmul.f32 %v1004, %v1011
    %v1014 = vmul.f32 %v1009, %v1011
    %v1015 = vadd.f32 %v990, %v1012
    %v1016 = vadd.f32 %v991, %v1013
    %v1017 = vadd.f32 %v992, %v1014
    %1018 = vst [vmem:[%s3] sm:$0xff] %v1015
    %1019 = vst [vmem:[%s3 + $0x8] sm:$0xff] %v1016
    %1020 = vst [vmem:[%s3 + $0x10] sm:$0xf] %v1017
    %s1021 = sld [smem:[#allocation2 + $0x34]]
    %s1022 = sld [smem:[#allocation2 + $0x35]]
    %s1023 = scalar_lea.vmem %s3, %s1021
    %v1024 = vld [vmem:[%s1023] sm:$0x1]
    %s1025 = scalar_lea.vmem %s3, %s1022
    %v1026 = vld [vmem:[%s1025] sm:$0x1]
    %v1027 = vmul.f32 %v1024, %v1026
    %v1028 = vld [vmem:[%s3] sm:$0xff]
    %v1029 = vld [vmem:[%s3 + $0x8] sm:$0xff]
    %v1030 = vld [vmem:[%s3 + $0x10] sm:$0xf]
    %v1031 = vld [vmem:[%s1] sm:$0xff]
    %v1032 = vld [vmem:[%s1 + $0x8] sm:$0xff]
    %v1033 = vld [vmem:[%s1 + $0x10] sm:$0xf]
    %1035 = vset.pattern.permute.xlu0 26
    %1036 = vperm.xlu0 %1035, %v1031
    %v1037 = vpop.permute.xlu0 %1036
    %1040 = vset.pattern.permute.xlu0 26
    %1041 = vperm.xlu0 %1040, %v1032
    %v1042 = vpop.permute.xlu0 %1041
    %1045 = vset.pattern.permute.xlu0 26
    %1046 = vperm.xlu0 %1045, %v1033
    %v1047 = vpop.permute.xlu0 %1046
    %v1049 = vperm.slane %v1027, 0
    %v1050 = vmul.f32 %v1037, %v1049
    %v1051 = vmul.f32 %v1042, %v1049
    %v1052 = vmul.f32 %v1047, %v1049
    %v1053 = vadd.f32 %v1028, %v1050
    %v1054 = vadd.f32 %v1029, %v1051
    %v1055 = vadd.f32 %v1030, %v1052
    %1056 = vst [vmem:[%s3] sm:$0xff] %v1053
    %1057 = vst [vmem:[%s3 + $0x8] sm:$0xff] %v1054
    %1058 = vst [vmem:[%s3 + $0x10] sm:$0xf] %v1055
    %s1059 = sld [smem:[#allocation2 + $0x36]]
    %s1060 = sld [smem:[#allocation2 + $0x37]]
    %s1061 = scalar_lea.vmem %s3, %s1059
    %v1062 = vld [vmem:[%s1061] sm:$0x1]
    %s1063 = scalar_lea.vmem %s3, %s1060
    %v1064 = vld [vmem:[%s1063] sm:$0x1]
    %v1065 = vmul.f32 %v1062, %v1064
    %v1066 = vld [vmem:[%s3] sm:$0xff]
    %v1067 = vld [vmem:[%s3 + $0x8] sm:$0xff]
    %v1068 = vld [vmem:[%s3 + $0x10] sm:$0xf]
    %v1069 = vld [vmem:[%s1] sm:$0xff]
    %v1070 = vld [vmem:[%s1 + $0x8] sm:$0xff]
    %v1071 = vld [vmem:[%s1 + $0x10] sm:$0xf]
    %1073 = vset.pattern.permute.xlu0 27
    %1074 = vperm.xlu0 %1073, %v1069
    %v1075 = vpop.permute.xlu0 %1074
    %1078 = vset.pattern.permute.xlu0 27
    %1079 = vperm.xlu0 %1078, %v1070
    %v1080 = vpop.permute.xlu0 %1079
    %1083 = vset.pattern.permute.xlu0 27
    %1084 = vperm.xlu0 %1083, %v1071
    %v1085 = vpop.permute.xlu0 %1084
    %v1087 = vperm.slane %v1065, 0
    %v1088 = vmul.f32 %v1075, %v1087
    %v1089 = vmul.f32 %v1080, %v1087
    %v1090 = vmul.f32 %v1085, %v1087
    %v1091 = vadd.f32 %v1066, %v1088
    %v1092 = vadd.f32 %v1067, %v1089
    %v1093 = vadd.f32 %v1068, %v1090
    %1094 = vst [vmem:[%s3] sm:$0xff] %v1091
    %1095 = vst [vmem:[%s3 + $0x8] sm:$0xff] %v1092
    %1096 = vst [vmem:[%s3 + $0x10] sm:$0xf] %v1093
    %s1097 = sld [smem:[#allocation2 + $0x38]]
    %s1098 = sld [smem:[#allocation2 + $0x39]]
    %s1099 = scalar_lea.vmem %s3, %s1097
    %v1100 = vld [vmem:[%s1099] sm:$0x1]
    %s1101 = scalar_lea.vmem %s3, %s1098
    %v1102 = vld [vmem:[%s1101] sm:$0x1]
    %v1103 = vmul.f32 %v1100, %v1102
    %v1104 = vld [vmem:[%s3] sm:$0xff]
    %v1105 = vld [vmem:[%s3 + $0x8] sm:$0xff]
    %v1106 = vld [vmem:[%s3 + $0x10] sm:$0xf]
    %v1107 = vld [vmem:[%s1] sm:$0xff]
    %v1108 = vld [vmem:[%s1 + $0x8] sm:$0xff]
    %v1109 = vld [vmem:[%s1 + $0x10] sm:$0xf]
    %1111 = vset.pattern.permute.xlu0 28
    %1112 = vperm.xlu0 %1111, %v1107
    %v1113 = vpop.permute.xlu0 %1112
    %1116 = vset.pattern.permute.xlu0 28
    %1117 = vperm.xlu0 %1116, %v1108
    %v1118 = vpop.permute.xlu0 %1117
    %1121 = vset.pattern.permute.xlu0 28
    %1122 = vperm.xlu0 %1121, %v1109
    %v1123 = vpop.permute.xlu0 %1122
    %v1125 = vperm.slane %v1103, 0
    %v1126 = vmul.f32 %v1113, %v1125
    %v1127 = vmul.f32 %v1118, %v1125
    %v1128 = vmul.f32 %v1123, %v1125
    %v1129 = vadd.f32 %v1104, %v1126
    %v1130 = vadd.f32 %v1105, %v1127
    %v1131 = vadd.f32 %v1106, %v1128
    %1132 = vst [vmem:[%s3] sm:$0xff] %v1129
    %1133 = vst [vmem:[%s3 + $0x8] sm:$0xff] %v1130
    %1134 = vst [vmem:[%s3 + $0x10] sm:$0xf] %v1131
    %s1135 = sld [smem:[#allocation2 + $0x3a]]
    %s1136 = sld [smem:[#allocation2 + $0x3b]]
    %s1137 = scalar_lea.vmem %s3, %s1135
    %v1138 = vld [vmem:[%s1137] sm:$0x1]
    %s1139 = scalar_lea.vmem %s3, %s1136
    %v1140 = vld [vmem:[%s1139] sm:$0x1]
    %v1141 = vmul.f32 %v1138, %v1140
    %v1142 = vld [vmem:[%s3] sm:$0xff]
    %v1143 = vld [vmem:[%s3 + $0x8] sm:$0xff]
    %v1144 = vld [vmem:[%s3 + $0x10] sm:$0xf]
    %v1145 = vld [vmem:[%s1] sm:$0xff]
    %v1146 = vld [vmem:[%s1 + $0x8] sm:$0xff]
    %v1147 = vld [vmem:[%s1 + $0x10] sm:$0xf]
    %1149 = vset.pattern.permute.xlu0 29
    %1150 = vperm.xlu0 %1149, %v1145
    %v1151 = vpop.permute.xlu0 %1150
    %1154 = vset.pattern.permute.xlu0 29
    %1155 = vperm.xlu0 %1154, %v1146
    %v1156 = vpop.permute.xlu0 %1155
    %1159 = vset.pattern.permute.xlu0 29
    %1160 = vperm.xlu0 %1159, %v1147
    %v1161 = vpop.permute.xlu0 %1160
    %v1163 = vperm.slane %v1141, 0
    %v1164 = vmul.f32 %v1151, %v1163
    %v1165 = vmul.f32 %v1156, %v1163
    %v1166 = vmul.f32 %v1161, %v1163
    %v1167 = vadd.f32 %v1142, %v1164
    %v1168 = vadd.f32 %v1143, %v1165
    %v1169 = vadd.f32 %v1144, %v1166
    %1170 = vst [vmem:[%s3] sm:$0xff] %v1167
    %1171 = vst [vmem:[%s3 + $0x8] sm:$0xff] %v1168
    %1172 = vst [vmem:[%s3 + $0x10] sm:$0xf] %v1169
    %s1173 = sld [smem:[#allocation2 + $0x3c]]
    %s1174 = sld [smem:[#allocation2 + $0x3d]]
    %s1175 = scalar_lea.vmem %s3, %s1173
    %v1176 = vld [vmem:[%s1175] sm:$0x1]
    %s1177 = scalar_lea.vmem %s3, %s1174
    %v1178 = vld [vmem:[%s1177] sm:$0x1]
    %v1179 = vmul.f32 %v1176, %v1178
    %v1180 = vld [vmem:[%s3] sm:$0xff]
    %v1181 = vld [vmem:[%s3 + $0x8] sm:$0xff]
    %v1182 = vld [vmem:[%s3 + $0x10] sm:$0xf]
    %v1183 = vld [vmem:[%s1] sm:$0xff]
    %v1184 = vld [vmem:[%s1 + $0x8] sm:$0xff]
    %v1185 = vld [vmem:[%s1 + $0x10] sm:$0xf]
    %1187 = vset.pattern.permute.xlu0 30
    %1188 = vperm.xlu0 %1187, %v1183
    %v1189 = vpop.permute.xlu0 %1188
    %1192 = vset.pattern.permute.xlu0 30
    %1193 = vperm.xlu0 %1192, %v1184
    %v1194 = vpop.permute.xlu0 %1193
    %1197 = vset.pattern.permute.xlu0 30
    %1198 = vperm.xlu0 %1197, %v1185
    %v1199 = vpop.permute.xlu0 %1198
    %v1201 = vperm.slane %v1179, 0
    %v1202 = vmul.f32 %v1189, %v1201
    %v1203 = vmul.f32 %v1194, %v1201
    %v1204 = vmul.f32 %v1199, %v1201
    %v1205 = vadd.f32 %v1180, %v1202
    %v1206 = vadd.f32 %v1181, %v1203
    %v1207 = vadd.f32 %v1182, %v1204
    %1208 = vst [vmem:[%s3] sm:$0xff] %v1205
    %1209 = vst [vmem:[%s3 + $0x8] sm:$0xff] %v1206
    %1210 = vst [vmem:[%s3 + $0x10] sm:$0xf] %v1207
    %s1211 = sld [smem:[#allocation2 + $0x3e]]
    %s1212 = sld [smem:[#allocation2 + $0x3f]]
    %s1213 = scalar_lea.vmem %s3, %s1211
    %v1214 = vld [vmem:[%s1213] sm:$0x1]
    %s1215 = scalar_lea.vmem %s3, %s1212
    %v1216 = vld [vmem:[%s1215] sm:$0x1]
    %v1217 = vmul.f32 %v1214, %v1216
    %v1218 = vld [vmem:[%s3] sm:$0xff]
    %v1219 = vld [vmem:[%s3 + $0x8] sm:$0xff]
    %v1220 = vld [vmem:[%s3 + $0x10] sm:$0xf]
    %v1221 = vld [vmem:[%s1] sm:$0xff]
    %v1222 = vld [vmem:[%s1 + $0x8] sm:$0xff]
    %v1223 = vld [vmem:[%s1 + $0x10] sm:$0xf]
    %1225 = vset.pattern.permute.xlu0 31
    %1226 = vperm.xlu0 %1225, %v1221
    %v1227 = vpop.permute.xlu0 %1226
    %1230 = vset.pattern.permute.xlu0 31
    %1231 = vperm.xlu0 %1230, %v1222
    %v1232 = vpop.permute.xlu0 %1231
    %1235 = vset.pattern.permute.xlu0 31
    %1236 = vperm.xlu0 %1235, %v1223
    %v1237 = vpop.permute.xlu0 %1236
    %v1239 = vperm.slane %v1217, 0
    %v1240 = vmul.f32 %v1227, %v1239
    %v1241 = vmul.f32 %v1232, %v1239
    %v1242 = vmul.f32 %v1237, %v1239
    %v1243 = vadd.f32 %v1218, %v1240
    %v1244 = vadd.f32 %v1219, %v1241
    %v1245 = vadd.f32 %v1220, %v1242
    %1246 = vst [vmem:[%s3] sm:$0xff] %v1243
    %1247 = vst [vmem:[%s3 + $0x8] sm:$0xff] %v1244
    %1248 = vst [vmem:[%s3 + $0x10] sm:$0xf] %v1245
    %s1249 = sld [smem:[#allocation2 + $0x40]]
    %s1250 = sld [smem:[#allocation2 + $0x41]]
    %s1251 = scalar_lea.vmem %s3, %s1249
    %v1252 = vld [vmem:[%s1251] sm:$0x1]
    %s1253 = scalar_lea.vmem %s3, %s1250
    %v1254 = vld [vmem:[%s1253] sm:$0x1]
    %v1255 = vmul.f32 %v1252, %v1254
    %v1256 = vld [vmem:[%s3] sm:$0xff]
    %v1257 = vld [vmem:[%s3 + $0x8] sm:$0xff]
    %v1258 = vld [vmem:[%s3 + $0x10] sm:$0xf]
    %v1259 = vld [vmem:[%s1] sm:$0xff]
    %v1260 = vld [vmem:[%s1 + $0x8] sm:$0xff]
    %v1261 = vld [vmem:[%s1 + $0x10] sm:$0xf]
    %1263 = vset.pattern.permute.xlu0 32
    %1264 = vperm.xlu0 %1263, %v1259
    %v1265 = vpop.permute.xlu0 %1264
    %1268 = vset.pattern.permute.xlu0 32
    %1269 = vperm.xlu0 %1268, %v1260
    %v1270 = vpop.permute.xlu0 %1269
    %1273 = vset.pattern.permute.xlu0 32
    %1274 = vperm.xlu0 %1273, %v1261
    %v1275 = vpop.permute.xlu0 %1274
    %v1277 = vperm.slane %v1255, 0
    %v1278 = vmul.f32 %v1265, %v1277
    %v1279 = vmul.f32 %v1270, %v1277
    %v1280 = vmul.f32 %v1275, %v1277
    %v1281 = vadd.f32 %v1256, %v1278
    %v1282 = vadd.f32 %v1257, %v1279
    %v1283 = vadd.f32 %v1258, %v1280
    %1284 = vst [vmem:[%s3] sm:$0xff] %v1281
    %1285 = vst [vmem:[%s3 + $0x8] sm:$0xff] %v1282
    %1286 = vst [vmem:[%s3 + $0x10] sm:$0xf] %v1283
    %s1287 = sld [smem:[#allocation2 + $0x42]]
    %s1288 = sld [smem:[#allocation2 + $0x43]]
    %s1289 = scalar_lea.vmem %s3, %s1287
    %v1290 = vld [vmem:[%s1289] sm:$0x1]
    %s1291 = scalar_lea.vmem %s3, %s1288
    %v1292 = vld [vmem:[%s1291] sm:$0x1]
    %v1293 = vmul.f32 %v1290, %v1292
    %v1294 = vld [vmem:[%s3] sm:$0xff]
    %v1295 = vld [vmem:[%s3 + $0x8] sm:$0xff]
    %v1296 = vld [vmem:[%s3 + $0x10] sm:$0xf]
    %v1297 = vld [vmem:[%s1] sm:$0xff]
    %v1298 = vld [vmem:[%s1 + $0x8] sm:$0xff]
    %v1299 = vld [vmem:[%s1 + $0x10] sm:$0xf]
    %1301 = vset.pattern.permute.xlu0 33
    %1302 = vperm.xlu0 %1301, %v1297
    %v1303 = vpop.permute.xlu0 %1302
    %1306 = vset.pattern.permute.xlu0 33
    %1307 = vperm.xlu0 %1306, %v1298
    %v1308 = vpop.permute.xlu0 %1307
    %1311 = vset.pattern.permute.xlu0 33
    %1312 = vperm.xlu0 %1311, %v1299
    %v1313 = vpop.permute.xlu0 %1312
    %v1315 = vperm.slane %v1293, 0
    %v1316 = vmul.f32 %v1303, %v1315
    %v1317 = vmul.f32 %v1308, %v1315
    %v1318 = vmul.f32 %v1313, %v1315
    %v1319 = vadd.f32 %v1294, %v1316
    %v1320 = vadd.f32 %v1295, %v1317
    %v1321 = vadd.f32 %v1296, %v1318
    %1322 = vst [vmem:[%s3] sm:$0xff] %v1319
    %1323 = vst [vmem:[%s3 + $0x8] sm:$0xff] %v1320
    %1324 = vst [vmem:[%s3 + $0x10] sm:$0xf] %v1321
    %s1325 = sld [smem:[#allocation2 + $0x44]]
    %s1326 = sld [smem:[#allocation2 + $0x45]]
    %s1327 = scalar_lea.vmem %s3, %s1325
    %v1328 = vld [vmem:[%s1327] sm:$0x1]
    %s1329 = scalar_lea.vmem %s3, %s1326
    %v1330 = vld [vmem:[%s1329] sm:$0x1]
    %v1331 = vmul.f32 %v1328, %v1330
    %v1332 = vld [vmem:[%s3] sm:$0xff]
    %v1333 = vld [vmem:[%s3 + $0x8] sm:$0xff]
    %v1334 = vld [vmem:[%s3 + $0x10] sm:$0xf]
    %v1335 = vld [vmem:[%s1] sm:$0xff]
    %v1336 = vld [vmem:[%s1 + $0x8] sm:$0xff]
    %v1337 = vld [vmem:[%s1 + $0x10] sm:$0xf]
    %1339 = vset.pattern.permute.xlu0 34
    %1340 = vperm.xlu0 %1339, %v1335
    %v1341 = vpop.permute.xlu0 %1340
    %1344 = vset.pattern.permute.xlu0 34
    %1345 = vperm.xlu0 %1344, %v1336
    %v1346 = vpop.permute.xlu0 %1345
    %1349 = vset.pattern.permute.xlu0 34
    %1350 = vperm.xlu0 %1349, %v1337
    %v1351 = vpop.permute.xlu0 %1350
    %v1353 = vperm.slane %v1331, 0
    %v1354 = vmul.f32 %v1341, %v1353
    %v1355 = vmul.f32 %v1346, %v1353
    %v1356 = vmul.f32 %v1351, %v1353
    %v1357 = vadd.f32 %v1332, %v1354
    %v1358 = vadd.f32 %v1333, %v1355
    %v1359 = vadd.f32 %v1334, %v1356
    %1360 = vst [vmem:[%s3] sm:$0xff] %v1357
    %1361 = vst [vmem:[%s3 + $0x8] sm:$0xff] %v1358
    %1362 = vst [vmem:[%s3 + $0x10] sm:$0xf] %v1359
    %s1363 = sld [smem:[#allocation2 + $0x46]]
    %s1364 = sld [smem:[#allocation2 + $0x47]]
    %s1365 = scalar_lea.vmem %s3, %s1363
    %v1366 = vld [vmem:[%s1365] sm:$0x1]
    %s1367 = scalar_lea.vmem %s3, %s1364
    %v1368 = vld [vmem:[%s1367] sm:$0x1]
    %v1369 = vmul.f32 %v1366, %v1368
    %v1370 = vld [vmem:[%s3] sm:$0xff]
    %v1371 = vld [vmem:[%s3 + $0x8] sm:$0xff]
    %v1372 = vld [vmem:[%s3 + $0x10] sm:$0xf]
    %v1373 = vld [vmem:[%s1] sm:$0xff]
    %v1374 = vld [vmem:[%s1 + $0x8] sm:$0xff]
    %v1375 = vld [vmem:[%s1 + $0x10] sm:$0xf]
    %1377 = vset.pattern.permute.xlu0 35
    %1378 = vperm.xlu0 %1377, %v1373
    %v1379 = vpop.permute.xlu0 %1378
    %1382 = vset.pattern.permute.xlu0 35
    %1383 = vperm.xlu0 %1382, %v1374
    %v1384 = vpop.permute.xlu0 %1383
    %1387 = vset.pattern.permute.xlu0 35
    %1388 = vperm.xlu0 %1387, %v1375
    %v1389 = vpop.permute.xlu0 %1388
    %v1391 = vperm.slane %v1369, 0
    %v1392 = vmul.f32 %v1379, %v1391
    %v1393 = vmul.f32 %v1384, %v1391
    %v1394 = vmul.f32 %v1389, %v1391
    %v1395 = vadd.f32 %v1370, %v1392
    %v1396 = vadd.f32 %v1371, %v1393
    %v1397 = vadd.f32 %v1372, %v1394
    %1398 = vst [vmem:[%s3] sm:$0xff] %v1395
    %1399 = vst [vmem:[%s3 + $0x8] sm:$0xff] %v1396
    %1400 = vst [vmem:[%s3 + $0x10] sm:$0xf] %v1397
    %s1401 = sld [smem:[#allocation2 + $0x48]]
    %s1402 = sld [smem:[#allocation2 + $0x49]]
    %s1403 = scalar_lea.vmem %s3, %s1401
    %v1404 = vld [vmem:[%s1403] sm:$0x1]
    %s1405 = scalar_lea.vmem %s3, %s1402
    %v1406 = vld [vmem:[%s1405] sm:$0x1]
    %v1407 = vmul.f32 %v1404, %v1406
    %v1408 = vld [vmem:[%s3] sm:$0xff]
    %v1409 = vld [vmem:[%s3 + $0x8] sm:$0xff]
    %v1410 = vld [vmem:[%s3 + $0x10] sm:$0xf]
    %v1411 = vld [vmem:[%s1] sm:$0xff]
    %v1412 = vld [vmem:[%s1 + $0x8] sm:$0xff]
    %v1413 = vld [vmem:[%s1 + $0x10] sm:$0xf]
    %1415 = vset.pattern.permute.xlu0 36
    %1416 = vperm.xlu0 %1415, %v1411
    %v1417 = vpop.permute.xlu0 %1416
    %1420 = vset.pattern.permute.xlu0 36
    %1421 = vperm.xlu0 %1420, %v1412
    %v1422 = vpop.permute.xlu0 %1421
    %1425 = vset.pattern.permute.xlu0 36
    %1426 = vperm.xlu0 %1425, %v1413
    %v1427 = vpop.permute.xlu0 %1426
    %v1429 = vperm.slane %v1407, 0
    %v1430 = vmul.f32 %v1417, %v1429
    %v1431 = vmul.f32 %v1422, %v1429
    %v1432 = vmul.f32 %v1427, %v1429
    %v1433 = vadd.f32 %v1408, %v1430
    %v1434 = vadd.f32 %v1409, %v1431
    %v1435 = vadd.f32 %v1410, %v1432
    %1436 = vst [vmem:[%s3] sm:$0xff] %v1433
    %1437 = vst [vmem:[%s3 + $0x8] sm:$0xff] %v1434
    %1438 = vst [vmem:[%s3 + $0x10] sm:$0xf] %v1435
    %s1439 = sld [smem:[#allocation2 + $0x4a]]
    %s1440 = sld [smem:[#allocation2 + $0x4b]]
    %s1441 = scalar_lea.vmem %s3, %s1439
    %v1442 = vld [vmem:[%s1441] sm:$0x1]
    %s1443 = scalar_lea.vmem %s3, %s1440
    %v1444 = vld [vmem:[%s1443] sm:$0x1]
    %v1445 = vmul.f32 %v1442, %v1444
    %v1446 = vld [vmem:[%s3] sm:$0xff]
    %v1447 = vld [vmem:[%s3 + $0x8] sm:$0xff]
    %v1448 = vld [vmem:[%s3 + $0x10] sm:$0xf]
    %v1449 = vld [vmem:[%s1] sm:$0xff]
    %v1450 = vld [vmem:[%s1 + $0x8] sm:$0xff]
    %v1451 = vld [vmem:[%s1 + $0x10] sm:$0xf]
    %1453 = vset.pattern.permute.xlu0 37
    %1454 = vperm.xlu0 %1453, %v1449
    %v1455 = vpop.permute.xlu0 %1454
    %1458 = vset.pattern.permute.xlu0 37
    %1459 = vperm.xlu0 %1458, %v1450
    %v1460 = vpop.permute.xlu0 %1459
    %1463 = vset.pattern.permute.xlu0 37
    %1464 = vperm.xlu0 %1463, %v1451
    %v1465 = vpop.permute.xlu0 %1464
    %v1467 = vperm.slane %v1445, 0
    %v1468 = vmul.f32 %v1455, %v1467
    %v1469 = vmul.f32 %v1460, %v1467
    %v1470 = vmul.f32 %v1465, %v1467
    %v1471 = vadd.f32 %v1446, %v1468
    %v1472 = vadd.f32 %v1447, %v1469
    %v1473 = vadd.f32 %v1448, %v1470
    %1474 = vst [vmem:[%s3] sm:$0xff] %v1471
    %1475 = vst [vmem:[%s3 + $0x8] sm:$0xff] %v1472
    %1476 = vst [vmem:[%s3 + $0x10] sm:$0xf] %v1473
    %s1477 = sld [smem:[#allocation2 + $0x4c]]
    %s1478 = sld [smem:[#allocation2 + $0x4d]]
    %s1479 = scalar_lea.vmem %s3, %s1477
    %v1480 = vld [vmem:[%s1479] sm:$0x1]
    %s1481 = scalar_lea.vmem %s3, %s1478
    %v1482 = vld [vmem:[%s1481] sm:$0x1]
    %v1483 = vmul.f32 %v1480, %v1482
    %v1484 = vld [vmem:[%s3] sm:$0xff]
    %v1485 = vld [vmem:[%s3 + $0x8] sm:$0xff]
    %v1486 = vld [vmem:[%s3 + $0x10] sm:$0xf]
    %v1487 = vld [vmem:[%s1] sm:$0xff]
    %v1488 = vld [vmem:[%s1 + $0x8] sm:$0xff]
    %v1489 = vld [vmem:[%s1 + $0x10] sm:$0xf]
    %1491 = vset.pattern.permute.xlu0 38
    %1492 = vperm.xlu0 %1491, %v1487
    %v1493 = vpop.permute.xlu0 %1492
    %1496 = vset.pattern.permute.xlu0 38
    %1497 = vperm.xlu0 %1496, %v1488
    %v1498 = vpop.permute.xlu0 %1497
    %1501 = vset.pattern.permute.xlu0 38
    %1502 = vperm.xlu0 %1501, %v1489
    %v1503 = vpop.permute.xlu0 %1502
    %v1505 = vperm.slane %v1483, 0
    %v1506 = vmul.f32 %v1493, %v1505
    %v1507 = vmul.f32 %v1498, %v1505
    %v1508 = vmul.f32 %v1503, %v1505
    %v1509 = vadd.f32 %v1484, %v1506
    %v1510 = vadd.f32 %v1485, %v1507
    %v1511 = vadd.f32 %v1486, %v1508
    %1512 = vst [vmem:[%s3] sm:$0xff] %v1509
    %1513 = vst [vmem:[%s3 + $0x8] sm:$0xff] %v1510
    %1514 = vst [vmem:[%s3 + $0x10] sm:$0xf] %v1511
    %s1515 = sld [smem:[#allocation2 + $0x4e]]
    %s1516 = sld [smem:[#allocation2 + $0x4f]]
    %s1517 = scalar_lea.vmem %s3, %s1515
    %v1518 = vld [vmem:[%s1517] sm:$0x1]
    %s1519 = scalar_lea.vmem %s3, %s1516
    %v1520 = vld [vmem:[%s1519] sm:$0x1]
    %v1521 = vmul.f32 %v1518, %v1520
    %v1522 = vld [vmem:[%s3] sm:$0xff]
    %v1523 = vld [vmem:[%s3 + $0x8] sm:$0xff]
    %v1524 = vld [vmem:[%s3 + $0x10] sm:$0xf]
    %v1525 = vld [vmem:[%s1] sm:$0xff]
    %v1526 = vld [vmem:[%s1 + $0x8] sm:$0xff]
    %v1527 = vld [vmem:[%s1 + $0x10] sm:$0xf]
    %1529 = vset.pattern.permute.xlu0 39
    %1530 = vperm.xlu0 %1529, %v1525
    %v1531 = vpop.permute.xlu0 %1530
    %1534 = vset.pattern.permute.xlu0 39
    %1535 = vperm.xlu0 %1534, %v1526
    %v1536 = vpop.permute.xlu0 %1535
    %1539 = vset.pattern.permute.xlu0 39
    %1540 = vperm.xlu0 %1539, %v1527
    %v1541 = vpop.permute.xlu0 %1540
    %v1543 = vperm.slane %v1521, 0
    %v1544 = vmul.f32 %v1531, %v1543
    %v1545 = vmul.f32 %v1536, %v1543
    %v1546 = vmul.f32 %v1541, %v1543
    %v1547 = vadd.f32 %v1522, %v1544
    %v1548 = vadd.f32 %v1523, %v1545
    %v1549 = vadd.f32 %v1524, %v1546
    %1550 = vst [vmem:[%s3] sm:$0xff] %v1547
    %1551 = vst [vmem:[%s3 + $0x8] sm:$0xff] %v1548
    %1552 = vst [vmem:[%s3 + $0x10] sm:$0xf] %v1549
    %s1553 = sld [smem:[#allocation2 + $0x50]]
    %s1554 = sld [smem:[#allocation2 + $0x51]]
    %s1555 = scalar_lea.vmem %s3, %s1553
    %v1556 = vld [vmem:[%s1555] sm:$0x1]
    %s1557 = scalar_lea.vmem %s3, %s1554
    %v1558 = vld [vmem:[%s1557] sm:$0x1]
    %v1559 = vmul.f32 %v1556, %v1558
    %v1560 = vld [vmem:[%s3] sm:$0xff]
    %v1561 = vld [vmem:[%s3 + $0x8] sm:$0xff]
    %v1562 = vld [vmem:[%s3 + $0x10] sm:$0xf]
    %v1563 = vld [vmem:[%s1] sm:$0xff]
    %v1564 = vld [vmem:[%s1 + $0x8] sm:$0xff]
    %v1565 = vld [vmem:[%s1 + $0x10] sm:$0xf]
    %1567 = vset.pattern.permute.xlu0 40
    %1568 = vperm.xlu0 %1567, %v1563
    %v1569 = vpop.permute.xlu0 %1568
    %1572 = vset.pattern.permute.xlu0 40
    %1573 = vperm.xlu0 %1572, %v1564
    %v1574 = vpop.permute.xlu0 %1573
    %1577 = vset.pattern.permute.xlu0 40
    %1578 = vperm.xlu0 %1577, %v1565
    %v1579 = vpop.permute.xlu0 %1578
    %v1581 = vperm.slane %v1559, 0
    %v1582 = vmul.f32 %v1569, %v1581
    %v1583 = vmul.f32 %v1574, %v1581
    %v1584 = vmul.f32 %v1579, %v1581
    %v1585 = vadd.f32 %v1560, %v1582
    %v1586 = vadd.f32 %v1561, %v1583
    %v1587 = vadd.f32 %v1562, %v1584
    %1588 = vst [vmem:[%s3] sm:$0xff] %v1585
    %1589 = vst [vmem:[%s3 + $0x8] sm:$0xff] %v1586
    %1590 = vst [vmem:[%s3 + $0x10] sm:$0xf] %v1587
    %s1591 = sld [smem:[#allocation2 + $0x52]]
    %s1592 = sld [smem:[#allocation2 + $0x53]]
    %s1593 = scalar_lea.vmem %s3, %s1591
    %v1594 = vld [vmem:[%s1593] sm:$0x1]
    %s1595 = scalar_lea.vmem %s3, %s1592
    %v1596 = vld [vmem:[%s1595] sm:$0x1]
    %v1597 = vmul.f32 %v1594, %v1596
    %v1598 = vld [vmem:[%s3] sm:$0xff]
    %v1599 = vld [vmem:[%s3 + $0x8] sm:$0xff]
    %v1600 = vld [vmem:[%s3 + $0x10] sm:$0xf]
    %v1601 = vld [vmem:[%s1] sm:$0xff]
    %v1602 = vld [vmem:[%s1 + $0x8] sm:$0xff]
    %v1603 = vld [vmem:[%s1 + $0x10] sm:$0xf]
    %1605 = vset.pattern.permute.xlu0 41
    %1606 = vperm.xlu0 %1605, %v1601
    %v1607 = vpop.permute.xlu0 %1606
    %1610 = vset.pattern.permute.xlu0 41
    %1611 = vperm.xlu0 %1610, %v1602
    %v1612 = vpop.permute.xlu0 %1611
    %1615 = vset.pattern.permute.xlu0 41
    %1616 = vperm.xlu0 %1615, %v1603
    %v1617 = vpop.permute.xlu0 %1616
    %v1619 = vperm.slane %v1597, 0
    %v1620 = vmul.f32 %v1607, %v1619
    %v1621 = vmul.f32 %v1612, %v1619
    %v1622 = vmul.f32 %v1617, %v1619
    %v1623 = vadd.f32 %v1598, %v1620
    %v1624 = vadd.f32 %v1599, %v1621
    %v1625 = vadd.f32 %v1600, %v1622
    %1626 = vst [vmem:[%s3] sm:$0xff] %v1623
    %1627 = vst [vmem:[%s3 + $0x8] sm:$0xff] %v1624
    %1628 = vst [vmem:[%s3 + $0x10] sm:$0xf] %v1625
    %s1629 = sld [smem:[#allocation2 + $0x54]]
    %s1630 = sld [smem:[#allocation2 + $0x55]]
    %s1631 = scalar_lea.vmem %s3, %s1629
    %v1632 = vld [vmem:[%s1631] sm:$0x1]
    %s1633 = scalar_lea.vmem %s3, %s1630
    %v1634 = vld [vmem:[%s1633] sm:$0x1]
    %v1635 = vmul.f32 %v1632, %v1634
    %v1636 = vld [vmem:[%s3] sm:$0xff]
    %v1637 = vld [vmem:[%s3 + $0x8] sm:$0xff]
    %v1638 = vld [vmem:[%s3 + $0x10] sm:$0xf]
    %v1639 = vld [vmem:[%s1] sm:$0xff]
    %v1640 = vld [vmem:[%s1 + $0x8] sm:$0xff]
    %v1641 = vld [vmem:[%s1 + $0x10] sm:$0xf]
    %1643 = vset.pattern.permute.xlu0 42
    %1644 = vperm.xlu0 %1643, %v1639
    %v1645 = vpop.permute.xlu0 %1644
    %1648 = vset.pattern.permute.xlu0 42
    %1649 = vperm.xlu0 %1648, %v1640
    %v1650 = vpop.permute.xlu0 %1649
    %1653 = vset.pattern.permute.xlu0 42
    %1654 = vperm.xlu0 %1653, %v1641
    %v1655 = vpop.permute.xlu0 %1654
    %v1657 = vperm.slane %v1635, 0
    %v1658 = vmul.f32 %v1645, %v1657
    %v1659 = vmul.f32 %v1650, %v1657
    %v1660 = vmul.f32 %v1655, %v1657
    %v1661 = vadd.f32 %v1636, %v1658
    %v1662 = vadd.f32 %v1637, %v1659
    %v1663 = vadd.f32 %v1638, %v1660
    %1664 = vst [vmem:[%s3] sm:$0xff] %v1661
    %1665 = vst [vmem:[%s3 + $0x8] sm:$0xff] %v1662
    %1666 = vst [vmem:[%s3 + $0x10] sm:$0xf] %v1663
    %s1667 = sld [smem:[#allocation2 + $0x56]]
    %s1668 = sld [smem:[#allocation2 + $0x57]]
    %s1669 = scalar_lea.vmem %s3, %s1667
    %v1670 = vld [vmem:[%s1669] sm:$0x1]
    %s1671 = scalar_lea.vmem %s3, %s1668
    %v1672 = vld [vmem:[%s1671] sm:$0x1]
    %v1673 = vmul.f32 %v1670, %v1672
    %v1674 = vld [vmem:[%s3] sm:$0xff]
    %v1675 = vld [vmem:[%s3 + $0x8] sm:$0xff]
    %v1676 = vld [vmem:[%s3 + $0x10] sm:$0xf]
    %v1677 = vld [vmem:[%s1] sm:$0xff]
    %v1678 = vld [vmem:[%s1 + $0x8] sm:$0xff]
    %v1679 = vld [vmem:[%s1 + $0x10] sm:$0xf]
    %1681 = vset.pattern.permute.xlu0 43
    %1682 = vperm.xlu0 %1681, %v1677
    %v1683 = vpop.permute.xlu0 %1682
    %1686 = vset.pattern.permute.xlu0 43
    %1687 = vperm.xlu0 %1686, %v1678
    %v1688 = vpop.permute.xlu0 %1687
    %1691 = vset.pattern.permute.xlu0 43
    %1692 = vperm.xlu0 %1691, %v1679
    %v1693 = vpop.permute.xlu0 %1692
    %v1695 = vperm.slane %v1673, 0
    %v1696 = vmul.f32 %v1683, %v1695
    %v1697 = vmul.f32 %v1688, %v1695
    %v1698 = vmul.f32 %v1693, %v1695
    %v1699 = vadd.f32 %v1674, %v1696
    %v1700 = vadd.f32 %v1675, %v1697
    %v1701 = vadd.f32 %v1676, %v1698
    %1702 = vst [vmem:[%s3] sm:$0xff] %v1699
    %1703 = vst [vmem:[%s3 + $0x8] sm:$0xff] %v1700
    %1704 = vst [vmem:[%s3 + $0x10] sm:$0xf] %v1701
    %s1705 = sld [smem:[#allocation2 + $0x58]]
    %s1706 = sld [smem:[#allocation2 + $0x59]]
    %s1707 = scalar_lea.vmem %s3, %s1705
    %v1708 = vld [vmem:[%s1707] sm:$0x1]
    %s1709 = scalar_lea.vmem %s3, %s1706
    %v1710 = vld [vmem:[%s1709] sm:$0x1]
    %v1711 = vmul.f32 %v1708, %v1710
    %v1712 = vld [vmem:[%s3] sm:$0xff]
    %v1713 = vld [vmem:[%s3 + $0x8] sm:$0xff]
    %v1714 = vld [vmem:[%s3 + $0x10] sm:$0xf]
    %v1715 = vld [vmem:[%s1] sm:$0xff]
    %v1716 = vld [vmem:[%s1 + $0x8] sm:$0xff]
    %v1717 = vld [vmem:[%s1 + $0x10] sm:$0xf]
    %1719 = vset.pattern.permute.xlu0 44
    %1720 = vperm.xlu0 %1719, %v1715
    %v1721 = vpop.permute.xlu0 %1720
    %1724 = vset.pattern.permute.xlu0 44
    %1725 = vperm.xlu0 %1724, %v1716
    %v1726 = vpop.permute.xlu0 %1725
    %1729 = vset.pattern.permute.xlu0 44
    %1730 = vperm.xlu0 %1729, %v1717
    %v1731 = vpop.permute.xlu0 %1730
    %v1733 = vperm.slane %v1711, 0
    %v1734 = vmul.f32 %v1721, %v1733
    %v1735 = vmul.f32 %v1726, %v1733
    %v1736 = vmul.f32 %v1731, %v1733
    %v1737 = vadd.f32 %v1712, %v1734
    %v1738 = vadd.f32 %v1713, %v1735
    %v1739 = vadd.f32 %v1714, %v1736
    %1740 = vst [vmem:[%s3] sm:$0xff] %v1737
    %1741 = vst [vmem:[%s3 + $0x8] sm:$0xff] %v1738
    %1742 = vst [vmem:[%s3 + $0x10] sm:$0xf] %v1739
    %s1743 = sld [smem:[#allocation2 + $0x5a]]
    %s1744 = sld [smem:[#allocation2 + $0x5b]]
    %s1745 = scalar_lea.vmem %s3, %s1743
    %v1746 = vld [vmem:[%s1745] sm:$0x1]
    %s1747 = scalar_lea.vmem %s3, %s1744
    %v1748 = vld [vmem:[%s1747] sm:$0x1]
    %v1749 = vmul.f32 %v1746, %v1748
    %v1750 = vld [vmem:[%s3] sm:$0xff]
    %v1751 = vld [vmem:[%s3 + $0x8] sm:$0xff]
    %v1752 = vld [vmem:[%s3 + $0x10] sm:$0xf]
    %v1753 = vld [vmem:[%s1] sm:$0xff]
    %v1754 = vld [vmem:[%s1 + $0x8] sm:$0xff]
    %v1755 = vld [vmem:[%s1 + $0x10] sm:$0xf]
    %1757 = vset.pattern.permute.xlu0 45
    %1758 = vperm.xlu0 %1757, %v1753
    %v1759 = vpop.permute.xlu0 %1758
    %1762 = vset.pattern.permute.xlu0 45
    %1763 = vperm.xlu0 %1762, %v1754
    %v1764 = vpop.permute.xlu0 %1763
    %1767 = vset.pattern.permute.xlu0 45
    %1768 = vperm.xlu0 %1767, %v1755
    %v1769 = vpop.permute.xlu0 %1768
    %v1771 = vperm.slane %v1749, 0
    %v1772 = vmul.f32 %v1759, %v1771
    %v1773 = vmul.f32 %v1764, %v1771
    %v1774 = vmul.f32 %v1769, %v1771
    %v1775 = vadd.f32 %v1750, %v1772
    %v1776 = vadd.f32 %v1751, %v1773
    %v1777 = vadd.f32 %v1752, %v1774
    %1778 = vst [vmem:[%s3] sm:$0xff] %v1775
    %1779 = vst [vmem:[%s3 + $0x8] sm:$0xff] %v1776
    %1780 = vst [vmem:[%s3 + $0x10] sm:$0xf] %v1777
    %s1781 = sld [smem:[#allocation2 + $0x5c]]
    %s1782 = sld [smem:[#allocation2 + $0x5d]]
    %s1783 = scalar_lea.vmem %s3, %s1781
    %v1784 = vld [vmem:[%s1783] sm:$0x1]
    %s1785 = scalar_lea.vmem %s3, %s1782
    %v1786 = vld [vmem:[%s1785] sm:$0x1]
    %v1787 = vmul.f32 %v1784, %v1786
    %v1788 = vld [vmem:[%s3] sm:$0xff]
    %v1789 = vld [vmem:[%s3 + $0x8] sm:$0xff]
    %v1790 = vld [vmem:[%s3 + $0x10] sm:$0xf]
    %v1791 = vld [vmem:[%s1] sm:$0xff]
    %v1792 = vld [vmem:[%s1 + $0x8] sm:$0xff]
    %v1793 = vld [vmem:[%s1 + $0x10] sm:$0xf]
    %1795 = vset.pattern.permute.xlu0 46
    %1796 = vperm.xlu0 %1795, %v1791
    %v1797 = vpop.permute.xlu0 %1796
    %1800 = vset.pattern.permute.xlu0 46
    %1801 = vperm.xlu0 %1800, %v1792
    %v1802 = vpop.permute.xlu0 %1801
    %1805 = vset.pattern.permute.xlu0 46
    %1806 = vperm.xlu0 %1805, %v1793
    %v1807 = vpop.permute.xlu0 %1806
    %v1809 = vperm.slane %v1787, 0
    %v1810 = vmul.f32 %v1797, %v1809
    %v1811 = vmul.f32 %v1802, %v1809
    %v1812 = vmul.f32 %v1807, %v1809
    %v1813 = vadd.f32 %v1788, %v1810
    %v1814 = vadd.f32 %v1789, %v1811
    %v1815 = vadd.f32 %v1790, %v1812
    %1816 = vst [vmem:[%s3] sm:$0xff] %v1813
    %1817 = vst [vmem:[%s3 + $0x8] sm:$0xff] %v1814
    %1818 = vst [vmem:[%s3 + $0x10] sm:$0xf] %v1815
    %s1819 = sld [smem:[#allocation2 + $0x5e]]
    %s1820 = sld [smem:[#allocation2 + $0x5f]]
    %s1821 = scalar_lea.vmem %s3, %s1819
    %v1822 = vld [vmem:[%s1821] sm:$0x1]
    %s1823 = scalar_lea.vmem %s3, %s1820
    %v1824 = vld [vmem:[%s1823] sm:$0x1]
    %v1825 = vmul.f32 %v1822, %v1824
    %v1826 = vld [vmem:[%s3] sm:$0xff]
    %v1827 = vld [vmem:[%s3 + $0x8] sm:$0xff]
    %v1828 = vld [vmem:[%s3 + $0x10] sm:$0xf]
    %v1829 = vld [vmem:[%s1] sm:$0xff]
    %v1830 = vld [vmem:[%s1 + $0x8] sm:$0xff]
    %v1831 = vld [vmem:[%s1 + $0x10] sm:$0xf]
    %1833 = vset.pattern.permute.xlu0 47
    %1834 = vperm.xlu0 %1833, %v1829
    %v1835 = vpop.permute.xlu0 %1834
    %1838 = vset.pattern.permute.xlu0 47
    %1839 = vperm.xlu0 %1838, %v1830
    %v1840 = vpop.permute.xlu0 %1839
    %1843 = vset.pattern.permute.xlu0 47
    %1844 = vperm.xlu0 %1843, %v1831
    %v1845 = vpop.permute.xlu0 %1844
    %v1847 = vperm.slane %v1825, 0
    %v1848 = vmul.f32 %v1835, %v1847
    %v1849 = vmul.f32 %v1840, %v1847
    %v1850 = vmul.f32 %v1845, %v1847
    %v1851 = vadd.f32 %v1826, %v1848
    %v1852 = vadd.f32 %v1827, %v1849
    %v1853 = vadd.f32 %v1828, %v1850
    %1854 = vst [vmem:[%s3] sm:$0xff] %v1851
    %1855 = vst [vmem:[%s3 + $0x8] sm:$0xff] %v1852
    %1856 = vst [vmem:[%s3 + $0x10] sm:$0xf] %v1853
    %s1857 = sld [smem:[#allocation2 + $0x60]]
    %s1858 = sld [smem:[#allocation2 + $0x61]]
    %s1859 = scalar_lea.vmem %s3, %s1857
    %v1860 = vld [vmem:[%s1859] sm:$0x1]
    %s1861 = scalar_lea.vmem %s3, %s1858
    %v1862 = vld [vmem:[%s1861] sm:$0x1]
    %v1863 = vmul.f32 %v1860, %v1862
    %v1864 = vld [vmem:[%s3] sm:$0xff]
    %v1865 = vld [vmem:[%s3 + $0x8] sm:$0xff]
    %v1866 = vld [vmem:[%s3 + $0x10] sm:$0xf]
    %v1867 = vld [vmem:[%s1] sm:$0xff]
    %v1868 = vld [vmem:[%s1 + $0x8] sm:$0xff]
    %v1869 = vld [vmem:[%s1 + $0x10] sm:$0xf]
    %1871 = vset.pattern.permute.xlu0 48
    %1872 = vperm.xlu0 %1871, %v1867
    %v1873 = vpop.permute.xlu0 %1872
    %1876 = vset.pattern.permute.xlu0 48
    %1877 = vperm.xlu0 %1876, %v1868
    %v1878 = vpop.permute.xlu0 %1877
    %1881 = vset.pattern.permute.xlu0 48
    %1882 = vperm.xlu0 %1881, %v1869
    %v1883 = vpop.permute.xlu0 %1882
    %v1885 = vperm.slane %v1863, 0
    %v1886 = vmul.f32 %v1873, %v1885
    %v1887 = vmul.f32 %v1878, %v1885
    %v1888 = vmul.f32 %v1883, %v1885
    %v1889 = vadd.f32 %v1864, %v1886
    %v1890 = vadd.f32 %v1865, %v1887
    %v1891 = vadd.f32 %v1866, %v1888
    %1892 = vst [vmem:[%s3] sm:$0xff] %v1889
    %1893 = vst [vmem:[%s3 + $0x8] sm:$0xff] %v1890
    %1894 = vst [vmem:[%s3 + $0x10] sm:$0xf] %v1891
    %s1895 = sld [smem:[#allocation2 + $0x62]]
    %s1896 = sld [smem:[#allocation2 + $0x63]]
    %s1897 = scalar_lea.vmem %s3, %s1895
    %v1898 = vld [vmem:[%s1897] sm:$0x1]
    %s1899 = scalar_lea.vmem %s3, %s1896
    %v1900 = vld [vmem:[%s1899] sm:$0x1]
    %v1901 = vmul.f32 %v1898, %v1900
    %v1902 = vld [vmem:[%s3] sm:$0xff]
    %v1903 = vld [vmem:[%s3 + $0x8] sm:$0xff]
    %v1904 = vld [vmem:[%s3 + $0x10] sm:$0xf]
    %v1905 = vld [vmem:[%s1] sm:$0xff]
    %v1906 = vld [vmem:[%s1 + $0x8] sm:$0xff]
    %v1907 = vld [vmem:[%s1 + $0x10] sm:$0xf]
    %1909 = vset.pattern.permute.xlu0 49
    %1910 = vperm.xlu0 %1909, %v1905
    %v1911 = vpop.permute.xlu0 %1910
    %1914 = vset.pattern.permute.xlu0 49
    %1915 = vperm.xlu0 %1914, %v1906
    %v1916 = vpop.permute.xlu0 %1915
    %1919 = vset.pattern.permute.xlu0 49
    %1920 = vperm.xlu0 %1919, %v1907
    %v1921 = vpop.permute.xlu0 %1920
    %v1923 = vperm.slane %v1901, 0
    %v1924 = vmul.f32 %v1911, %v1923
    %v1925 = vmul.f32 %v1916, %v1923
    %v1926 = vmul.f32 %v1921, %v1923
    %v1927 = vadd.f32 %v1902, %v1924
    %v1928 = vadd.f32 %v1903, %v1925
    %v1929 = vadd.f32 %v1904, %v1926
    %1930 = vst [vmem:[%s3] sm:$0xff] %v1927
    %1931 = vst [vmem:[%s3 + $0x8] sm:$0xff] %v1928
    %1932 = vst [vmem:[%s3 + $0x10] sm:$0xf] %v1929
    // Predicated region
    $region18: #{multireaction_forward.1} parent=1 // pred_check
      _
    $region19: #{multireaction_forward.1} parent=1 // pred_check_branch
      %1934 = sbr.rel (0) target = $region21
    $region20: #{multireaction_forward.1} parent=1 // pred_region
      _
    $region21: #{multireaction_forward.1} parent=1 // pred_fallthru
      _
    // Predicated region
    $region22: #{multireaction_forward.1} parent=1 // pred_check
      _
    $region23: #{multireaction_forward.1} parent=1 // pred_check_branch
      %1936 = sbr.rel (0) target = $region25
    $region24: #{multireaction_forward.1} parent=1 // pred_region
      _
    $region25: #{multireaction_forward.1} parent=1 // pred_fallthru
      _
    %1937 = vsyncpa [#allocation3], 1

</llo_original>
